<compile_context>
chip_gen: v7x
topology: tpu7x:2x2x1
jax: 0.10.0
libtpu: 0.0.40
codegen_flags: <defaults>
</compile_context>

<pallas_src>
import jax
import jax.numpy as jnp
from jax import lax
from jax.experimental import pallas as pl
from jax.experimental.pallas import tpu as pltpu


def processor_kernel(x_ref, rc_ref, col_lane_ref, ea_ref, inv_cnt_ref,
                     w_src_stack_ref, w_dst_e_ref, be1_ref, we2_ref, be2_ref,
                     wn1e_ref, bn1_ref, wn1b_ref, bn1b_ref,
                     w_n2_in_ref, bn2_ref, wn2b_ref, bn2b_ref,
                     x_out_ref, e_out_ref, agg_ref):
    t = pl.program_id(0)

    @pl.when(t == 0)
    def _init():
        agg_ref[...] = jnp.zeros_like(agg_ref)

    x_bf = x_ref[...]                              # [Np, Hp]  bf16 (pre-cast in wrapper)
    ea_bf = ea_ref[...]                            # [tE, Hp]  bf16
    rc = rc_ref[...]                               # [2tE, 1]  int32  ([row ; col])
    col_l = col_lane_ref[...]                      # [1, tE]   int32  (lane-major col)
    Np, Hp = x_bf.shape
    tE = ea_bf.shape[0]

    # ---- fused gather of x[row] and x[col]: one one-hot build + one MXU pass ----
    node_ids = lax.broadcasted_iota(jnp.int32, (2 * tE, Np), 1)
    oh_rc = (node_ids == rc).astype(jnp.bfloat16)                   # [2tE, Np] (0/1 exact)
    gathered = jnp.dot(oh_rc, x_bf, preferred_element_type=jnp.float32)
    x_src = gathered[:tE].astype(jnp.bfloat16)                      # x[row]  [tE, Hp]
    x_dst = gathered[tE:].astype(jnp.bfloat16)                      # x[col]  [tE, Hp]

    # ---- edge MLP layer-1 (x_src part) fused with message MLP layer-1 (x_src part):
    #      single [tE,Hp] x [Hp,2Hp] pass, sliced at the 128-lane boundary ----
    u = jnp.dot(x_src, w_src_stack_ref[...], preferred_element_type=jnp.float32)
    h_src, m_src = u[:, :Hp], u[:, Hp:]

    # ---- edge MLP layer-1 (x_dst + edge_attr parts) fused along K: [tE,2Hp] x [2Hp,Hp] ----
    de = jnp.concatenate([x_dst, ea_bf], axis=1)
    h = jnp.maximum(
        h_src + jnp.dot(de, w_dst_e_ref[...], preferred_element_type=jnp.float32)
        + be1_ref[...], 0.0)
    e_new = jnp.dot(h.astype(jnp.bfloat16), we2_ref[...],
                    preferred_element_type=jnp.float32) + be2_ref[...]
    e_out_ref[...] = e_new.astype(e_out_ref.dtype)

    # ---- node message MLP ----
    m = jnp.maximum(
        m_src + jnp.dot(e_new.astype(jnp.bfloat16), wn1e_ref[...],
                        preferred_element_type=jnp.float32) + bn1_ref[...], 0.0)
    m = jnp.dot(m.astype(jnp.bfloat16), wn1b_ref[...],
                preferred_element_type=jnp.float32) + bn1b_ref[...]

    # ---- scatter-add over destination nodes: transposed one-hot [Np,tE] built directly
    #      from the lane-major col copy -> standard last-dim contraction, no XLU xpose.
    #      NOTE: messages are quantized to bf16 (f32 accumulation); acceptable per-edge
    #      ~0.4% relative error, averaged (not amplified) by the scatter-mean.
    node_ids_t = lax.broadcasted_iota(jnp.int32, (Np, tE), 0)
    oh_col_t = (node_ids_t == col_l).astype(jnp.bfloat16)           # [Np, tE]
    agg_ref[...] += jnp.dot(oh_col_t, m.astype(jnp.bfloat16),
                            preferred_element_type=jnp.float32)

    # ---- final node MLP once every edge tile has been accumulated.
    #      (Valid because the x_out block index is constant and the axis is "arbitrary"
    #      -> deferred writeback; a future multi-core split needs per-core output slabs.)
    @pl.when(t == pl.num_programs(0) - 1)
    def _finalize():
        agg = (agg_ref[...] * inv_cnt_ref[...]).astype(jnp.bfloat16)    # scatter-mean
        xa = jnp.concatenate([x_bf, agg], axis=1)                       # [Np, 2Hp]
        g = jnp.maximum(
            jnp.dot(xa, w_n2_in_ref[...], preferred_element_type=jnp.float32)
            + bn2_ref[...], 0.0)
        x_out_ref[...] = (jnp.dot(g.astype(jnp.bfloat16), wn2b_ref[...],
                                  preferred_element_type=jnp.float32)
                          + bn2b_ref[...]).astype(x_out_ref.dtype)


def _round_up(v, m):
    return ((v + m - 1) // m) * m


def processor_forward(x, edge_index, edge_attr, params, *, edge_tile=256,
                      out_dtype=jnp.float32):
    """Pads / packs operands and launches the edge-tiled Pallas kernel."""
    N, H = x.shape
    E = edge_attr.shape[0]
    Hp = _round_up(H, 128)          # lane-dense feature dim (pad weights once, slice outputs)
    Np = _round_up(N, 8)
    tE = edge_tile                  # multiple of 128: lane-major col block + bf16 sublanes
    assert tE % 128 == 0, "edge_tile must be a multiple of 128"
    Ep = _round_up(max(E, 1), tE)
    n_tiles = Ep // tE
    f32, bf16 = jnp.float32, jnp.bfloat16
    out_bytes = jnp.dtype(out_dtype).itemsize

    # ---- pad activations; pre-cast to bf16 so streams & residents are half-width ----
    x_p = jnp.zeros((Np, Hp), bf16).at[:N, :H].set(x.astype(bf16))
    ea_p = jnp.zeros((Ep, Hp), bf16).at[:E, :H].set(edge_attr.astype(bf16))

    row = edge_index[0].astype(jnp.int32)
    col = edge_index[1].astype(jnp.int32)
    # Sentinel index Np for padded edges -> all-zero one-hot rows (no gather/scatter effect).
    row_p = jnp.full((Ep,), Np, jnp.int32).at[:E].set(row)
    col_p = jnp.full((Ep,), Np, jnp.int32).at[:E].set(col)
    # Per-tile [row_tile ; col_tile] column (one DMA per tile, no in-kernel index concat).
    rc_tiles = jnp.concatenate(
        [row_p.reshape(n_tiles, tE), col_p.reshape(n_tiles, tE)], axis=1
    ).reshape(n_tiles, 2 * tE, 1)
    # Lane-major col copy for the transposed scatter one-hot.
    col_lane = col_p.reshape(1, Ep)

    # 1 / max(in-degree, 1): graph-only data, hoisted out of the kernel.
    counts = jax.ops.segment_sum(jnp.ones((E,), f32), col, num_segments=Np)
    inv_cnt = (1.0 / jnp.maximum(counts, 1.0)).reshape(Np, 1)

    # ---- pack weights: pad H -> Hp, stack for wide MXU operands, cast to bf16 ----
    def pw(w):
        return jnp.zeros((Hp, Hp), f32).at[:H, :H].set(w).astype(bf16)

    def pb(b):
        return jnp.zeros((1, Hp), f32).at[:, :H].set(b)

    w_src_stack = jnp.concatenate([pw(params["we_src"]), pw(params["wn1x"])], axis=1)  # [Hp,2Hp]
    w_dst_e = jnp.concatenate([pw(params["we_dst"]), pw(params["we_e"])], axis=0)      # [2Hp,Hp]
    w_n2_in = jnp.concatenate([pw(params["wn2x"]), pw(params["wn2a"])], axis=0)        # [2Hp,Hp]
    we2, wn1e = pw(params["we2"]), pw(params["wn1e"])
    wn1b, wn2b = pw(params["wn1b"]), pw(params["wn2b"])
    be1, be2 = pb(params["be1"]), pb(params["be2"])
    bn1, bn1b = pb(params["bn1"]), pb(params["bn1b"])
    bn2, bn2b = pb(params["bn2"]), pb(params["bn2b"])

    inputs = (x_p, rc_tiles, col_lane, ea_p, inv_cnt,
              w_src_stack, w_dst_e, be1, we2, be2,
              wn1e, bn1, wn1b, bn1b,
              w_n2_in, bn2, wn2b, bn2b)

    def const(shape):
        return pl.BlockSpec(shape, lambda i: (0, 0))      # grid-invariant (stays resident)

    in_specs = [
        const((Np, Hp)),                                      # x (bf16, resident)
        pl.BlockSpec((None, 2 * tE, 1), lambda i: (i, 0, 0)), # [row;col] per edge tile
        pl.BlockSpec((1, tE), lambda i: (0, i)),              # lane-major col per edge tile
        pl.BlockSpec((tE, Hp), lambda i: (i, 0)),             # edge_attr per edge tile
        const((Np, 1)),                                       # inv_cnt
        const((Hp, 2 * Hp)), const((2 * Hp, Hp)), const((1, Hp)), const((Hp, Hp)), const((1, Hp)),
        const((Hp, Hp)), const((1, Hp)), const((Hp, Hp)), const((1, Hp)),
        const((2 * Hp, Hp)), const((1, Hp)), const((Hp, Hp)), const((1, Hp)),
    ]
    out_specs = (
        pl.BlockSpec((Np, Hp), lambda i: (0, 0)),         # x_out: resident across edge tiles
        pl.BlockSpec((tE, Hp), lambda i: (i, 0)),         # e_out: streamed per tile
    )

    # ---- explicit VMEM budget (re-derive instead of a hard 32 MiB cap) ----
    w_bytes = 10 * Hp * Hp * 2 + 8 * Hp * 4                         # bf16 weights + f32 biases
    resident = Np * Hp * 2 + Np * 4 + Np * Hp * 4 + Np * Hp * out_bytes   # x, inv_cnt, agg, x_out
    per_tile_stream = tE * Hp * 2 + 2 * tE * 4 + tE * 4 + tE * Hp * out_bytes
    temporaries = 2 * tE * Np * 2 + Np * tE * 2 + 8 * tE * Hp * 4 + Np * 2 * Hp * 4
    vmem_est = 2 * w_bytes + resident + 2 * per_tile_stream + temporaries
    vmem_limit = int(min(112 * 2**20, max(32 * 2**20, 2 * vmem_est)))
    # NOTE(v7x): with 64 MiB physical VMEM, shrink edge_tile (or switch to the index-gather
    # path) whenever vmem_est approaches ~48 MiB; v6e tolerates much larger tiles.

    # ---- advisory cost estimate so XLA can overlap surrounding ops ----
    mxu_flops = 2 * (
        2 * Ep * Np * Hp            # one-hot gather (row & col)
        + Ep * Hp * 2 * Hp          # w_src_stack
        + Ep * 2 * Hp * Hp          # w_dst_e
        + 3 * Ep * Hp * Hp          # we2, wn1e, wn1b
        + Ep * Np * Hp              # scatter
        + Np * 2 * Hp * Hp          # w_n2_in
        + Np * Hp * Hp              # wn2b
    )
    bytes_accessed = (x_p.size * 2 + ea_p.size * 2 + rc_tiles.size * 4 + col_lane.size * 4
                      + inv_cnt.size * 4 + w_bytes
                      + Np * Hp * out_bytes + Ep * Hp * out_bytes)

    x_out, e_out = pl.pallas_call(
        processor_kernel,
        grid=(n_tiles,),
        in_specs=in_specs,
        out_specs=out_specs,
        out_shape=(
            jax.ShapeDtypeStruct((Np, Hp), out_dtype),
            jax.ShapeDtypeStruct((Ep, Hp), out_dtype),
        ),
        scratch_shapes=[pltpu.VMEM((Np, Hp), jnp.float32)],   # scatter-mean accumulator
        compiler_params=pltpu.CompilerParams(
            dimension_semantics=("arbitrary",),               # carried accumulator -> serial
            vmem_limit_bytes=vmem_limit),
        cost_estimate=pl.CostEstimate(flops=int(mxu_flops), transcendentals=0,
                                      bytes_accessed=int(bytes_accessed)),
    )(*inputs)
    return x_out[:N, :H].astype(jnp.float32), e_out[:E, :H].astype(jnp.float32)


def _init_params(key, H):
    ks = jax.random.split(key, 14)
    s = 1.0 / jnp.sqrt(H)

    def w(k, shape):
        return (jax.random.normal(k, shape, jnp.float32) * s).astype(jnp.float32)

    return {
        # EdgeModel: Linear(3H -> H) split by input chunk, ReLU, Linear(H -> H)
        "we_src": w(ks[0], (H, H)), "we_dst": w(ks[1], (H, H)), "we_e": w(ks[2], (H, H)),
        "be1": jnp.zeros((1, H), jnp.float32),
        "we2": w(ks[3], (H, H)), "be2": jnp.zeros((1, H), jnp.float32),
        # NodeModel mlp1: Linear(2H -> H) split, ReLU, Linear(H -> H)
        "wn1x": w(ks[4], (H, H)), "wn1e": w(ks[5], (H, H)),
        "bn1": jnp.zeros((1, H), jnp.float32),
        "wn1b": w(ks[6], (H, H)), "bn1b": jnp.zeros((1, H), jnp.float32),
        # NodeModel mlp2: Linear(2H -> H) split, ReLU, Linear(H -> H)
        "wn2x": w(ks[7], (H, H)), "wn2a": w(ks[8], (H, H)),
        "bn2": jnp.zeros((1, H), jnp.float32),
        "wn2b": w(ks[9], (H, H)), "bn2b": jnp.zeros((1, H), jnp.float32),
    }


def _reference_forward(x, edge_index, edge_attr, params):
    """Pure-JAX (f32) reference mirroring the PyTorch Processor semantics."""
    row, col = edge_index[0], edge_index[1]
    x_src, x_dst = x[row], x[col]
    h = jnp.maximum(x_src @ params["we_src"] + x_dst @ params["we_dst"]
                    + edge_attr @ params["we_e"] + params["be1"], 0.0)
    e_new = h @ params["we2"] + params["be2"]

    m = jnp.maximum(x_src @ params["wn1x"] + e_new @ params["wn1e"] + params["bn1"], 0.0)
    m = m @ params["wn1b"] + params["bn1b"]
    N = x.shape[0]
    agg_sum = jax.ops.segment_sum(m, col, num_segments=N)
    counts = jax.ops.segment_sum(jnp.ones((edge_attr.shape[0],), jnp.float32),
                                 col, num_segments=N)
    agg = agg_sum / jnp.maximum(counts, 1.0)[:, None]
    g = jnp.maximum(x @ params["wn2x"] + agg @ params["wn2a"] + params["bn2"], 0.0)
    x_new = g @ params["wn2b"] + params["bn2b"]
    return x_new, e_new


if __name__ == "__main__":
    key = jax.random.PRNGKey(0)
    k_x, k_e, k_idx, k_p = jax.random.split(key, 4)

    N, E, H = 8, 16, 32
    x = jax.random.normal(k_x, (N, H), jnp.float32)
    edge_attr = jax.random.normal(k_e, (E, H), jnp.float32)
    edge_index = jax.random.randint(k_idx, (2, E), 0, N, jnp.int32)
    params = _init_params(k_p, H)

    x_out, e_out = processor_forward(x, edge_index, edge_attr, params)
    jax.block_until_ready((x_out, e_out))

    x_ref, e_ref = _reference_forward(x, edge_index, edge_attr, params)
    # bf16 MXU operands (f32 accumulation) -> loosened tolerance vs. the f32 reference.
    assert jnp.allclose(x_out, x_ref, atol=2e-1, rtol=5e-2)
    assert jnp.allclose(e_out, e_ref, atol=2e-1, rtol=5e-2)

    print("KERNEL_OK")
</pallas_src>

<mosaic_0001>
module attributes {stable_mosaic.version = 11 : i64} {
  func.func @processor_kernel(%arg0: i32, %arg1: memref<8x128xbf16, #tpu.memory_space<vmem>>, %arg2: memref<1x512x1xi32, #tpu.memory_space<vmem>>, %arg3: memref<1x256xi32, #tpu.memory_space<vmem>>, %arg4: memref<256x128xbf16, #tpu.memory_space<vmem>>, %arg5: memref<8x1xf32, #tpu.memory_space<vmem>>, %arg6: memref<128x256xbf16, #tpu.memory_space<vmem>>, %arg7: memref<256x128xbf16, #tpu.memory_space<vmem>>, %arg8: memref<1x128xf32, #tpu.memory_space<vmem>>, %arg9: memref<128x128xbf16, #tpu.memory_space<vmem>>, %arg10: memref<1x128xf32, #tpu.memory_space<vmem>>, %arg11: memref<128x128xbf16, #tpu.memory_space<vmem>>, %arg12: memref<1x128xf32, #tpu.memory_space<vmem>>, %arg13: memref<128x128xbf16, #tpu.memory_space<vmem>>, %arg14: memref<1x128xf32, #tpu.memory_space<vmem>>, %arg15: memref<256x128xbf16, #tpu.memory_space<vmem>>, %arg16: memref<1x128xf32, #tpu.memory_space<vmem>>, %arg17: memref<128x128xbf16, #tpu.memory_space<vmem>>, %arg18: memref<1x128xf32, #tpu.memory_space<vmem>>, %arg19: memref<8x128xf32, #tpu.memory_space<vmem>>, %arg20: memref<256x128xf32, #tpu.memory_space<vmem>>, %arg21: memref<8x128xf32, #tpu.memory_space<vmem>>) attributes {dimension_semantics = [#tpu.dimension_semantics<arbitrary>], iteration_bounds = array<i64: 1>, scalar_prefetch = 0 : i64, scratch_operands = 1 : i64, tpu.core_type = #tpu.core_type<tc>, window_params = [{pipeline_mode = #tpu.pipeline_mode<synchronous>, transform_indices = @transform_0, window_bounds = array<i64: 8, 128>}, {transform_indices = @transform_1, window_bounds = array<i64: 1, 512, 1>}, {transform_indices = @transform_2, window_bounds = array<i64: 1, 256>}, {transform_indices = @transform_3, window_bounds = array<i64: 256, 128>}, {pipeline_mode = #tpu.pipeline_mode<synchronous>, transform_indices = @transform_4, window_bounds = array<i64: 8, 1>}, {pipeline_mode = #tpu.pipeline_mode<synchronous>, transform_indices = @transform_5, window_bounds = array<i64: 128, 256>}, {pipeline_mode = #tpu.pipeline_mode<synchronous>, transform_indices = @transform_6, window_bounds = array<i64: 256, 128>}, {pipeline_mode = #tpu.pipeline_mode<synchronous>, transform_indices = @transform_7, window_bounds = array<i64: 1, 128>}, {pipeline_mode = #tpu.pipeline_mode<synchronous>, transform_indices = @transform_8, window_bounds = array<i64: 128, 128>}, {pipeline_mode = #tpu.pipeline_mode<synchronous>, transform_indices = @transform_9, window_bounds = array<i64: 1, 128>}, {pipeline_mode = #tpu.pipeline_mode<synchronous>, transform_indices = @transform_10, window_bounds = array<i64: 128, 128>}, {pipeline_mode = #tpu.pipeline_mode<synchronous>, transform_indices = @transform_11, window_bounds = array<i64: 1, 128>}, {pipeline_mode = #tpu.pipeline_mode<synchronous>, transform_indices = @transform_12, window_bounds = array<i64: 128, 128>}, {pipeline_mode = #tpu.pipeline_mode<synchronous>, transform_indices = @transform_13, window_bounds = array<i64: 1, 128>}, {pipeline_mode = #tpu.pipeline_mode<synchronous>, transform_indices = @transform_14, window_bounds = array<i64: 256, 128>}, {pipeline_mode = #tpu.pipeline_mode<synchronous>, transform_indices = @transform_15, window_bounds = array<i64: 1, 128>}, {pipeline_mode = #tpu.pipeline_mode<synchronous>, transform_indices = @transform_16, window_bounds = array<i64: 128, 128>}, {pipeline_mode = #tpu.pipeline_mode<synchronous>, transform_indices = @transform_17, window_bounds = array<i64: 1, 128>}, {pipeline_mode = #tpu.pipeline_mode<synchronous>, transform_indices = @transform_18, window_bounds = array<i64: 8, 128>}, {transform_indices = @transform_19, window_bounds = array<i64: 256, 128>}]} {
    %c0_i32 = arith.constant 0 : i32
    %0 = arith.cmpi eq, %arg0, %c0_i32 : i32
    %1 = arith.extui %0 : i1 to i32
    %c0_i32_0 = arith.constant 0 : i32
    %2 = arith.cmpi ne, %1, %c0_i32_0 : i32
    scf.if %2 {
      %cst_43 = arith.constant 0.000000e+00 : f32
      %68 = vector.broadcast %cst_43 : f32 to vector<8x128xf32>
      %c0_44 = arith.constant 0 : index
      %c0_45 = arith.constant 0 : index
      %69 = vector.load %arg21[%c0_44, %c0_45] : memref<8x128xf32, #tpu.memory_space<vmem>>, vector<8x128xf32>
      tpu.vector_store %arg21[%c0_44, %c0_45], %68 {strides = array<i32>} : memref<8x128xf32, #tpu.memory_space<vmem>>, vector<8x128xf32>,
    } else {
    }
    %c0 = arith.constant 0 : index
    %c0_1 = arith.constant 0 : index
    %3 = vector.load %arg1[%c0, %c0_1] : memref<8x128xbf16, #tpu.memory_space<vmem>>, vector<8x128xbf16>
    %c0_2 = arith.constant 0 : index
    %c0_3 = arith.constant 0 : index
    %4 = vector.load %arg4[%c0_2, %c0_3] : memref<256x128xbf16, #tpu.memory_space<vmem>>, vector<256x128xbf16>
    %c0_4 = arith.constant 0 : index
    %c0_5 = arith.constant 0 : index
    %c0_6 = arith.constant 0 : index
    %5 = vector.load %arg2[%c0_4, %c0_5, %c0_6] : memref<1x512x1xi32, #tpu.memory_space<vmem>>, vector<1x512x1xi32>
    %6 = vector.shape_cast %5 : vector<1x512x1xi32> to vector<512x1xi32>
    %c0_7 = arith.constant 0 : index
    %c0_8 = arith.constant 0 : index
    %7 = vector.load %arg3[%c0_7, %c0_8] : memref<1x256xi32, #tpu.memory_space<vmem>>, vector<1x256xi32>
    %8 = tpu.iota {dimensions = array<i32: 1>} : vector<512x8xi32>
    %9 = vector.broadcast %6 : vector<512x1xi32> to vector<512x8xi32>
    %10 = arith.cmpi eq, %8, %9 : vector<512x8xi32>
    %11 = arith.extui %10 : vector<512x8xi1> to vector<512x8xi32>
    %12 = arith.sitofp %11 : vector<512x8xi32> to vector<512x8xf32>
    %13 = arith.truncf %12 : vector<512x8xf32> to vector<512x8xbf16>
    %cst = arith.constant dense<0.000000e+00> : vector<512x128xf32>
    %14 = tpu.matmul %13, %3, %cst {dimension_numbers = #tpu.dot_dimension_numbers<[1], [0], [0], [1], [0, 0, 1, 1], [], []>} : vector<512x8xbf16>, vector<8x128xbf16>, vector<512x128xf32> -> vector<512x128xf32>
    %15 = vector.extract_strided_slice %14 {offsets = [0, 0], sizes = [256, 128], strides = [1, 1]} : vector<512x128xf32> to vector<256x128xf32>
    %16 = arith.truncf %15 : vector<256x128xf32> to vector<256x128xbf16>
    %17 = vector.extract_strided_slice %14 {offsets = [256, 0], sizes = [256, 128], strides = [1, 1]} : vector<512x128xf32> to vector<256x128xf32>
    %18 = arith.truncf %17 : vector<256x128xf32> to vector<256x128xbf16>
    %c0_9 = arith.constant 0 : index
    %c0_10 = arith.constant 0 : index
    %19 = vector.load %arg6[%c0_9, %c0_10] : memref<128x256xbf16, #tpu.memory_space<vmem>>, vector<128x256xbf16>
    %cst_11 = arith.constant dense<0.000000e+00> : vector<256x256xf32>
    %20 = tpu.matmul %16, %19, %cst_11 {dimension_numbers = #tpu.dot_dimension_numbers<[1], [0], [0], [1], [0, 0, 1, 1], [], []>} : vector<256x128xbf16>, vector<128x256xbf16>, vector<256x256xf32> -> vector<256x256xf32>
    %21 = vector.extract_strided_slice %20 {offsets = [0, 0], sizes = [256, 128], strides = [1, 1]} : vector<256x256xf32> to vector<256x128xf32>
    %22 = vector.extract_strided_slice %20 {offsets = [0, 128], sizes = [256, 128], strides = [1, 1]} : vector<256x256xf32> to vector<256x128xf32>
    %23 = tpu.concatenate %18, %4 in 1 : vector<256x128xbf16>, vector<256x128xbf16> -> vector<256x256xbf16>
    %c0_12 = arith.constant 0 : index
    %c0_13 = arith.constant 0 : index
    %24 = vector.load %arg7[%c0_12, %c0_13] : memref<256x128xbf16, #tpu.memory_space<vmem>>, vector<256x128xbf16>
    %cst_14 = arith.constant dense<0.000000e+00> : vector<256x128xf32>
    %25 = tpu.matmul %23, %24, %cst_14 {dimension_numbers = #tpu.dot_dimension_numbers<[1], [0], [0], [1], [0, 0, 1, 1], [], []>} : vector<256x256xbf16>, vector<256x128xbf16>, vector<256x128xf32> -> vector<256x128xf32>
    %26 = arith.addf %21, %25 : vector<256x128xf32>
    %c0_15 = arith.constant 0 : index
    %c0_16 = arith.constant 0 : index
    %27 = vector.load %arg8[%c0_15, %c0_16] : memref<1x128xf32, #tpu.memory_space<vmem>>, vector<1x128xf32>
    %28 = vector.broadcast %27 : vector<1x128xf32> to vector<256x128xf32>
    %29 = arith.addf %26, %28 : vector<256x128xf32>
    %cst_17 = arith.constant 0.000000e+00 : f32
    %30 = vector.broadcast %cst_17 : f32 to vector<256x128xf32>
    %31 = arith.maximumf %29, %30 : vector<256x128xf32>
    %32 = arith.truncf %31 : vector<256x128xf32> to vector<256x128xbf16>
    %c0_18 = arith.constant 0 : index
    %c0_19 = arith.constant 0 : index
    %33 = vector.load %arg9[%c0_18, %c0_19] : memref<128x128xbf16, #tpu.memory_space<vmem>>, vector<128x128xbf16>
    %cst_20 = arith.constant dense<0.000000e+00> : vector<256x128xf32>
    %34 = tpu.matmul %32, %33, %cst_20 {dimension_numbers = #tpu.dot_dimension_numbers<[1], [0], [0], [1], [0, 0, 1, 1], [], []>} : vector<256x128xbf16>, vector<128x128xbf16>, vector<256x128xf32> -> vector<256x128xf32>
    %c0_21 = arith.constant 0 : index
    %c0_22 = arith.constant 0 : index
    %35 = vector.load %arg10[%c0_21, %c0_22] : memref<1x128xf32, #tpu.memory_space<vmem>>, vector<1x128xf32>
    %36 = vector.broadcast %35 : vector<1x128xf32> to vector<256x128xf32>
    %37 = arith.addf %34, %36 : vector<256x128xf32>
    %c0_23 = arith.constant 0 : index
    %c0_24 = arith.constant 0 : index
    %38 = vector.load %arg20[%c0_23, %c0_24] : memref<256x128xf32, #tpu.memory_space<vmem>>, vector<256x128xf32>
    tpu.vector_store %arg20[%c0_23, %c0_24], %37 {strides = array<i32>} : memref<256x128xf32, #tpu.memory_space<vmem>>, vector<256x128xf32>,
    %39 = arith.truncf %37 : vector<256x128xf32> to vector<256x128xbf16>
    %c0_25 = arith.constant 0 : index
    %c0_26 = arith.constant 0 : index
    %40 = vector.load %arg11[%c0_25, %c0_26] : memref<128x128xbf16, #tpu.memory_space<vmem>>, vector<128x128xbf16>
    %cst_27 = arith.constant dense<0.000000e+00> : vector<256x128xf32>
    %41 = tpu.matmul %39, %40, %cst_27 {dimension_numbers = #tpu.dot_dimension_numbers<[1], [0], [0], [1], [0, 0, 1, 1], [], []>} : vector<256x128xbf16>, vector<128x128xbf16>, vector<256x128xf32> -> vector<256x128xf32>
    %42 = arith.addf %22, %41 : vector<256x128xf32>
    %c0_28 = arith.constant 0 : index
    %c0_29 = arith.constant 0 : index
    %43 = vector.load %arg12[%c0_28, %c0_29] : memref<1x128xf32, #tpu.memory_space<vmem>>, vector<1x128xf32>
    %44 = vector.broadcast %43 : vector<1x128xf32> to vector<256x128xf32>
    %45 = arith.addf %42, %44 : vector<256x128xf32>
    %cst_30 = arith.constant 0.000000e+00 : f32
    %46 = vector.broadcast %cst_30 : f32 to vector<256x128xf32>
    %47 = arith.maximumf %45, %46 : vector<256x128xf32>
    %48 = arith.truncf %47 : vector<256x128xf32> to vector<256x128xbf16>
    %c0_31 = arith.constant 0 : index
    %c0_32 = arith.constant 0 : index
    %49 = vector.load %arg13[%c0_31, %c0_32] : memref<128x128xbf16, #tpu.memory_space<vmem>>, vector<128x128xbf16>
    %cst_33 = arith.constant dense<0.000000e+00> : vector<256x128xf32>
    %50 = tpu.matmul %48, %49, %cst_33 {dimension_numbers = #tpu.dot_dimension_numbers<[1], [0], [0], [1], [0, 0, 1, 1], [], []>} : vector<256x128xbf16>, vector<128x128xbf16>, vector<256x128xf32> -> vector<256x128xf32>
    %c0_34 = arith.constant 0 : index
    %c0_35 = arith.constant 0 : index
    %51 = vector.load %arg14[%c0_34, %c0_35] : memref<1x128xf32, #tpu.memory_space<vmem>>, vector<1x128xf32>
    %52 = vector.broadcast %51 : vector<1x128xf32> to vector<256x128xf32>
    %53 = arith.addf %50, %52 : vector<256x128xf32>
    %54 = tpu.iota {dimensions = array<i32: 0>} : vector<8x256xi32>
    %55 = vector.broadcast %7 : vector<1x256xi32> to vector<8x256xi32>
    %56 = arith.cmpi eq, %54, %55 : vector<8x256xi32>
    %57 = arith.extui %56 : vector<8x256xi1> to vector<8x256xi32>
    %58 = arith.sitofp %57 : vector<8x256xi32> to vector<8x256xf32>
    %59 = arith.truncf %58 : vector<8x256xf32> to vector<8x256xbf16>
    %c0_36 = arith.constant 0 : index
    %c0_37 = arith.constant 0 : index
    %60 = vector.load %arg21[%c0_36, %c0_37] : memref<8x128xf32, #tpu.memory_space<vmem>>, vector<8x128xf32>
    %61 = arith.truncf %53 : vector<256x128xf32> to vector<256x128xbf16>
    %cst_38 = arith.constant dense<0.000000e+00> : vector<8x128xf32>
    %62 = tpu.matmul %59, %61, %cst_38 {dimension_numbers = #tpu.dot_dimension_numbers<[1], [0], [0], [1], [0, 0, 1, 1], [], []>} : vector<8x256xbf16>, vector<256x128xbf16>, vector<8x128xf32> -> vector<8x128xf32>
    %63 = arith.addf %60, %62 : vector<8x128xf32>
    %c0_39 = arith.constant 0 : index
    %c0_40 = arith.constant 0 : index
    %64 = vector.load %arg21[%c0_39, %c0_40] : memref<8x128xf32, #tpu.memory_space<vmem>>, vector<8x128xf32>
    tpu.vector_store %arg21[%c0_39, %c0_40], %63 {strides = array<i32>} : memref<8x128xf32, #tpu.memory_space<vmem>>, vector<8x128xf32>,
    %c0_i32_41 = arith.constant 0 : i32
    %65 = arith.cmpi eq, %arg0, %c0_i32_41 : i32
    %66 = arith.extui %65 : i1 to i32
    %c0_i32_42 = arith.constant 0 : i32
    %67 = arith.cmpi ne, %66, %c0_i32_42 : i32
    scf.if %67 {
      %c0_43 = arith.constant 0 : index
      %c0_44 = arith.constant 0 : index
      %68 = vector.load %arg21[%c0_43, %c0_44] : memref<8x128xf32, #tpu.memory_space<vmem>>, vector<8x128xf32>
      %c0_45 = arith.constant 0 : index
      %c0_46 = arith.constant 0 : index
      %69 = vector.load %arg5[%c0_45, %c0_46] : memref<8x1xf32, #tpu.memory_space<vmem>>, vector<8x1xf32>
      %70 = vector.broadcast %69 : vector<8x1xf32> to vector<8x128xf32>
      %71 = arith.mulf %68, %70 : vector<8x128xf32>
      %72 = arith.truncf %71 : vector<8x128xf32> to vector<8x128xbf16>
      %73 = tpu.concatenate %3, %72 in 1 : vector<8x128xbf16>, vector<8x128xbf16> -> vector<8x256xbf16>
      %c0_47 = arith.constant 0 : index
      %c0_48 = arith.constant 0 : index
      %74 = vector.load %arg15[%c0_47, %c0_48] : memref<256x128xbf16, #tpu.memory_space<vmem>>, vector<256x128xbf16>
      %cst_49 = arith.constant dense<0.000000e+00> : vector<8x128xf32>
      %75 = tpu.matmul %73, %74, %cst_49 {dimension_numbers = #tpu.dot_dimension_numbers<[1], [0], [0], [1], [0, 0, 1, 1], [], []>} : vector<8x256xbf16>, vector<256x128xbf16>, vector<8x128xf32> -> vector<8x128xf32>
      %c0_50 = arith.constant 0 : index
      %c0_51 = arith.constant 0 : index
      %76 = vector.load %arg16[%c0_50, %c0_51] : memref<1x128xf32, #tpu.memory_space<vmem>>, vector<1x128xf32>
      %77 = vector.broadcast %76 : vector<1x128xf32> to vector<8x128xf32>
      %78 = arith.addf %75, %77 : vector<8x128xf32>
      %cst_52 = arith.constant 0.000000e+00 : f32
      %79 = vector.broadcast %cst_52 : f32 to vector<8x128xf32>
      %80 = arith.maximumf %78, %79 : vector<8x128xf32>
      %81 = arith.truncf %80 : vector<8x128xf32> to vector<8x128xbf16>
      %c0_53 = arith.constant 0 : index
      %c0_54 = arith.constant 0 : index
      %82 = vector.load %arg17[%c0_53, %c0_54] : memref<128x128xbf16, #tpu.memory_space<vmem>>, vector<128x128xbf16>
      %cst_55 = arith.constant dense<0.000000e+00> : vector<8x128xf32>
      %83 = tpu.matmul %81, %82, %cst_55 {dimension_numbers = #tpu.dot_dimension_numbers<[1], [0], [0], [1], [0, 0, 1, 1], [], []>} : vector<8x128xbf16>, vector<128x128xbf16>, vector<8x128xf32> -> vector<8x128xf32>
      %c0_56 = arith.constant 0 : index
      %c0_57 = arith.constant 0 : index
      %84 = vector.load %arg18[%c0_56, %c0_57] : memref<1x128xf32, #tpu.memory_space<vmem>>, vector<1x128xf32>
      %85 = vector.broadcast %84 : vector<1x128xf32> to vector<8x128xf32>
      %86 = arith.addf %83, %85 : vector<8x128xf32>
      %c0_58 = arith.constant 0 : index
      %c0_59 = arith.constant 0 : index
      %87 = vector.load %arg19[%c0_58, %c0_59] : memref<8x128xf32, #tpu.memory_space<vmem>>, vector<8x128xf32>
      tpu.vector_store %arg19[%c0_58, %c0_59], %86 {strides = array<i32>} : memref<8x128xf32, #tpu.memory_space<vmem>>, vector<8x128xf32>,
    } else {
    }
    return
  }
  func.func @transform_0(%arg0: i32) -> (i32, i32) {
    %c0_i32 = arith.constant 0 : i32
    %c0_i32_0 = arith.constant 0 : i32
    %c0_i32_1 = arith.constant 0 : i32
    return %c0_i32, %c0_i32_0 : i32, i32
  }
  func.func @transform_1(%arg0: i32) -> (i32, i32, i32) {
    %c0_i32 = arith.constant 0 : i32
    %c0_i32_0 = arith.constant 0 : i32
    %c0_i32_1 = arith.constant 0 : i32
    return %arg0, %c0_i32, %c0_i32_0 : i32, i32, i32
  }
  func.func @transform_2(%arg0: i32) -> (i32, i32) {
    %c0_i32 = arith.constant 0 : i32
    %c0_i32_0 = arith.constant 0 : i32
    return %c0_i32, %arg0 : i32, i32
  }
  func.func @transform_3(%arg0: i32) -> (i32, i32) {
    %c0_i32 = arith.constant 0 : i32
    %c0_i32_0 = arith.constant 0 : i32
    return %arg0, %c0_i32 : i32, i32
  }
  func.func @transform_4(%arg0: i32) -> (i32, i32) {
    %c0_i32 = arith.constant 0 : i32
    %c0_i32_0 = arith.constant 0 : i32
    %c0_i32_1 = arith.constant 0 : i32
    return %c0_i32, %c0_i32_0 : i32, i32
  }
  func.func @transform_5(%arg0: i32) -> (i32, i32) {
    %c0_i32 = arith.constant 0 : i32
    %c0_i32_0 = arith.constant 0 : i32
    %c0_i32_1 = arith.constant 0 : i32
    return %c0_i32, %c0_i32_0 : i32, i32
  }
  func.func @transform_6(%arg0: i32) -> (i32, i32) {
    %c0_i32 = arith.constant 0 : i32
    %c0_i32_0 = arith.constant 0 : i32
    %c0_i32_1 = arith.constant 0 : i32
    return %c0_i32, %c0_i32_0 : i32, i32
  }
  func.func @transform_7(%arg0: i32) -> (i32, i32) {
    %c0_i32 = arith.constant 0 : i32
    %c0_i32_0 = arith.constant 0 : i32
    %c0_i32_1 = arith.constant 0 : i32
    return %c0_i32, %c0_i32_0 : i32, i32
  }
  func.func @transform_8(%arg0: i32) -> (i32, i32) {
    %c0_i32 = arith.constant 0 : i32
    %c0_i32_0 = arith.constant 0 : i32
    %c0_i32_1 = arith.constant 0 : i32
    return %c0_i32, %c0_i32_0 : i32, i32
  }
  func.func @transform_9(%arg0: i32) -> (i32, i32) {
    %c0_i32 = arith.constant 0 : i32
    %c0_i32_0 = arith.constant 0 : i32
    %c0_i32_1 = arith.constant 0 : i32
    return %c0_i32, %c0_i32_0 : i32, i32
  }
  func.func @transform_10(%arg0: i32) -> (i32, i32) {
    %c0_i32 = arith.constant 0 : i32
    %c0_i32_0 = arith.constant 0 : i32
    %c0_i32_1 = arith.constant 0 : i32
    return %c0_i32, %c0_i32_0 : i32, i32
  }
  func.func @transform_11(%arg0: i32) -> (i32, i32) {
    %c0_i32 = arith.constant 0 : i32
    %c0_i32_0 = arith.constant 0 : i32
    %c0_i32_1 = arith.constant 0 : i32
    return %c0_i32, %c0_i32_0 : i32, i32
  }
  func.func @transform_12(%arg0: i32) -> (i32, i32) {
    %c0_i32 = arith.constant 0 : i32
    %c0_i32_0 = arith.constant 0 : i32
    %c0_i32_1 = arith.constant 0 : i32
    return %c0_i32, %c0_i32_0 : i32, i32
  }
  func.func @transform_13(%arg0: i32) -> (i32, i32) {
    %c0_i32 = arith.constant 0 : i32
    %c0_i32_0 = arith.constant 0 : i32
    %c0_i32_1 = arith.constant 0 : i32
    return %c0_i32, %c0_i32_0 : i32, i32
  }
  func.func @transform_14(%arg0: i32) -> (i32, i32) {
    %c0_i32 = arith.constant 0 : i32
    %c0_i32_0 = arith.constant 0 : i32
    %c0_i32_1 = arith.constant 0 : i32
    return %c0_i32, %c0_i32_0 : i32, i32
  }
  func.func @transform_15(%arg0: i32) -> (i32, i32) {
    %c0_i32 = arith.constant 0 : i32
    %c0_i32_0 = arith.constant 0 : i32
    %c0_i32_1 = arith.constant 0 : i32
    return %c0_i32, %c0_i32_0 : i32, i32
  }
  func.func @transform_16(%arg0: i32) -> (i32, i32) {
    %c0_i32 = arith.constant 0 : i32
    %c0_i32_0 = arith.constant 0 : i32
    %c0_i32_1 = arith.constant 0 : i32
    return %c0_i32, %c0_i32_0 : i32, i32
  }
  func.func @transform_17(%arg0: i32) -> (i32, i32) {
    %c0_i32 = arith.constant 0 : i32
    %c0_i32_0 = arith.constant 0 : i32
    %c0_i32_1 = arith.constant 0 : i32
    return %c0_i32, %c0_i32_0 : i32, i32
  }
  func.func @transform_18(%arg0: i32) -> (i32, i32) {
    %c0_i32 = arith.constant 0 : i32
    %c0_i32_0 = arith.constant 0 : i32
    %c0_i32_1 = arith.constant 0 : i32
    return %c0_i32, %c0_i32_0 : i32, i32
  }
  func.func @transform_19(%arg0: i32) -> (i32, i32) {
    %c0_i32 = arith.constant 0 : i32
    %c0_i32_0 = arith.constant 0 : i32
    return %arg0, %c0_i32 : i32, i32
  }
}

</mosaic_0001>

<llo_original>
// kernel: tpu_custom_call.1
$region0: #{tpu_custom_call.1}
  #allocation0 [shape = 'u32[]', space=smem, size = 0x4, offset = 0x4, fixed_abs, tag = 'smem constant byte address 0x4 - core index']
  #allocation1 [shape = 'u32[144,128]{1,0:T(1,128)}', space=vmem, size = 0x12000, scoped, tag = 'internal scratch']
  #allocation2 [shape = 'f32[8,128]{1,0:T(8,128)}', space=vmem, size = 0x1000, scoped, tag = 'scratch operand']
  %s0 = inlined_call_operand.hbm [shape: bf16[8,128], index: 0, kind: input, shape index: {}]
  %s1 = inlined_call_operand.vmem [shape: s32[1,512,1], index: 1, kind: input, shape index: {}]
  %s2 = inlined_call_operand.vmem [shape: s32[1,256], index: 2, kind: input, shape index: {}]
  %s3 = inlined_call_operand.vmem [shape: bf16[256,128], index: 3, kind: input, shape index: {}]
  %s4 = inlined_call_operand.vmem [shape: f32[8,1], index: 4, kind: input, shape index: {}]
  %s5 = inlined_call_operand.vmem [shape: bf16[128,256], index: 5, kind: input, shape index: {}]
  %s6 = inlined_call_operand.vmem [shape: bf16[256,128], index: 6, kind: input, shape index: {}]
  %s7 = inlined_call_operand.hbm [shape: f32[1,128], index: 7, kind: input, shape index: {}]
  %s8 = inlined_call_operand.hbm [shape: bf16[128,128], index: 8, kind: input, shape index: {}]
  %s9 = inlined_call_operand.hbm [shape: f32[1,128], index: 9, kind: input, shape index: {}]
  %s10 = inlined_call_operand.hbm [shape: bf16[128,128], index: 10, kind: input, shape index: {}]
  %s11 = inlined_call_operand.hbm [shape: f32[1,128], index: 11, kind: input, shape index: {}]
  %s12 = inlined_call_operand.hbm [shape: bf16[128,128], index: 12, kind: input, shape index: {}]
  %s13 = inlined_call_operand.hbm [shape: f32[1,128], index: 13, kind: input, shape index: {}]
  %s14 = inlined_call_operand.vmem [shape: bf16[256,128], index: 14, kind: input, shape index: {}]
  %s15 = inlined_call_operand.hbm [shape: f32[1,128], index: 15, kind: input, shape index: {}]
  %s16 = inlined_call_operand.vmem [shape: bf16[128,128], index: 16, kind: input, shape index: {}]
  %s17 = inlined_call_operand.vmem [shape: f32[1,128], index: 17, kind: input, shape index: {}]
  %s18 = inlined_call_operand.hbm [shape: f32[8,128], index: 18, kind: output, shape index: {0}]
  %s19 = inlined_call_operand.hbm [shape: f32[256,128], index: 19, kind: output, shape index: {1}]
  %20 = xla_tuple %s18, %s19
  %s21 = sld [smem:[#allocation0]]
  $region134: #{tpu_custom_call.1} parent=0
    _
  %s23 = ssub.s32 1, %s21
  %s24 = scalar_select 0, %s23, %s21
  $region1: #{tpu_custom_call.1} parent=0
    #allocation3 [shape = 'u8[2048]{0}', space=vmem, size = 0x800, scoped, tag = 'input window, operand 0, single buffered']
    #allocation4 [shape = 's32[1]{0}', space=sflag, size = 0x4, scoped, tag = 'scoped memory for tpu_custom_call.1']
    #allocation5 [shape = 's32[1]{0}', space=sflag, size = 0x4, scoped, tag = 'scoped memory for tpu_custom_call.1']
    #allocation6 [shape = 'u8[512]{0}', space=vmem, size = 0x400, scoped, tag = 'input window, operand 7, single buffered']
    #allocation7 [shape = 's32[1]{0}', space=sflag, size = 0x4, scoped, tag = 'scoped memory for tpu_custom_call.1']
    #allocation8 [shape = 'u8[32768]{0}', space=vmem, size = 0x8000, scoped, tag = 'input window, operand 8, single buffered']
    #allocation9 [shape = 'u8[512]{0}', space=vmem, size = 0x400, scoped, tag = 'input window, operand 9, single buffered']
    #allocation10 [shape = 's32[1]{0}', space=sflag, size = 0x4, scoped, tag = 'scoped memory for tpu_custom_call.1']
    #allocation11 [shape = 'u8[32768]{0}', space=vmem, size = 0x8000, scoped, tag = 'input window, operand 10, single buffered']
    #allocation12 [shape = 'u8[512]{0}', space=vmem, size = 0x400, scoped, tag = 'input window, operand 11, single buffered']
    #allocation13 [shape = 's32[1]{0}', space=sflag, size = 0x4, scoped, tag = 'scoped memory for tpu_custom_call.1']
    #allocation14 [shape = 'u8[32768]{0}', space=vmem, size = 0x8000, scoped, tag = 'input window, operand 12, single buffered']
    #allocation15 [shape = 'u8[512]{0}', space=vmem, size = 0x400, scoped, tag = 'input window, operand 13, single buffered']
    #allocation16 [shape = 's32[1]{0}', space=sflag, size = 0x4, scoped, tag = 'scoped memory for tpu_custom_call.1']
    #allocation17 [shape = 'u8[512]{0}', space=vmem, size = 0x400, scoped, tag = 'input window, operand 15, single buffered']
    #allocation18 [shape = 'u8[4096]{0}', space=vmem, size = 0x1000, scoped, tag = 'output window, operand 0, single buffered']
    #allocation19 [shape = 'u8[131072]{0}', space=vmem, size = 0x20000, scoped, tag = 'output window, operand 1, single buffered']
    #allocation20 [shape = 's32[1]{0}', space=sflag, size = 0x4, scoped, tag = 'scoped memory for tpu_custom_call.1']
    %25 = vsyncpa [#allocation4], 0
    %26 = vsyncpa [#allocation7], 0
    %27 = vsyncpa [#allocation10], 0
    %28 = vsyncpa [#allocation13], 0
    %29 = vsyncpa [#allocation16], 0
    %30 = vsyncpa [#allocation5], 0
    %31 = vsyncpa [#allocation20], 0
    // Predicated region
    $region2: #{tpu_custom_call.1} parent=1 // pred_check
      _
    $region3: #{tpu_custom_call.1} parent=1 // pred_check_branch
      %33 = sbr.rel (0) target = $region5
    $region4: #{tpu_custom_call.1} parent=1 // pred_region
      %s35 = ssub.s32 64, 64
      %36 = vsyncadd [#allocation4], %s35
      %s38 = sshll.u32 [#allocation3], 4
      %s39 = int_to_ptr.vmem [resolvable:$true] %s38
      %41 = dma.hbm_to_vmem [thread:$0]  %s0, 64, %s39, [#allocation4]
    $region5: #{tpu_custom_call.1} parent=1 // pred_fallthru
      _
    // Predicated region
    $region6: #{tpu_custom_call.1} parent=1 // pred_check
      _
    $region7: #{tpu_custom_call.1} parent=1 // pred_check_branch
      %43 = sbr.rel (0) target = $region9
    $region8: #{tpu_custom_call.1} parent=1 // pred_region
      _
    $region9: #{tpu_custom_call.1} parent=1 // pred_fallthru
      _
    // Predicated region
    $region10: #{tpu_custom_call.1} parent=1 // pred_check
      _
    $region11: #{tpu_custom_call.1} parent=1 // pred_check_branch
      %45 = sbr.rel (0) target = $region13
    $region12: #{tpu_custom_call.1} parent=1 // pred_region
      _
    $region13: #{tpu_custom_call.1} parent=1 // pred_fallthru
      _
    // Predicated region
    $region14: #{tpu_custom_call.1} parent=1 // pred_check
      _
    $region15: #{tpu_custom_call.1} parent=1 // pred_check_branch
      %47 = sbr.rel (0) target = $region17
    $region16: #{tpu_custom_call.1} parent=1 // pred_region
      _
    $region17: #{tpu_custom_call.1} parent=1 // pred_fallthru
      _
    // Predicated region
    $region18: #{tpu_custom_call.1} parent=1 // pred_check
      _
    $region19: #{tpu_custom_call.1} parent=1 // pred_check_branch
      %49 = sbr.rel (0) target = $region21
    $region20: #{tpu_custom_call.1} parent=1 // pred_region
      _
    $region21: #{tpu_custom_call.1} parent=1 // pred_fallthru
      _
    // Predicated region
    $region22: #{tpu_custom_call.1} parent=1 // pred_check
      _
    $region23: #{tpu_custom_call.1} parent=1 // pred_check_branch
      %51 = sbr.rel (0) target = $region25
    $region24: #{tpu_custom_call.1} parent=1 // pred_region
      _
    $region25: #{tpu_custom_call.1} parent=1 // pred_fallthru
      _
    // Predicated region
    $region26: #{tpu_custom_call.1} parent=1 // pred_check
      _
    $region27: #{tpu_custom_call.1} parent=1 // pred_check_branch
      %53 = sbr.rel (0) target = $region29
    $region28: #{tpu_custom_call.1} parent=1 // pred_region
      _
    $region29: #{tpu_custom_call.1} parent=1 // pred_fallthru
      _
    // Predicated region
    $region30: #{tpu_custom_call.1} parent=1 // pred_check
      _
    $region31: #{tpu_custom_call.1} parent=1 // pred_check_branch
      %55 = sbr.rel (0) target = $region33
    $region32: #{tpu_custom_call.1} parent=1 // pred_region
      %s57 = ssub.s32 16, 16
      %58 = vsyncadd [#allocation7], %s57
      %s60 = sshll.u32 [#allocation6], 4
      %s61 = int_to_ptr.vmem [resolvable:$true] %s60
      %63 = dma.hbm_to_vmem [thread:$0]  %s7, 16, %s61, [#allocation7]
    $region33: #{tpu_custom_call.1} parent=1 // pred_fallthru
      _
    // Predicated region
    $region34: #{tpu_custom_call.1} parent=1 // pred_check
      _
    $region35: #{tpu_custom_call.1} parent=1 // pred_check_branch
      %65 = sbr.rel (0) target = $region37
    $region36: #{tpu_custom_call.1} parent=1 // pred_region
      %s67 = ssub.s32 1024, 1024
      %68 = vsyncadd [#allocation7], %s67
      %s69 = sshll.u32 [#allocation8], 4
      %s70 = int_to_ptr.vmem [resolvable:$true] %s69
      %75 = dma.hbm_to_vmem [thread:$0]  %s8, 1024, %s70, [#allocation7], 64, 64, 4
    $region37: #{tpu_custom_call.1} parent=1 // pred_fallthru
      _
    // Predicated region
    $region38: #{tpu_custom_call.1} parent=1 // pred_check
      _
    $region39: #{tpu_custom_call.1} parent=1 // pred_check_branch
      %77 = sbr.rel (0) target = $region41
    $region40: #{tpu_custom_call.1} parent=1 // pred_region
      %s79 = ssub.s32 16, 16
      %80 = vsyncadd [#allocation10], %s79
      %s82 = sshll.u32 [#allocation9], 4
      %s83 = int_to_ptr.vmem [resolvable:$true] %s82
      %85 = dma.hbm_to_vmem [thread:$0]  %s9, 16, %s83, [#allocation10]
    $region41: #{tpu_custom_call.1} parent=1 // pred_fallthru
      _
    // Predicated region
    $region42: #{tpu_custom_call.1} parent=1 // pred_check
      _
    $region43: #{tpu_custom_call.1} parent=1 // pred_check_branch
      %87 = sbr.rel (0) target = $region45
    $region44: #{tpu_custom_call.1} parent=1 // pred_region
      %s89 = ssub.s32 1024, 1024
      %90 = vsyncadd [#allocation10], %s89
      %s91 = sshll.u32 [#allocation11], 4
      %s92 = int_to_ptr.vmem [resolvable:$true] %s91
      %97 = dma.hbm_to_vmem [thread:$0]  %s10, 1024, %s92, [#allocation10], 64, 64, 4
    $region45: #{tpu_custom_call.1} parent=1 // pred_fallthru
      _
    // Predicated region
    $region46: #{tpu_custom_call.1} parent=1 // pred_check
      _
    $region47: #{tpu_custom_call.1} parent=1 // pred_check_branch
      %99 = sbr.rel (0) target = $region49
    $region48: #{tpu_custom_call.1} parent=1 // pred_region
      %s101 = ssub.s32 16, 16
      %102 = vsyncadd [#allocation13], %s101
      %s104 = sshll.u32 [#allocation12], 4
      %s105 = int_to_ptr.vmem [resolvable:$true] %s104
      %107 = dma.hbm_to_vmem [thread:$0]  %s11, 16, %s105, [#allocation13]
    $region49: #{tpu_custom_call.1} parent=1 // pred_fallthru
      _
    // Predicated region
    $region50: #{tpu_custom_call.1} parent=1 // pred_check
      _
    $region51: #{tpu_custom_call.1} parent=1 // pred_check_branch
      %109 = sbr.rel (0) target = $region53
    $region52: #{tpu_custom_call.1} parent=1 // pred_region
      %s111 = ssub.s32 1024, 1024
      %112 = vsyncadd [#allocation13], %s111
      %s113 = sshll.u32 [#allocation14], 4
      %s114 = int_to_ptr.vmem [resolvable:$true] %s113
      %119 = dma.hbm_to_vmem [thread:$0]  %s12, 1024, %s114, [#allocation13], 64, 64, 4
    $region53: #{tpu_custom_call.1} parent=1 // pred_fallthru
      _
    // Predicated region
    $region54: #{tpu_custom_call.1} parent=1 // pred_check
      _
    $region55: #{tpu_custom_call.1} parent=1 // pred_check_branch
      %121 = sbr.rel (0) target = $region57
    $region56: #{tpu_custom_call.1} parent=1 // pred_region
      %s123 = ssub.s32 16, 16
      %124 = vsyncadd [#allocation16], %s123
      %s126 = sshll.u32 [#allocation15], 4
      %s127 = int_to_ptr.vmem [resolvable:$true] %s126
      %129 = dma.hbm_to_vmem [thread:$0]  %s13, 16, %s127, [#allocation16]
    $region57: #{tpu_custom_call.1} parent=1 // pred_fallthru
      _
    // Predicated region
    $region58: #{tpu_custom_call.1} parent=1 // pred_check
      _
    $region59: #{tpu_custom_call.1} parent=1 // pred_check_branch
      %131 = sbr.rel (0) target = $region61
    $region60: #{tpu_custom_call.1} parent=1 // pred_region
      _
    $region61: #{tpu_custom_call.1} parent=1 // pred_fallthru
      _
    // Predicated region
    $region62: #{tpu_custom_call.1} parent=1 // pred_check
      _
    $region63: #{tpu_custom_call.1} parent=1 // pred_check_branch
      %133 = sbr.rel (0) target = $region65
    $region64: #{tpu_custom_call.1} parent=1 // pred_region
      %s135 = ssub.s32 16, 16
      %136 = vsyncadd [#allocation16], %s135
      %s138 = sshll.u32 [#allocation17], 4
      %s139 = int_to_ptr.vmem [resolvable:$true] %s138
      %141 = dma.hbm_to_vmem [thread:$0]  %s15, 16, %s139, [#allocation16]
    $region65: #{tpu_custom_call.1} parent=1 // pred_fallthru
      _
    // Predicated region
    $region66: #{tpu_custom_call.1} parent=1 // pred_check
      _
    $region67: #{tpu_custom_call.1} parent=1 // pred_check_branch
      %143 = sbr.rel (0) target = $region69
    $region68: #{tpu_custom_call.1} parent=1 // pred_region
      _
    $region69: #{tpu_custom_call.1} parent=1 // pred_fallthru
      _
    // Predicated region
    $region70: #{tpu_custom_call.1} parent=1 // pred_check
      _
    $region71: #{tpu_custom_call.1} parent=1 // pred_check_branch
      %145 = sbr.rel (0) target = $region73
    $region72: #{tpu_custom_call.1} parent=1 // pred_region
      _
    $region73: #{tpu_custom_call.1} parent=1 // pred_fallthru
      _
    // Predicated region
    $region74: #{tpu_custom_call.1} parent=1 // pred_check
      _
    $region75: #{tpu_custom_call.1} parent=1 // pred_check_branch
      %147 = sbr.rel (0) target = $region77
    $region76: #{tpu_custom_call.1} parent=1 // pred_region
      %148 = dma.done [#allocation4], 64
    $region77: #{tpu_custom_call.1} parent=1 // pred_fallthru
      _
    // Predicated region
    $region78: #{tpu_custom_call.1} parent=1 // pred_check
      _
    $region79: #{tpu_custom_call.1} parent=1 // pred_check_branch
      %150 = sbr.rel (0) target = $region81
    $region80: #{tpu_custom_call.1} parent=1 // pred_region
      %151 = dma.done [#allocation7], 16
    $region81: #{tpu_custom_call.1} parent=1 // pred_fallthru
      _
    // Predicated region
    $region82: #{tpu_custom_call.1} parent=1 // pred_check
      _
    $region83: #{tpu_custom_call.1} parent=1 // pred_check_branch
      %153 = sbr.rel (0) target = $region85
    $region84: #{tpu_custom_call.1} parent=1 // pred_region
      %154 = dma.done [#allocation7], 1024
    $region85: #{tpu_custom_call.1} parent=1 // pred_fallthru
      _
    // Predicated region
    $region86: #{tpu_custom_call.1} parent=1 // pred_check
      _
    $region87: #{tpu_custom_call.1} parent=1 // pred_check_branch
      %156 = sbr.rel (0) target = $region89
    $region88: #{tpu_custom_call.1} parent=1 // pred_region
      %157 = dma.done [#allocation10], 16
    $region89: #{tpu_custom_call.1} parent=1 // pred_fallthru
      _
    // Predicated region
    $region90: #{tpu_custom_call.1} parent=1 // pred_check
      _
    $region91: #{tpu_custom_call.1} parent=1 // pred_check_branch
      %159 = sbr.rel (0) target = $region93
    $region92: #{tpu_custom_call.1} parent=1 // pred_region
      %160 = dma.done [#allocation10], 1024
    $region93: #{tpu_custom_call.1} parent=1 // pred_fallthru
      _
    // Predicated region
    $region94: #{tpu_custom_call.1} parent=1 // pred_check
      _
    $region95: #{tpu_custom_call.1} parent=1 // pred_check_branch
      %162 = sbr.rel (0) target = $region97
    $region96: #{tpu_custom_call.1} parent=1 // pred_region
      %163 = dma.done [#allocation13], 16
    $region97: #{tpu_custom_call.1} parent=1 // pred_fallthru
      _
    // Predicated region
    $region98: #{tpu_custom_call.1} parent=1 // pred_check
      _
    $region99: #{tpu_custom_call.1} parent=1 // pred_check_branch
      %165 = sbr.rel (0) target = $region101
    $region100: #{tpu_custom_call.1} parent=1 // pred_region
      %166 = dma.done [#allocation13], 1024
    $region101: #{tpu_custom_call.1} parent=1 // pred_fallthru
      _
    // Predicated region
    $region102: #{tpu_custom_call.1} parent=1 // pred_check
      _
    $region103: #{tpu_custom_call.1} parent=1 // pred_check_branch
      %168 = sbr.rel (0) target = $region105
    $region104: #{tpu_custom_call.1} parent=1 // pred_region
      %169 = dma.done [#allocation16], 16
    $region105: #{tpu_custom_call.1} parent=1 // pred_fallthru
      _
    // Predicated region
    $region106: #{tpu_custom_call.1} parent=1 // pred_check
      _
    $region107: #{tpu_custom_call.1} parent=1 // pred_check_branch
      %171 = sbr.rel (0) target = $region109
    $region108: #{tpu_custom_call.1} parent=1 // pred_region
      %172 = dma.done [#allocation16], 16
    $region109: #{tpu_custom_call.1} parent=1 // pred_fallthru
      _
    %p174 = scmp.eq.s32.totalorder 0, 0
    // Predicated region
    $region110: #{tpu_custom_call.1} parent=1 // pred_check
      %p175 = pneg %p174
    $region111: #{tpu_custom_call.1} parent=1 // pred_check_branch
      %177 = sbr.rel (%p175) target = $region113
    $region112: #{tpu_custom_call.1} parent=1 // pred_region
      %178 = vst [vmem:[#allocation2] sm:$0xff] 0.0
    $region113: #{tpu_custom_call.1} parent=1 // pred_fallthru
      _
    %v179 = vld [vmem:[#allocation3] sm:$0xf]
    %v180 = vld [vmem:[%s3] sm:$0xf]
    %v181 = vld [vmem:[%s3 + $0x4] sm:$0xf]
    %v182 = vld [vmem:[%s3 + $0x8] sm:$0xf]
    %v183 = vld [vmem:[%s3 + $0xc] sm:$0xf]
    %v184 = vld [vmem:[%s3 + $0x10] sm:$0xf]
    %v185 = vld [vmem:[%s3 + $0x14] sm:$0xf]
    %v186 = vld [vmem:[%s3 + $0x18] sm:$0xf]
    %v187 = vld [vmem:[%s3 + $0x1c] sm:$0xf]
    %v188 = vld [vmem:[%s3 + $0x20] sm:$0xf]
    %v189 = vld [vmem:[%s3 + $0x24] sm:$0xf]
    %v190 = vld [vmem:[%s3 + $0x28] sm:$0xf]
    %v191 = vld [vmem:[%s3 + $0x2c] sm:$0xf]
    %v192 = vld [vmem:[%s3 + $0x30] sm:$0xf]
    %v193 = vld [vmem:[%s3 + $0x34] sm:$0xf]
    %v194 = vld [vmem:[%s3 + $0x38] sm:$0xf]
    %v195 = vld [vmem:[%s3 + $0x3c] sm:$0xf]
    %v196 = vld [vmem:[%s3 + $0x40] sm:$0xf]
    %v197 = vld [vmem:[%s3 + $0x44] sm:$0xf]
    %v198 = vld [vmem:[%s3 + $0x48] sm:$0xf]
    %v199 = vld [vmem:[%s3 + $0x4c] sm:$0xf]
    %v200 = vld [vmem:[%s3 + $0x50] sm:$0xf]
    %v201 = vld [vmem:[%s3 + $0x54] sm:$0xf]
    %v202 = vld [vmem:[%s3 + $0x58] sm:$0xf]
    %v203 = vld [vmem:[%s3 + $0x5c] sm:$0xf]
    %v204 = vld [vmem:[%s3 + $0x60] sm:$0xf]
    %v205 = vld [vmem:[%s3 + $0x64] sm:$0xf]
    %v206 = vld [vmem:[%s3 + $0x68] sm:$0xf]
    %v207 = vld [vmem:[%s3 + $0x6c] sm:$0xf]
    %v208 = vld [vmem:[%s3 + $0x70] sm:$0xf]
    %v209 = vld [vmem:[%s3 + $0x74] sm:$0xf]
    %v210 = vld [vmem:[%s3 + $0x78] sm:$0xf]
    %v211 = vld [vmem:[%s3 + $0x7c] sm:$0xf]
    %v212 = vld [vmem:[%s1] sm:$0xff]
    %v213 = vld [vmem:[%s1 + $0x8] sm:$0xff]
    %v214 = vld [vmem:[%s1 + $0x10] sm:$0xff]
    %v215 = vld [vmem:[%s1 + $0x18] sm:$0xff]
    %v216 = vld [vmem:[%s1 + $0x20] sm:$0xff]
    %v217 = vld [vmem:[%s1 + $0x28] sm:$0xff]
    %v218 = vld [vmem:[%s1 + $0x30] sm:$0xff]
    %v219 = vld [vmem:[%s1 + $0x38] sm:$0xff]
    %v220 = vld [vmem:[%s1 + $0x40] sm:$0xff]
    %v221 = vld [vmem:[%s1 + $0x48] sm:$0xff]
    %v222 = vld [vmem:[%s1 + $0x50] sm:$0xff]
    %v223 = vld [vmem:[%s1 + $0x58] sm:$0xff]
    %v224 = vld [vmem:[%s1 + $0x60] sm:$0xff]
    %v225 = vld [vmem:[%s1 + $0x68] sm:$0xff]
    %v226 = vld [vmem:[%s1 + $0x70] sm:$0xff]
    %v227 = vld [vmem:[%s1 + $0x78] sm:$0xff]
    %v228 = vld [vmem:[%s1 + $0x80] sm:$0xff]
    %v229 = vld [vmem:[%s1 + $0x88] sm:$0xff]
    %v230 = vld [vmem:[%s1 + $0x90] sm:$0xff]
    %v231 = vld [vmem:[%s1 + $0x98] sm:$0xff]
    %v232 = vld [vmem:[%s1 + $0xa0] sm:$0xff]
    %v233 = vld [vmem:[%s1 + $0xa8] sm:$0xff]
    %v234 = vld [vmem:[%s1 + $0xb0] sm:$0xff]
    %v235 = vld [vmem:[%s1 + $0xb8] sm:$0xff]
    %v236 = vld [vmem:[%s1 + $0xc0] sm:$0xff]
    %v237 = vld [vmem:[%s1 + $0xc8] sm:$0xff]
    %v238 = vld [vmem:[%s1 + $0xd0] sm:$0xff]
    %v239 = vld [vmem:[%s1 + $0xd8] sm:$0xff]
    %v240 = vld [vmem:[%s1 + $0xe0] sm:$0xff]
    %v241 = vld [vmem:[%s1 + $0xe8] sm:$0xff]
    %v242 = vld [vmem:[%s1 + $0xf0] sm:$0xff]
    %v243 = vld [vmem:[%s1 + $0xf8] sm:$0xff]
    %v244 = vld [vmem:[%s1 + $0x100] sm:$0xff]
    %v245 = vld [vmem:[%s1 + $0x108] sm:$0xff]
    %v246 = vld [vmem:[%s1 + $0x110] sm:$0xff]
    %v247 = vld [vmem:[%s1 + $0x118] sm:$0xff]
    %v248 = vld [vmem:[%s1 + $0x120] sm:$0xff]
    %v249 = vld [vmem:[%s1 + $0x128] sm:$0xff]
    %v250 = vld [vmem:[%s1 + $0x130] sm:$0xff]
    %v251 = vld [vmem:[%s1 + $0x138] sm:$0xff]
    %v252 = vld [vmem:[%s1 + $0x140] sm:$0xff]
    %v253 = vld [vmem:[%s1 + $0x148] sm:$0xff]
    %v254 = vld [vmem:[%s1 + $0x150] sm:$0xff]
    %v255 = vld [vmem:[%s1 + $0x158] sm:$0xff]
    %v256 = vld [vmem:[%s1 + $0x160] sm:$0xff]
    %v257 = vld [vmem:[%s1 + $0x168] sm:$0xff]
    %v258 = vld [vmem:[%s1 + $0x170] sm:$0xff]
    %v259 = vld [vmem:[%s1 + $0x178] sm:$0xff]
    %v260 = vld [vmem:[%s1 + $0x180] sm:$0xff]
    %v261 = vld [vmem:[%s1 + $0x188] sm:$0xff]
    %v262 = vld [vmem:[%s1 + $0x190] sm:$0xff]
    %v263 = vld [vmem:[%s1 + $0x198] sm:$0xff]
    %v264 = vld [vmem:[%s1 + $0x1a0] sm:$0xff]
    %v265 = vld [vmem:[%s1 + $0x1a8] sm:$0xff]
    %v266 = vld [vmem:[%s1 + $0x1b0] sm:$0xff]
    %v267 = vld [vmem:[%s1 + $0x1b8] sm:$0xff]
    %v268 = vld [vmem:[%s1 + $0x1c0] sm:$0xff]
    %v269 = vld [vmem:[%s1 + $0x1c8] sm:$0xff]
    %v270 = vld [vmem:[%s1 + $0x1d0] sm:$0xff]
    %v271 = vld [vmem:[%s1 + $0x1d8] sm:$0xff]
    %v272 = vld [vmem:[%s1 + $0x1e0] sm:$0xff]
    %v273 = vld [vmem:[%s1 + $0x1e8] sm:$0xff]
    %v274 = vld [vmem:[%s1 + $0x1f0] sm:$0xff]
    %v275 = vld [vmem:[%s1 + $0x1f8] sm:$0xff]
    %v276 = vld [vmem:[%s2] sm:$0x3]
    %v277 = vlaneseq
    %v278 = vand.u32 %v277, 127
    %279 = vset.pattern.permute.xlu0 0
    %280 = vperm.xlu0 %279, %v212
    %v281 = vpop.permute.xlu0 %280
    %282 = vset.pattern.permute.xlu0 0
    %283 = vperm.xlu0 %282, %v213
    %v284 = vpop.permute.xlu0 %283
    %285 = vset.pattern.permute.xlu0 0
    %286 = vperm.xlu0 %285, %v214
    %v287 = vpop.permute.xlu0 %286
    %288 = vset.pattern.permute.xlu0 0
    %289 = vperm.xlu0 %288, %v215
    %v290 = vpop.permute.xlu0 %289
    %291 = vset.pattern.permute.xlu0 0
    %292 = vperm.xlu0 %291, %v216
    %v293 = vpop.permute.xlu0 %292
    %294 = vset.pattern.permute.xlu0 0
    %295 = vperm.xlu0 %294, %v217
    %v296 = vpop.permute.xlu0 %295
    %297 = vset.pattern.permute.xlu0 0
    %298 = vperm.xlu0 %297, %v218
    %v299 = vpop.permute.xlu0 %298
    %300 = vset.pattern.permute.xlu0 0
    %301 = vperm.xlu0 %300, %v219
    %v302 = vpop.permute.xlu0 %301
    %303 = vset.pattern.permute.xlu0 0
    %304 = vperm.xlu0 %303, %v220
    %v305 = vpop.permute.xlu0 %304
    %306 = vset.pattern.permute.xlu0 0
    %307 = vperm.xlu0 %306, %v221
    %v308 = vpop.permute.xlu0 %307
    %309 = vset.pattern.permute.xlu0 0
    %310 = vperm.xlu0 %309, %v222
    %v311 = vpop.permute.xlu0 %310
    %312 = vset.pattern.permute.xlu0 0
    %313 = vperm.xlu0 %312, %v223
    %v314 = vpop.permute.xlu0 %313
    %315 = vset.pattern.permute.xlu0 0
    %316 = vperm.xlu0 %315, %v224
    %v317 = vpop.permute.xlu0 %316
    %318 = vset.pattern.permute.xlu0 0
    %319 = vperm.xlu0 %318, %v225
    %v320 = vpop.permute.xlu0 %319
    %321 = vset.pattern.permute.xlu0 0
    %322 = vperm.xlu0 %321, %v226
    %v323 = vpop.permute.xlu0 %322
    %324 = vset.pattern.permute.xlu0 0
    %325 = vperm.xlu0 %324, %v227
    %v326 = vpop.permute.xlu0 %325
    %327 = vset.pattern.permute.xlu0 0
    %328 = vperm.xlu0 %327, %v228
    %v329 = vpop.permute.xlu0 %328
    %330 = vset.pattern.permute.xlu0 0
    %331 = vperm.xlu0 %330, %v229
    %v332 = vpop.permute.xlu0 %331
    %333 = vset.pattern.permute.xlu0 0
    %334 = vperm.xlu0 %333, %v230
    %v335 = vpop.permute.xlu0 %334
    %336 = vset.pattern.permute.xlu0 0
    %337 = vperm.xlu0 %336, %v231
    %v338 = vpop.permute.xlu0 %337
    %339 = vset.pattern.permute.xlu0 0
    %340 = vperm.xlu0 %339, %v232
    %v341 = vpop.permute.xlu0 %340
    %342 = vset.pattern.permute.xlu0 0
    %343 = vperm.xlu0 %342, %v233
    %v344 = vpop.permute.xlu0 %343
    %345 = vset.pattern.permute.xlu0 0
    %346 = vperm.xlu0 %345, %v234
    %v347 = vpop.permute.xlu0 %346
    %348 = vset.pattern.permute.xlu0 0
    %349 = vperm.xlu0 %348, %v235
    %v350 = vpop.permute.xlu0 %349
    %351 = vset.pattern.permute.xlu0 0
    %352 = vperm.xlu0 %351, %v236
    %v353 = vpop.permute.xlu0 %352
    %354 = vset.pattern.permute.xlu0 0
    %355 = vperm.xlu0 %354, %v237
    %v356 = vpop.permute.xlu0 %355
    %357 = vset.pattern.permute.xlu0 0
    %358 = vperm.xlu0 %357, %v238
    %v359 = vpop.permute.xlu0 %358
    %360 = vset.pattern.permute.xlu0 0
    %361 = vperm.xlu0 %360, %v239
    %v362 = vpop.permute.xlu0 %361
    %363 = vset.pattern.permute.xlu0 0
    %364 = vperm.xlu0 %363, %v240
    %v365 = vpop.permute.xlu0 %364
    %366 = vset.pattern.permute.xlu0 0
    %367 = vperm.xlu0 %366, %v241
    %v368 = vpop.permute.xlu0 %367
    %369 = vset.pattern.permute.xlu0 0
    %370 = vperm.xlu0 %369, %v242
    %v371 = vpop.permute.xlu0 %370
    %372 = vset.pattern.permute.xlu0 0
    %373 = vperm.xlu0 %372, %v243
    %v374 = vpop.permute.xlu0 %373
    %375 = vset.pattern.permute.xlu0 0
    %376 = vperm.xlu0 %375, %v244
    %v377 = vpop.permute.xlu0 %376
    %378 = vset.pattern.permute.xlu0 0
    %379 = vperm.xlu0 %378, %v245
    %v380 = vpop.permute.xlu0 %379
    %381 = vset.pattern.permute.xlu0 0
    %382 = vperm.xlu0 %381, %v246
    %v383 = vpop.permute.xlu0 %382
    %384 = vset.pattern.permute.xlu0 0
    %385 = vperm.xlu0 %384, %v247
    %v386 = vpop.permute.xlu0 %385
    %387 = vset.pattern.permute.xlu0 0
    %388 = vperm.xlu0 %387, %v248
    %v389 = vpop.permute.xlu0 %388
    %390 = vset.pattern.permute.xlu0 0
    %391 = vperm.xlu0 %390, %v249
    %v392 = vpop.permute.xlu0 %391
    %393 = vset.pattern.permute.xlu0 0
    %394 = vperm.xlu0 %393, %v250
    %v395 = vpop.permute.xlu0 %394
    %396 = vset.pattern.permute.xlu0 0
    %397 = vperm.xlu0 %396, %v251
    %v398 = vpop.permute.xlu0 %397
    %399 = vset.pattern.permute.xlu0 0
    %400 = vperm.xlu0 %399, %v252
    %v401 = vpop.permute.xlu0 %400
    %402 = vset.pattern.permute.xlu0 0
    %403 = vperm.xlu0 %402, %v253
    %v404 = vpop.permute.xlu0 %403
    %405 = vset.pattern.permute.xlu0 0
    %406 = vperm.xlu0 %405, %v254
    %v407 = vpop.permute.xlu0 %406
    %408 = vset.pattern.permute.xlu0 0
    %409 = vperm.xlu0 %408, %v255
    %v410 = vpop.permute.xlu0 %409
    %411 = vset.pattern.permute.xlu0 0
    %412 = vperm.xlu0 %411, %v256
    %v413 = vpop.permute.xlu0 %412
    %414 = vset.pattern.permute.xlu0 0
    %415 = vperm.xlu0 %414, %v257
    %v416 = vpop.permute.xlu0 %415
    %417 = vset.pattern.permute.xlu0 0
    %418 = vperm.xlu0 %417, %v258
    %v419 = vpop.permute.xlu0 %418
    %420 = vset.pattern.permute.xlu0 0
    %421 = vperm.xlu0 %420, %v259
    %v422 = vpop.permute.xlu0 %421
    %423 = vset.pattern.permute.xlu0 0
    %424 = vperm.xlu0 %423, %v260
    %v425 = vpop.permute.xlu0 %424
    %426 = vset.pattern.permute.xlu0 0
    %427 = vperm.xlu0 %426, %v261
    %v428 = vpop.permute.xlu0 %427
    %429 = vset.pattern.permute.xlu0 0
    %430 = vperm.xlu0 %429, %v262
    %v431 = vpop.permute.xlu0 %430
    %432 = vset.pattern.permute.xlu0 0
    %433 = vperm.xlu0 %432, %v263
    %v434 = vpop.permute.xlu0 %433
    %435 = vset.pattern.permute.xlu0 0
    %436 = vperm.xlu0 %435, %v264
    %v437 = vpop.permute.xlu0 %436
    %438 = vset.pattern.permute.xlu0 0
    %439 = vperm.xlu0 %438, %v265
    %v440 = vpop.permute.xlu0 %439
    %441 = vset.pattern.permute.xlu0 0
    %442 = vperm.xlu0 %441, %v266
    %v443 = vpop.permute.xlu0 %442
    %444 = vset.pattern.permute.xlu0 0
    %445 = vperm.xlu0 %444, %v267
    %v446 = vpop.permute.xlu0 %445
    %447 = vset.pattern.permute.xlu0 0
    %448 = vperm.xlu0 %447, %v268
    %v449 = vpop.permute.xlu0 %448
    %450 = vset.pattern.permute.xlu0 0
    %451 = vperm.xlu0 %450, %v269
    %v452 = vpop.permute.xlu0 %451
    %453 = vset.pattern.permute.xlu0 0
    %454 = vperm.xlu0 %453, %v270
    %v455 = vpop.permute.xlu0 %454
    %456 = vset.pattern.permute.xlu0 0
    %457 = vperm.xlu0 %456, %v271
    %v458 = vpop.permute.xlu0 %457
    %459 = vset.pattern.permute.xlu0 0
    %460 = vperm.xlu0 %459, %v272
    %v461 = vpop.permute.xlu0 %460
    %462 = vset.pattern.permute.xlu0 0
    %463 = vperm.xlu0 %462, %v273
    %v464 = vpop.permute.xlu0 %463
    %465 = vset.pattern.permute.xlu0 0
    %466 = vperm.xlu0 %465, %v274
    %v467 = vpop.permute.xlu0 %466
    %468 = vset.pattern.permute.xlu0 0
    %469 = vperm.xlu0 %468, %v275
    %v470 = vpop.permute.xlu0 %469
    %vm471 = vcmp.eq.s32.totalorder %v278, %v281
    %vm472 = vcmp.eq.s32.totalorder %v278, %v284
    %vm473 = vcmp.eq.s32.totalorder %v278, %v287
    %vm474 = vcmp.eq.s32.totalorder %v278, %v290
    %vm475 = vcmp.eq.s32.totalorder %v278, %v293
    %vm476 = vcmp.eq.s32.totalorder %v278, %v296
    %vm477 = vcmp.eq.s32.totalorder %v278, %v299
    %vm478 = vcmp.eq.s32.totalorder %v278, %v302
    %vm479 = vcmp.eq.s32.totalorder %v278, %v305
    %vm480 = vcmp.eq.s32.totalorder %v278, %v308
    %vm481 = vcmp.eq.s32.totalorder %v278, %v311
    %vm482 = vcmp.eq.s32.totalorder %v278, %v314
    %vm483 = vcmp.eq.s32.totalorder %v278, %v317
    %vm484 = vcmp.eq.s32.totalorder %v278, %v320
    %vm485 = vcmp.eq.s32.totalorder %v278, %v323
    %vm486 = vcmp.eq.s32.totalorder %v278, %v326
    %vm487 = vcmp.eq.s32.totalorder %v278, %v329
    %vm488 = vcmp.eq.s32.totalorder %v278, %v332
    %vm489 = vcmp.eq.s32.totalorder %v278, %v335
    %vm490 = vcmp.eq.s32.totalorder %v278, %v338
    %vm491 = vcmp.eq.s32.totalorder %v278, %v341
    %vm492 = vcmp.eq.s32.totalorder %v278, %v344
    %vm493 = vcmp.eq.s32.totalorder %v278, %v347
    %vm494 = vcmp.eq.s32.totalorder %v278, %v350
    %vm495 = vcmp.eq.s32.totalorder %v278, %v353
    %vm496 = vcmp.eq.s32.totalorder %v278, %v356
    %vm497 = vcmp.eq.s32.totalorder %v278, %v359
    %vm498 = vcmp.eq.s32.totalorder %v278, %v362
    %vm499 = vcmp.eq.s32.totalorder %v278, %v365
    %vm500 = vcmp.eq.s32.totalorder %v278, %v368
    %vm501 = vcmp.eq.s32.totalorder %v278, %v371
    %vm502 = vcmp.eq.s32.totalorder %v278, %v374
    %vm503 = vcmp.eq.s32.totalorder %v278, %v377
    %vm504 = vcmp.eq.s32.totalorder %v278, %v380
    %vm505 = vcmp.eq.s32.totalorder %v278, %v383
    %vm506 = vcmp.eq.s32.totalorder %v278, %v386
    %vm507 = vcmp.eq.s32.totalorder %v278, %v389
    %vm508 = vcmp.eq.s32.totalorder %v278, %v392
    %vm509 = vcmp.eq.s32.totalorder %v278, %v395
    %vm510 = vcmp.eq.s32.totalorder %v278, %v398
    %vm511 = vcmp.eq.s32.totalorder %v278, %v401
    %vm512 = vcmp.eq.s32.totalorder %v278, %v404
    %vm513 = vcmp.eq.s32.totalorder %v278, %v407
    %vm514 = vcmp.eq.s32.totalorder %v278, %v410
    %vm515 = vcmp.eq.s32.totalorder %v278, %v413
    %vm516 = vcmp.eq.s32.totalorder %v278, %v416
    %vm517 = vcmp.eq.s32.totalorder %v278, %v419
    %vm518 = vcmp.eq.s32.totalorder %v278, %v422
    %vm519 = vcmp.eq.s32.totalorder %v278, %v425
    %vm520 = vcmp.eq.s32.totalorder %v278, %v428
    %vm521 = vcmp.eq.s32.totalorder %v278, %v431
    %vm522 = vcmp.eq.s32.totalorder %v278, %v434
    %vm523 = vcmp.eq.s32.totalorder %v278, %v437
    %vm524 = vcmp.eq.s32.totalorder %v278, %v440
    %vm525 = vcmp.eq.s32.totalorder %v278, %v443
    %vm526 = vcmp.eq.s32.totalorder %v278, %v446
    %vm527 = vcmp.eq.s32.totalorder %v278, %v449
    %vm528 = vcmp.eq.s32.totalorder %v278, %v452
    %vm529 = vcmp.eq.s32.totalorder %v278, %v455
    %vm530 = vcmp.eq.s32.totalorder %v278, %v458
    %vm531 = vcmp.eq.s32.totalorder %v278, %v461
    %vm532 = vcmp.eq.s32.totalorder %v278, %v464
    %vm533 = vcmp.eq.s32.totalorder %v278, %v467
    %vm534 = vcmp.eq.s32.totalorder %v278, %v470
    %v535 = vsel %vm471, 1, 0
    %v536 = vsel %vm472, 1, 0
    %v537 = vsel %vm473, 1, 0
    %v538 = vsel %vm474, 1, 0
    %v539 = vsel %vm475, 1, 0
    %v540 = vsel %vm476, 1, 0
    %v541 = vsel %vm477, 1, 0
    %v542 = vsel %vm478, 1, 0
    %v543 = vsel %vm479, 1, 0
    %v544 = vsel %vm480, 1, 0
    %v545 = vsel %vm481, 1, 0
    %v546 = vsel %vm482, 1, 0
    %v547 = vsel %vm483, 1, 0
    %v548 = vsel %vm484, 1, 0
    %v549 = vsel %vm485, 1, 0
    %v550 = vsel %vm486, 1, 0
    %v551 = vsel %vm487, 1, 0
    %v552 = vsel %vm488, 1, 0
    %v553 = vsel %vm489, 1, 0
    %v554 = vsel %vm490, 1, 0
    %v555 = vsel %vm491, 1, 0
    %v556 = vsel %vm492, 1, 0
    %v557 = vsel %vm493, 1, 0
    %v558 = vsel %vm494, 1, 0
    %v559 = vsel %vm495, 1, 0
    %v560 = vsel %vm496, 1, 0
    %v561 = vsel %vm497, 1, 0
    %v562 = vsel %vm498, 1, 0
    %v563 = vsel %vm499, 1, 0
    %v564 = vsel %vm500, 1, 0
    %v565 = vsel %vm501, 1, 0
    %v566 = vsel %vm502, 1, 0
    %v567 = vsel %vm503, 1, 0
    %v568 = vsel %vm504, 1, 0
    %v569 = vsel %vm505, 1, 0
    %v570 = vsel %vm506, 1, 0
    %v571 = vsel %vm507, 1, 0
    %v572 = vsel %vm508, 1, 0
    %v573 = vsel %vm509, 1, 0
    %v574 = vsel %vm510, 1, 0
    %v575 = vsel %vm511, 1, 0
    %v576 = vsel %vm512, 1, 0
    %v577 = vsel %vm513, 1, 0
    %v578 = vsel %vm514, 1, 0
    %v579 = vsel %vm515, 1, 0
    %v580 = vsel %vm516, 1, 0
    %v581 = vsel %vm517, 1, 0
    %v582 = vsel %vm518, 1, 0
    %v583 = vsel %vm519, 1, 0
    %v584 = vsel %vm520, 1, 0
    %v585 = vsel %vm521, 1, 0
    %v586 = vsel %vm522, 1, 0
    %v587 = vsel %vm523, 1, 0
    %v588 = vsel %vm524, 1, 0
    %v589 = vsel %vm525, 1, 0
    %v590 = vsel %vm526, 1, 0
    %v591 = vsel %vm527, 1, 0
    %v592 = vsel %vm528, 1, 0
    %v593 = vsel %vm529, 1, 0
    %v594 = vsel %vm530, 1, 0
    %v595 = vsel %vm531, 1, 0
    %v596 = vsel %vm532, 1, 0
    %v597 = vsel %vm533, 1, 0
    %v598 = vsel %vm534, 1, 0
    %v599 = vcvt.s32.f32 %v535
    %v600 = vcvt.s32.f32 %v536
    %v601 = vcvt.s32.f32 %v537
    %v602 = vcvt.s32.f32 %v538
    %v603 = vcvt.s32.f32 %v539
    %v604 = vcvt.s32.f32 %v540
    %v605 = vcvt.s32.f32 %v541
    %v606 = vcvt.s32.f32 %v542
    %v607 = vcvt.s32.f32 %v543
    %v608 = vcvt.s32.f32 %v544
    %v609 = vcvt.s32.f32 %v545
    %v610 = vcvt.s32.f32 %v546
    %v611 = vcvt.s32.f32 %v547
    %v612 = vcvt.s32.f32 %v548
    %v613 = vcvt.s32.f32 %v549
    %v614 = vcvt.s32.f32 %v550
    %v615 = vcvt.s32.f32 %v551
    %v616 = vcvt.s32.f32 %v552
    %v617 = vcvt.s32.f32 %v553
    %v618 = vcvt.s32.f32 %v554
    %v619 = vcvt.s32.f32 %v555
    %v620 = vcvt.s32.f32 %v556
    %v621 = vcvt.s32.f32 %v557
    %v622 = vcvt.s32.f32 %v558
    %v623 = vcvt.s32.f32 %v559
    %v624 = vcvt.s32.f32 %v560
    %v625 = vcvt.s32.f32 %v561
    %v626 = vcvt.s32.f32 %v562
    %v627 = vcvt.s32.f32 %v563
    %v628 = vcvt.s32.f32 %v564
    %v629 = vcvt.s32.f32 %v565
    %v630 = vcvt.s32.f32 %v566
    %v631 = vcvt.s32.f32 %v567
    %v632 = vcvt.s32.f32 %v568
    %v633 = vcvt.s32.f32 %v569
    %v634 = vcvt.s32.f32 %v570
    %v635 = vcvt.s32.f32 %v571
    %v636 = vcvt.s32.f32 %v572
    %v637 = vcvt.s32.f32 %v573
    %v638 = vcvt.s32.f32 %v574
    %v639 = vcvt.s32.f32 %v575
    %v640 = vcvt.s32.f32 %v576
    %v641 = vcvt.s32.f32 %v577
    %v642 = vcvt.s32.f32 %v578
    %v643 = vcvt.s32.f32 %v579
    %v644 = vcvt.s32.f32 %v580
    %v645 = vcvt.s32.f32 %v581
    %v646 = vcvt.s32.f32 %v582
    %v647 = vcvt.s32.f32 %v583
    %v648 = vcvt.s32.f32 %v584
    %v649 = vcvt.s32.f32 %v585
    %v650 = vcvt.s32.f32 %v586
    %v651 = vcvt.s32.f32 %v587
    %v652 = vcvt.s32.f32 %v588
    %v653 = vcvt.s32.f32 %v589
    %v654 = vcvt.s32.f32 %v590
    %v655 = vcvt.s32.f32 %v591
    %v656 = vcvt.s32.f32 %v592
    %v657 = vcvt.s32.f32 %v593
    %v658 = vcvt.s32.f32 %v594
    %v659 = vcvt.s32.f32 %v595
    %v660 = vcvt.s32.f32 %v596
    %v661 = vcvt.s32.f32 %v597
    %v662 = vcvt.s32.f32 %v598
    %v663 = vpack.c.bf16 %v600, %v599
    %v664 = vpack.c.bf16 %v602, %v601
    %v665 = vpack.c.bf16 %v604, %v603
    %v666 = vpack.c.bf16 %v606, %v605
    %v667 = vpack.c.bf16 %v608, %v607
    %v668 = vpack.c.bf16 %v610, %v609
    %v669 = vpack.c.bf16 %v612, %v611
    %v670 = vpack.c.bf16 %v614, %v613
    %v671 = vpack.c.bf16 %v616, %v615
    %v672 = vpack.c.bf16 %v618, %v617
    %v673 = vpack.c.bf16 %v620, %v619
    %v674 = vpack.c.bf16 %v622, %v621
    %v675 = vpack.c.bf16 %v624, %v623
    %v676 = vpack.c.bf16 %v626, %v625
    %v677 = vpack.c.bf16 %v628, %v627
    %v678 = vpack.c.bf16 %v630, %v629
    %v679 = vpack.c.bf16 %v632, %v631
    %v680 = vpack.c.bf16 %v634, %v633
    %v681 = vpack.c.bf16 %v636, %v635
    %v682 = vpack.c.bf16 %v638, %v637
    %v683 = vpack.c.bf16 %v640, %v639
    %v684 = vpack.c.bf16 %v642, %v641
    %v685 = vpack.c.bf16 %v644, %v643
    %v686 = vpack.c.bf16 %v646, %v645
    %v687 = vpack.c.bf16 %v648, %v647
    %v688 = vpack.c.bf16 %v650, %v649
    %v689 = vpack.c.bf16 %v652, %v651
    %v690 = vpack.c.bf16 %v654, %v653
    %v691 = vpack.c.bf16 %v656, %v655
    %v692 = vpack.c.bf16 %v658, %v657
    %v693 = vpack.c.bf16 %v660, %v659
    %v694 = vpack.c.bf16 %v662, %v661
    %vm695 = vcmask 64512
    %v697 = vsel %vm695, %v663, 0
    %v700 = vsel %vm695, %v664, 0
    %v703 = vsel %vm695, %v665, 0
    %v706 = vsel %vm695, %v666, 0
    %v709 = vsel %vm695, %v667, 0
    %v712 = vsel %vm695, %v668, 0
    %v715 = vsel %vm695, %v669, 0
    %v718 = vsel %vm695, %v670, 0
    %v721 = vsel %vm695, %v671, 0
    %v724 = vsel %vm695, %v672, 0
    %v727 = vsel %vm695, %v673, 0
    %v730 = vsel %vm695, %v674, 0
    %v733 = vsel %vm695, %v675, 0
    %v736 = vsel %vm695, %v676, 0
    %v739 = vsel %vm695, %v677, 0
    %v742 = vsel %vm695, %v678, 0
    %v745 = vsel %vm695, %v679, 0
    %v748 = vsel %vm695, %v680, 0
    %v751 = vsel %vm695, %v681, 0
    %v754 = vsel %vm695, %v682, 0
    %v757 = vsel %vm695, %v683, 0
    %v760 = vsel %vm695, %v684, 0
    %v763 = vsel %vm695, %v685, 0
    %v766 = vsel %vm695, %v686, 0
    %v769 = vsel %vm695, %v687, 0
    %v772 = vsel %vm695, %v688, 0
    %v775 = vsel %vm695, %v689, 0
    %v778 = vsel %vm695, %v690, 0
    %v781 = vsel %vm695, %v691, 0
    %v784 = vsel %vm695, %v692, 0
    %v787 = vsel %vm695, %v693, 0
    %v790 = vsel %vm695, %v694, 0
    %vm792 = vcmask 1043456
    %v794 = vsel %vm792, %v179, 0
    %796 = vmatprep.subr.bf16.mxu0 0
    %797 = vmatpush1.bf16.msra.mxu0 %v794
    %798 = vmatprep.subr.bf16.mxu0 0
    %799 = vmatpush1.bf16.msra.mxu0 0
    %800 = vmatprep.subr.bf16.mxu0 0
    %801 = vmatpush1.bf16.msra.mxu0 0
    %802 = vmatprep.subr.bf16.mxu0 0
    %803 = vmatpush1.bf16.msra.mxu0 0
    %804 = vmatprep.subr.bf16.mxu0 0
    %805 = vmatpush1.bf16.msra.mxu0 0
    %806 = vmatprep.subr.bf16.mxu0 0
    %807 = vmatpush1.bf16.msra.mxu0 0
    %808 = vmatprep.subr.bf16.mxu0 0
    %809 = vmatpush1.bf16.msra.mxu0 0
    %810 = vmatprep.subr.bf16.mxu0 0
    %811 = vmatpush1.bf16.msra.mxu0 0
    %812 = vmatprep.subr.bf16.mxu0 0
    %813 = vmatpush1.bf16.msra.mxu0 0
    %814 = vmatprep.subr.bf16.mxu0 0
    %815 = vmatpush1.bf16.msra.mxu0 0
    %816 = vmatprep.subr.bf16.mxu0 0
    %817 = vmatpush1.bf16.msra.mxu0 0
    %818 = vmatprep.subr.bf16.mxu0 0
    %819 = vmatpush1.bf16.msra.mxu0 0
    %820 = vmatprep.subr.bf16.mxu0 0
    %821 = vmatpush1.bf16.msra.mxu0 0
    %822 = vmatprep.subr.bf16.mxu0 0
    %823 = vmatpush1.bf16.msra.mxu0 0
    %824 = vmatprep.subr.bf16.mxu0 0
    %825 = vmatpush1.bf16.msra.mxu0 0
    %826 = vmatprep.subr.bf16.mxu0 0
    %827 = vmatpush1.bf16.msra.mxu0 0
    %828 = vmatprep.mubr.bf16.mxu0 0
    %829 = vmatmul.mubr.bf16.gmra.mrb[0].mxu0 %v697
    %v830 = vpop.f32.mrb[0].mxu0
    %v831 = vadd.f32 0.0, %v830
    %v832 = vpop.f32.mrb[0].mxu0
    %v833 = vpop.f32.mrb[0].mxu0
    %v834 = vadd.f32 0.0, %v833
    %v835 = vpop.f32.mrb[0].mxu0
    %836 = vmatprep.mubr.bf16.mxu0 0
    %837 = vmatmul.mubr.bf16.gmra.mrb[0].mxu0 %v700
    %v838 = vpop.f32.mrb[0].mxu0
    %v839 = vadd.f32 0.0, %v838
    %v840 = vpop.f32.mrb[0].mxu0
    %v841 = vpop.f32.mrb[0].mxu0
    %v842 = vadd.f32 0.0, %v841
    %v843 = vpop.f32.mrb[0].mxu0
    %844 = vmatprep.mubr.bf16.mxu0 0
    %845 = vmatmul.mubr.bf16.gmra.mrb[0].mxu0 %v703
    %v846 = vpop.f32.mrb[0].mxu0
    %v847 = vadd.f32 0.0, %v846
    %v848 = vpop.f32.mrb[0].mxu0
    %v849 = vpop.f32.mrb[0].mxu0
    %v850 = vadd.f32 0.0, %v849
    %v851 = vpop.f32.mrb[0].mxu0
    %852 = vmatprep.mubr.bf16.mxu0 0
    %853 = vmatmul.mubr.bf16.gmra.mrb[0].mxu0 %v706
    %v854 = vpop.f32.mrb[0].mxu0
    %v855 = vadd.f32 0.0, %v854
    %v856 = vpop.f32.mrb[0].mxu0
    %v857 = vpop.f32.mrb[0].mxu0
    %v858 = vadd.f32 0.0, %v857
    %v859 = vpop.f32.mrb[0].mxu0
    %860 = vmatprep.mubr.bf16.mxu0 0
    %861 = vmatmul.mubr.bf16.gmra.mrb[0].mxu0 %v709
    %v862 = vpop.f32.mrb[0].mxu0
    %v863 = vadd.f32 0.0, %v862
    %v864 = vpop.f32.mrb[0].mxu0
    %v865 = vpop.f32.mrb[0].mxu0
    %v866 = vadd.f32 0.0, %v865
    %v867 = vpop.f32.mrb[0].mxu0
    %868 = vmatprep.mubr.bf16.mxu0 0
    %869 = vmatmul.mubr.bf16.gmra.mrb[0].mxu0 %v712
    %v870 = vpop.f32.mrb[0].mxu0
    %v871 = vadd.f32 0.0, %v870
    %v872 = vpop.f32.mrb[0].mxu0
    %v873 = vpop.f32.mrb[0].mxu0
    %v874 = vadd.f32 0.0, %v873
    %v875 = vpop.f32.mrb[0].mxu0
    %876 = vmatprep.mubr.bf16.mxu0 0
    %877 = vmatmul.mubr.bf16.gmra.mrb[0].mxu0 %v715
    %v878 = vpop.f32.mrb[0].mxu0
    %v879 = vadd.f32 0.0, %v878
    %v880 = vpop.f32.mrb[0].mxu0
    %v881 = vpop.f32.mrb[0].mxu0
    %v882 = vadd.f32 0.0, %v881
    %v883 = vpop.f32.mrb[0].mxu0
    %884 = vmatprep.mubr.bf16.mxu0 0
    %885 = vmatmul.mubr.bf16.gmra.mrb[0].mxu0 %v718
    %v886 = vpop.f32.mrb[0].mxu0
    %v887 = vadd.f32 0.0, %v886
    %v888 = vpop.f32.mrb[0].mxu0
    %v889 = vpop.f32.mrb[0].mxu0
    %v890 = vadd.f32 0.0, %v889
    %v891 = vpop.f32.mrb[0].mxu0
    %892 = vmatprep.mubr.bf16.mxu0 0
    %893 = vmatmul.mubr.bf16.gmra.mrb[0].mxu0 %v721
    %v894 = vpop.f32.mrb[0].mxu0
    %v895 = vadd.f32 0.0, %v894
    %v896 = vpop.f32.mrb[0].mxu0
    %v897 = vpop.f32.mrb[0].mxu0
    %v898 = vadd.f32 0.0, %v897
    %v899 = vpop.f32.mrb[0].mxu0
    %900 = vmatprep.mubr.bf16.mxu0 0
    %901 = vmatmul.mubr.bf16.gmra.mrb[0].mxu0 %v724
    %v902 = vpop.f32.mrb[0].mxu0
    %v903 = vadd.f32 0.0, %v902
    %v904 = vpop.f32.mrb[0].mxu0
    %v905 = vpop.f32.mrb[0].mxu0
    %v906 = vadd.f32 0.0, %v905
    %v907 = vpop.f32.mrb[0].mxu0
    %908 = vmatprep.mubr.bf16.mxu0 0
    %909 = vmatmul.mubr.bf16.gmra.mrb[0].mxu0 %v727
    %v910 = vpop.f32.mrb[0].mxu0
    %v911 = vadd.f32 0.0, %v910
    %v912 = vpop.f32.mrb[0].mxu0
    %v913 = vpop.f32.mrb[0].mxu0
    %v914 = vadd.f32 0.0, %v913
    %v915 = vpop.f32.mrb[0].mxu0
    %916 = vmatprep.mubr.bf16.mxu0 0
    %917 = vmatmul.mubr.bf16.gmra.mrb[0].mxu0 %v730
    %v918 = vpop.f32.mrb[0].mxu0
    %v919 = vadd.f32 0.0, %v918
    %v920 = vpop.f32.mrb[0].mxu0
    %v921 = vpop.f32.mrb[0].mxu0
    %v922 = vadd.f32 0.0, %v921
    %v923 = vpop.f32.mrb[0].mxu0
    %924 = vmatprep.mubr.bf16.mxu0 0
    %925 = vmatmul.mubr.bf16.gmra.mrb[0].mxu0 %v733
    %v926 = vpop.f32.mrb[0].mxu0
    %v927 = vadd.f32 0.0, %v926
    %v928 = vpop.f32.mrb[0].mxu0
    %v929 = vpop.f32.mrb[0].mxu0
    %v930 = vadd.f32 0.0, %v929
    %v931 = vpop.f32.mrb[0].mxu0
    %932 = vmatprep.mubr.bf16.mxu0 0
    %933 = vmatmul.mubr.bf16.gmra.mrb[0].mxu0 %v736
    %v934 = vpop.f32.mrb[0].mxu0
    %v935 = vadd.f32 0.0, %v934
    %v936 = vpop.f32.mrb[0].mxu0
    %v937 = vpop.f32.mrb[0].mxu0
    %v938 = vadd.f32 0.0, %v937
    %v939 = vpop.f32.mrb[0].mxu0
    %940 = vmatprep.mubr.bf16.mxu0 0
    %941 = vmatmul.mubr.bf16.gmra.mrb[0].mxu0 %v739
    %v942 = vpop.f32.mrb[0].mxu0
    %v943 = vadd.f32 0.0, %v942
    %v944 = vpop.f32.mrb[0].mxu0
    %v945 = vpop.f32.mrb[0].mxu0
    %v946 = vadd.f32 0.0, %v945
    %v947 = vpop.f32.mrb[0].mxu0
    %948 = vmatprep.mubr.bf16.mxu0 0
    %949 = vmatmul.mubr.bf16.gmra.mrb[0].mxu0 %v742
    %v950 = vpop.f32.mrb[0].mxu0
    %v951 = vadd.f32 0.0, %v950
    %v952 = vpop.f32.mrb[0].mxu0
    %v953 = vpop.f32.mrb[0].mxu0
    %v954 = vadd.f32 0.0, %v953
    %v955 = vpop.f32.mrb[0].mxu0
    %956 = vmatprep.mubr.bf16.mxu0 0
    %957 = vmatmul.mubr.bf16.gmra.mrb[0].mxu0 %v745
    %v958 = vpop.f32.mrb[0].mxu0
    %v959 = vadd.f32 0.0, %v958
    %v960 = vpop.f32.mrb[0].mxu0
    %v961 = vpop.f32.mrb[0].mxu0
    %v962 = vadd.f32 0.0, %v961
    %v963 = vpop.f32.mrb[0].mxu0
    %964 = vmatprep.mubr.bf16.mxu0 0
    %965 = vmatmul.mubr.bf16.gmra.mrb[0].mxu0 %v748
    %v966 = vpop.f32.mrb[0].mxu0
    %v967 = vadd.f32 0.0, %v966
    %v968 = vpop.f32.mrb[0].mxu0
    %v969 = vpop.f32.mrb[0].mxu0
    %v970 = vadd.f32 0.0, %v969
    %v971 = vpop.f32.mrb[0].mxu0
    %972 = vmatprep.mubr.bf16.mxu0 0
    %973 = vmatmul.mubr.bf16.gmra.mrb[0].mxu0 %v751
    %v974 = vpop.f32.mrb[0].mxu0
    %v975 = vadd.f32 0.0, %v974
    %v976 = vpop.f32.mrb[0].mxu0
    %v977 = vpop.f32.mrb[0].mxu0
    %v978 = vadd.f32 0.0, %v977
    %v979 = vpop.f32.mrb[0].mxu0
    %980 = vmatprep.mubr.bf16.mxu0 0
    %981 = vmatmul.mubr.bf16.gmra.mrb[0].mxu0 %v754
    %v982 = vpop.f32.mrb[0].mxu0
    %v983 = vadd.f32 0.0, %v982
    %v984 = vpop.f32.mrb[0].mxu0
    %v985 = vpop.f32.mrb[0].mxu0
    %v986 = vadd.f32 0.0, %v985
    %v987 = vpop.f32.mrb[0].mxu0
    %988 = vmatprep.mubr.bf16.mxu0 0
    %989 = vmatmul.mubr.bf16.gmra.mrb[0].mxu0 %v757
    %v990 = vpop.f32.mrb[0].mxu0
    %v991 = vadd.f32 0.0, %v990
    %v992 = vpop.f32.mrb[0].mxu0
    %v993 = vpop.f32.mrb[0].mxu0
    %v994 = vadd.f32 0.0, %v993
    %v995 = vpop.f32.mrb[0].mxu0
    %996 = vmatprep.mubr.bf16.mxu0 0
    %997 = vmatmul.mubr.bf16.gmra.mrb[0].mxu0 %v760
    %v998 = vpop.f32.mrb[0].mxu0
    %v999 = vadd.f32 0.0, %v998
    %v1000 = vpop.f32.mrb[0].mxu0
    %v1001 = vpop.f32.mrb[0].mxu0
    %v1002 = vadd.f32 0.0, %v1001
    %v1003 = vpop.f32.mrb[0].mxu0
    %1004 = vmatprep.mubr.bf16.mxu0 0
    %1005 = vmatmul.mubr.bf16.gmra.mrb[0].mxu0 %v763
    %v1006 = vpop.f32.mrb[0].mxu0
    %v1007 = vadd.f32 0.0, %v1006
    %v1008 = vpop.f32.mrb[0].mxu0
    %v1009 = vpop.f32.mrb[0].mxu0
    %v1010 = vadd.f32 0.0, %v1009
    %v1011 = vpop.f32.mrb[0].mxu0
    %1012 = vmatprep.mubr.bf16.mxu0 0
    %1013 = vmatmul.mubr.bf16.gmra.mrb[0].mxu0 %v766
    %v1014 = vpop.f32.mrb[0].mxu0
    %v1015 = vadd.f32 0.0, %v1014
    %v1016 = vpop.f32.mrb[0].mxu0
    %v1017 = vpop.f32.mrb[0].mxu0
    %v1018 = vadd.f32 0.0, %v1017
    %v1019 = vpop.f32.mrb[0].mxu0
    %1020 = vmatprep.mubr.bf16.mxu0 0
    %1021 = vmatmul.mubr.bf16.gmra.mrb[0].mxu0 %v769
    %v1022 = vpop.f32.mrb[0].mxu0
    %v1023 = vadd.f32 0.0, %v1022
    %v1024 = vpop.f32.mrb[0].mxu0
    %v1025 = vpop.f32.mrb[0].mxu0
    %v1026 = vadd.f32 0.0, %v1025
    %v1027 = vpop.f32.mrb[0].mxu0
    %1028 = vmatprep.mubr.bf16.mxu0 0
    %1029 = vmatmul.mubr.bf16.gmra.mrb[0].mxu0 %v772
    %v1030 = vpop.f32.mrb[0].mxu0
    %v1031 = vadd.f32 0.0, %v1030
    %v1032 = vpop.f32.mrb[0].mxu0
    %v1033 = vpop.f32.mrb[0].mxu0
    %v1034 = vadd.f32 0.0, %v1033
    %v1035 = vpop.f32.mrb[0].mxu0
    %1036 = vmatprep.mubr.bf16.mxu0 0
    %1037 = vmatmul.mubr.bf16.gmra.mrb[0].mxu0 %v775
    %v1038 = vpop.f32.mrb[0].mxu0
    %v1039 = vadd.f32 0.0, %v1038
    %v1040 = vpop.f32.mrb[0].mxu0
    %v1041 = vpop.f32.mrb[0].mxu0
    %v1042 = vadd.f32 0.0, %v1041
    %v1043 = vpop.f32.mrb[0].mxu0
    %1044 = vmatprep.mubr.bf16.mxu0 0
    %1045 = vmatmul.mubr.bf16.gmra.mrb[0].mxu0 %v778
    %v1046 = vpop.f32.mrb[0].mxu0
    %v1047 = vadd.f32 0.0, %v1046
    %v1048 = vpop.f32.mrb[0].mxu0
    %v1049 = vpop.f32.mrb[0].mxu0
    %v1050 = vadd.f32 0.0, %v1049
    %v1051 = vpop.f32.mrb[0].mxu0
    %1052 = vmatprep.mubr.bf16.mxu0 0
    %1053 = vmatmul.mubr.bf16.gmra.mrb[0].mxu0 %v781
    %v1054 = vpop.f32.mrb[0].mxu0
    %v1055 = vadd.f32 0.0, %v1054
    %v1056 = vpop.f32.mrb[0].mxu0
    %v1057 = vpop.f32.mrb[0].mxu0
    %v1058 = vadd.f32 0.0, %v1057
    %v1059 = vpop.f32.mrb[0].mxu0
    %1060 = vmatprep.mubr.bf16.mxu0 0
    %1061 = vmatmul.mubr.bf16.gmra.mrb[0].mxu0 %v784
    %v1062 = vpop.f32.mrb[0].mxu0
    %v1063 = vadd.f32 0.0, %v1062
    %v1064 = vpop.f32.mrb[0].mxu0
    %v1065 = vpop.f32.mrb[0].mxu0
    %v1066 = vadd.f32 0.0, %v1065
    %v1067 = vpop.f32.mrb[0].mxu0
    %1068 = vmatprep.mubr.bf16.mxu0 0
    %1069 = vmatmul.mubr.bf16.gmra.mrb[0].mxu0 %v787
    %v1070 = vpop.f32.mrb[0].mxu0
    %v1071 = vadd.f32 0.0, %v1070
    %v1072 = vpop.f32.mrb[0].mxu0
    %v1073 = vpop.f32.mrb[0].mxu0
    %v1074 = vadd.f32 0.0, %v1073
    %v1075 = vpop.f32.mrb[0].mxu0
    %1076 = vmatprep.mubr.bf16.mxu0 0
    %1077 = vmatmul.mubr.bf16.gmra.mrb[0].mxu0 %v790
    %v1078 = vpop.f32.mrb[0].mxu0
    %v1079 = vadd.f32 0.0, %v1078
    %v1080 = vpop.f32.mrb[0].mxu0
    %v1081 = vpop.f32.mrb[0].mxu0
    %v1082 = vadd.f32 0.0, %v1081
    %v1083 = vpop.f32.mrb[0].mxu0
    %1084 = vdwg.mxu0
    %v1085 = vpack.c.bf16 %v834, %v831
    %v1086 = vpack.c.bf16 %v842, %v839
    %v1087 = vpack.c.bf16 %v850, %v847
    %v1088 = vpack.c.bf16 %v858, %v855
    %v1089 = vpack.c.bf16 %v866, %v863
    %v1090 = vpack.c.bf16 %v874, %v871
    %v1091 = vpack.c.bf16 %v882, %v879
    %v1092 = vpack.c.bf16 %v890, %v887
    %v1093 = vpack.c.bf16 %v898, %v895
    %v1094 = vpack.c.bf16 %v906, %v903
    %v1095 = vpack.c.bf16 %v914, %v911
    %v1096 = vpack.c.bf16 %v922, %v919
    %v1097 = vpack.c.bf16 %v930, %v927
    %v1098 = vpack.c.bf16 %v938, %v935
    %v1099 = vpack.c.bf16 %v946, %v943
    %v1100 = vpack.c.bf16 %v954, %v951
    %v1101 = vpack.c.bf16 %v962, %v959
    %v1102 = vpack.c.bf16 %v970, %v967
    %v1103 = vpack.c.bf16 %v978, %v975
    %v1104 = vpack.c.bf16 %v986, %v983
    %v1105 = vpack.c.bf16 %v994, %v991
    %v1106 = vpack.c.bf16 %v1002, %v999
    %v1107 = vpack.c.bf16 %v1010, %v1007
    %v1108 = vpack.c.bf16 %v1018, %v1015
    %v1109 = vpack.c.bf16 %v1026, %v1023
    %v1110 = vpack.c.bf16 %v1034, %v1031
    %v1111 = vpack.c.bf16 %v1042, %v1039
    %v1112 = vpack.c.bf16 %v1050, %v1047
    %v1113 = vpack.c.bf16 %v1058, %v1055
    %v1114 = vpack.c.bf16 %v1066, %v1063
    %v1115 = vpack.c.bf16 %v1074, %v1071
    %v1116 = vpack.c.bf16 %v1082, %v1079
    %v1117 = vld [vmem:[%s5] sm:$0xff]
    %v1118 = vld [vmem:[%s5 + $0x8] sm:$0xff]
    %v1119 = vld [vmem:[%s5 + $0x10] sm:$0xff]
    %v1120 = vld [vmem:[%s5 + $0x18] sm:$0xff]
    %v1121 = vld [vmem:[%s5 + $0x20] sm:$0xff]
    %v1122 = vld [vmem:[%s5 + $0x28] sm:$0xff]
    %v1123 = vld [vmem:[%s5 + $0x30] sm:$0xff]
    %v1124 = vld [vmem:[%s5 + $0x38] sm:$0xff]
    %v1125 = vld [vmem:[%s5 + $0x40] sm:$0xff]
    %v1126 = vld [vmem:[%s5 + $0x48] sm:$0xff]
    %v1127 = vld [vmem:[%s5 + $0x50] sm:$0xff]
    %v1128 = vld [vmem:[%s5 + $0x58] sm:$0xff]
    %v1129 = vld [vmem:[%s5 + $0x60] sm:$0xff]
    %v1130 = vld [vmem:[%s5 + $0x68] sm:$0xff]
    %v1131 = vld [vmem:[%s5 + $0x70] sm:$0xff]
    %v1132 = vld [vmem:[%s5 + $0x78] sm:$0xff]
    %v1149 = vunpack.c.l.b16 %v1117
    %v1150 = vunpack.c.h.b16 %v1117
    %v1151 = vunpack.c.l.b16 %v1118
    %v1152 = vunpack.c.h.b16 %v1118
    %v1153 = vunpack.c.l.b16 %v1119
    %v1154 = vunpack.c.h.b16 %v1119
    %v1155 = vunpack.c.l.b16 %v1120
    %v1156 = vunpack.c.h.b16 %v1120
    %v1157 = vunpack.c.l.b16 %v1121
    %v1158 = vunpack.c.h.b16 %v1121
    %v1159 = vunpack.c.l.b16 %v1122
    %v1160 = vunpack.c.h.b16 %v1122
    %v1161 = vunpack.c.l.b16 %v1123
    %v1162 = vunpack.c.h.b16 %v1123
    %v1163 = vunpack.c.l.b16 %v1124
    %v1164 = vunpack.c.h.b16 %v1124
    %v1165 = vunpack.c.l.b16 %v1125
    %v1166 = vunpack.c.h.b16 %v1125
    %v1167 = vunpack.c.l.b16 %v1126
    %v1168 = vunpack.c.h.b16 %v1126
    %v1169 = vunpack.c.l.b16 %v1127
    %v1170 = vunpack.c.h.b16 %v1127
    %v1171 = vunpack.c.l.b16 %v1128
    %v1172 = vunpack.c.h.b16 %v1128
    %v1173 = vunpack.c.l.b16 %v1129
    %v1174 = vunpack.c.h.b16 %v1129
    %v1175 = vunpack.c.l.b16 %v1130
    %v1176 = vunpack.c.h.b16 %v1130
    %v1177 = vunpack.c.l.b16 %v1131
    %v1178 = vunpack.c.h.b16 %v1131
    %v1179 = vunpack.c.l.b16 %v1132
    %v1180 = vunpack.c.h.b16 %v1132
    %v1181 = vpack.c.b16 %v1151, %v1149
    %v1182 = vpack.c.b16 %v1152, %v1150
    %v1183 = vpack.c.b16 %v1155, %v1153
    %v1184 = vpack.c.b16 %v1156, %v1154
    %v1185 = vpack.c.b16 %v1159, %v1157
    %v1186 = vpack.c.b16 %v1160, %v1158
    %v1187 = vpack.c.b16 %v1163, %v1161
    %v1188 = vpack.c.b16 %v1164, %v1162
    %v1189 = vpack.c.b16 %v1167, %v1165
    %v1190 = vpack.c.b16 %v1168, %v1166
    %v1191 = vpack.c.b16 %v1171, %v1169
    %v1192 = vpack.c.b16 %v1172, %v1170
    %v1193 = vpack.c.b16 %v1175, %v1173
    %v1194 = vpack.c.b16 %v1176, %v1174
    %v1195 = vpack.c.b16 %v1179, %v1177
    %v1196 = vpack.c.b16 %v1180, %v1178
    %1213 = vmatprep.subr.bf16.mxu0 %v1182
    %1214 = vmatpush1.bf16.msra.mxu0 %v1181
    %1215 = vmatprep.subr.bf16.mxu0 %v1184
    %1216 = vmatpush1.bf16.msra.mxu0 %v1183
    %1217 = vmatprep.subr.bf16.mxu0 %v1186
    %1218 = vmatpush1.bf16.msra.mxu0 %v1185
    %1219 = vmatprep.subr.bf16.mxu0 %v1188
    %1220 = vmatpush1.bf16.msra.mxu0 %v1187
    %1221 = vmatprep.subr.bf16.mxu0 %v1190
    %1222 = vmatpush1.bf16.msra.mxu0 %v1189
    %1223 = vmatprep.subr.bf16.mxu0 %v1192
    %1224 = vmatpush1.bf16.msra.mxu0 %v1191
    %1225 = vmatprep.subr.bf16.mxu0 %v1194
    %1226 = vmatpush1.bf16.msra.mxu0 %v1193
    %1227 = vmatprep.subr.bf16.mxu0 %v1196
    %1228 = vmatpush1.bf16.msra.mxu0 %v1195
    %1229 = vmatprep.subr.bf16.mxu0 0
    %1230 = vmatpush1.bf16.msra.mxu0 0
    %1231 = vmatprep.subr.bf16.mxu0 0
    %1232 = vmatpush1.bf16.msra.mxu0 0
    %1233 = vmatprep.subr.bf16.mxu0 0
    %1234 = vmatpush1.bf16.msra.mxu0 0
    %1235 = vmatprep.subr.bf16.mxu0 0
    %1236 = vmatpush1.bf16.msra.mxu0 0
    %1237 = vmatprep.subr.bf16.mxu0 0
    %1238 = vmatpush1.bf16.msra.mxu0 0
    %1239 = vmatprep.subr.bf16.mxu0 0
    %1240 = vmatpush1.bf16.msra.mxu0 0
    %1241 = vmatprep.subr.bf16.mxu0 0
    %1242 = vmatpush1.bf16.msra.mxu0 0
    %1243 = vmatprep.subr.bf16.mxu0 0
    %1244 = vmatpush1.bf16.msra.mxu0 0
    %1245 = vmatprep.mubr.bf16.mxu0 0
    %1246 = vmatmul.mubr.bf16.gmra.mrb[0].mxu0 %v1085
    %v1247 = vpop.f32.mrb[0].mxu0
    %v1248 = vadd.f32 0.0, %v1247
    %v1249 = vpop.f32.mrb[0].mxu0
    %v1250 = vadd.f32 0.0, %v1249
    %v1251 = vpop.f32.mrb[0].mxu0
    %v1252 = vadd.f32 0.0, %v1251
    %v1253 = vpop.f32.mrb[0].mxu0
    %v1254 = vadd.f32 0.0, %v1253
    %1255 = vmatprep.mubr.bf16.mxu0 0
    %1256 = vmatmul.mubr.bf16.gmra.mrb[0].mxu0 %v1086
    %v1257 = vpop.f32.mrb[0].mxu0
    %v1258 = vadd.f32 0.0, %v1257
    %v1259 = vpop.f32.mrb[0].mxu0
    %v1260 = vadd.f32 0.0, %v1259
    %v1261 = vpop.f32.mrb[0].mxu0
    %v1262 = vadd.f32 0.0, %v1261
    %v1263 = vpop.f32.mrb[0].mxu0
    %v1264 = vadd.f32 0.0, %v1263
    %1265 = vmatprep.mubr.bf16.mxu0 0
    %1266 = vmatmul.mubr.bf16.gmra.mrb[0].mxu0 %v1087
    %v1267 = vpop.f32.mrb[0].mxu0
    %v1268 = vadd.f32 0.0, %v1267
    %v1269 = vpop.f32.mrb[0].mxu0
    %v1270 = vadd.f32 0.0, %v1269
    %v1271 = vpop.f32.mrb[0].mxu0
    %v1272 = vadd.f32 0.0, %v1271
    %v1273 = vpop.f32.mrb[0].mxu0
    %v1274 = vadd.f32 0.0, %v1273
    %1275 = vmatprep.mubr.bf16.mxu0 0
    %1276 = vmatmul.mubr.bf16.gmra.mrb[0].mxu0 %v1088
    %v1277 = vpop.f32.mrb[0].mxu0
    %v1278 = vadd.f32 0.0, %v1277
    %v1279 = vpop.f32.mrb[0].mxu0
    %v1280 = vadd.f32 0.0, %v1279
    %v1281 = vpop.f32.mrb[0].mxu0
    %v1282 = vadd.f32 0.0, %v1281
    %v1283 = vpop.f32.mrb[0].mxu0
    %v1284 = vadd.f32 0.0, %v1283
    %1285 = vmatprep.mubr.bf16.mxu0 0
    %1286 = vmatmul.mubr.bf16.gmra.mrb[0].mxu0 %v1089
    %v1287 = vpop.f32.mrb[0].mxu0
    %v1288 = vadd.f32 0.0, %v1287
    %v1289 = vpop.f32.mrb[0].mxu0
    %v1290 = vadd.f32 0.0, %v1289
    %v1291 = vpop.f32.mrb[0].mxu0
    %v1292 = vadd.f32 0.0, %v1291
    %v1293 = vpop.f32.mrb[0].mxu0
    %v1294 = vadd.f32 0.0, %v1293
    %1295 = vmatprep.mubr.bf16.mxu0 0
    %1296 = vmatmul.mubr.bf16.gmra.mrb[0].mxu0 %v1090
    %v1297 = vpop.f32.mrb[0].mxu0
    %v1298 = vadd.f32 0.0, %v1297
    %v1299 = vpop.f32.mrb[0].mxu0
    %v1300 = vadd.f32 0.0, %v1299
    %v1301 = vpop.f32.mrb[0].mxu0
    %v1302 = vadd.f32 0.0, %v1301
    %v1303 = vpop.f32.mrb[0].mxu0
    %v1304 = vadd.f32 0.0, %v1303
    %1305 = vmatprep.mubr.bf16.mxu0 0
    %1306 = vmatmul.mubr.bf16.gmra.mrb[0].mxu0 %v1091
    %v1307 = vpop.f32.mrb[0].mxu0
    %v1308 = vadd.f32 0.0, %v1307
    %v1309 = vpop.f32.mrb[0].mxu0
    %v1310 = vadd.f32 0.0, %v1309
    %v1311 = vpop.f32.mrb[0].mxu0
    %v1312 = vadd.f32 0.0, %v1311
    %v1313 = vpop.f32.mrb[0].mxu0
    %v1314 = vadd.f32 0.0, %v1313
    %1315 = vmatprep.mubr.bf16.mxu0 0
    %1316 = vmatmul.mubr.bf16.gmra.mrb[0].mxu0 %v1092
    %v1317 = vpop.f32.mrb[0].mxu0
    %v1318 = vadd.f32 0.0, %v1317
    %v1319 = vpop.f32.mrb[0].mxu0
    %v1320 = vadd.f32 0.0, %v1319
    %v1321 = vpop.f32.mrb[0].mxu0
    %v1322 = vadd.f32 0.0, %v1321
    %v1323 = vpop.f32.mrb[0].mxu0
    %v1324 = vadd.f32 0.0, %v1323
    %1325 = vmatprep.mubr.bf16.mxu0 0
    %1326 = vmatmul.mubr.bf16.gmra.mrb[0].mxu0 %v1093
    %v1327 = vpop.f32.mrb[0].mxu0
    %v1328 = vadd.f32 0.0, %v1327
    %v1329 = vpop.f32.mrb[0].mxu0
    %v1330 = vadd.f32 0.0, %v1329
    %v1331 = vpop.f32.mrb[0].mxu0
    %v1332 = vadd.f32 0.0, %v1331
    %v1333 = vpop.f32.mrb[0].mxu0
    %v1334 = vadd.f32 0.0, %v1333
    %1335 = vmatprep.mubr.bf16.mxu0 0
    %1336 = vmatmul.mubr.bf16.gmra.mrb[0].mxu0 %v1094
    %v1337 = vpop.f32.mrb[0].mxu0
    %v1338 = vadd.f32 0.0, %v1337
    %v1339 = vpop.f32.mrb[0].mxu0
    %v1340 = vadd.f32 0.0, %v1339
    %v1341 = vpop.f32.mrb[0].mxu0
    %v1342 = vadd.f32 0.0, %v1341
    %v1343 = vpop.f32.mrb[0].mxu0
    %v1344 = vadd.f32 0.0, %v1343
    %1345 = vmatprep.mubr.bf16.mxu0 0
    %1346 = vmatmul.mubr.bf16.gmra.mrb[0].mxu0 %v1095
    %v1347 = vpop.f32.mrb[0].mxu0
    %v1348 = vadd.f32 0.0, %v1347
    %v1349 = vpop.f32.mrb[0].mxu0
    %v1350 = vadd.f32 0.0, %v1349
    %v1351 = vpop.f32.mrb[0].mxu0
    %v1352 = vadd.f32 0.0, %v1351
    %v1353 = vpop.f32.mrb[0].mxu0
    %v1354 = vadd.f32 0.0, %v1353
    %1355 = vmatprep.mubr.bf16.mxu0 0
    %1356 = vmatmul.mubr.bf16.gmra.mrb[0].mxu0 %v1096
    %v1357 = vpop.f32.mrb[0].mxu0
    %v1358 = vadd.f32 0.0, %v1357
    %v1359 = vpop.f32.mrb[0].mxu0
    %v1360 = vadd.f32 0.0, %v1359
    %v1361 = vpop.f32.mrb[0].mxu0
    %v1362 = vadd.f32 0.0, %v1361
    %v1363 = vpop.f32.mrb[0].mxu0
    %v1364 = vadd.f32 0.0, %v1363
    %1365 = vmatprep.mubr.bf16.mxu0 0
    %1366 = vmatmul.mubr.bf16.gmra.mrb[0].mxu0 %v1097
    %v1367 = vpop.f32.mrb[0].mxu0
    %v1368 = vadd.f32 0.0, %v1367
    %v1369 = vpop.f32.mrb[0].mxu0
    %v1370 = vadd.f32 0.0, %v1369
    %v1371 = vpop.f32.mrb[0].mxu0
    %v1372 = vadd.f32 0.0, %v1371
    %v1373 = vpop.f32.mrb[0].mxu0
    %v1374 = vadd.f32 0.0, %v1373
    %1375 = vmatprep.mubr.bf16.mxu0 0
    %1376 = vmatmul.mubr.bf16.gmra.mrb[0].mxu0 %v1098
    %v1377 = vpop.f32.mrb[0].mxu0
    %v1378 = vadd.f32 0.0, %v1377
    %v1379 = vpop.f32.mrb[0].mxu0
    %v1380 = vadd.f32 0.0, %v1379
    %v1381 = vpop.f32.mrb[0].mxu0
    %v1382 = vadd.f32 0.0, %v1381
    %v1383 = vpop.f32.mrb[0].mxu0
    %v1384 = vadd.f32 0.0, %v1383
    %1385 = vmatprep.mubr.bf16.mxu0 0
    %1386 = vmatmul.mubr.bf16.gmra.mrb[0].mxu0 %v1099
    %v1387 = vpop.f32.mrb[0].mxu0
    %v1388 = vadd.f32 0.0, %v1387
    %v1389 = vpop.f32.mrb[0].mxu0
    %v1390 = vadd.f32 0.0, %v1389
    %v1391 = vpop.f32.mrb[0].mxu0
    %v1392 = vadd.f32 0.0, %v1391
    %v1393 = vpop.f32.mrb[0].mxu0
    %v1394 = vadd.f32 0.0, %v1393
    %1395 = vmatprep.mubr.bf16.mxu0 0
    %1396 = vmatmul.mubr.bf16.gmra.mrb[0].mxu0 %v1100
    %v1397 = vpop.f32.mrb[0].mxu0
    %v1398 = vadd.f32 0.0, %v1397
    %v1399 = vpop.f32.mrb[0].mxu0
    %v1400 = vadd.f32 0.0, %v1399
    %v1401 = vpop.f32.mrb[0].mxu0
    %v1402 = vadd.f32 0.0, %v1401
    %v1403 = vpop.f32.mrb[0].mxu0
    %v1404 = vadd.f32 0.0, %v1403
    %1405 = vdwg.mxu0
    %v1438 = vunpack.c.l.b16 %v180
    %v1439 = vunpack.c.l.b16 %v181
    %v1440 = vunpack.c.l.b16 %v182
    %v1441 = vunpack.c.l.b16 %v183
    %v1442 = vunpack.c.l.b16 %v184
    %v1443 = vunpack.c.l.b16 %v185
    %v1444 = vunpack.c.l.b16 %v186
    %v1445 = vunpack.c.l.b16 %v187
    %v1446 = vunpack.c.l.b16 %v188
    %v1447 = vunpack.c.l.b16 %v189
    %v1448 = vunpack.c.l.b16 %v190
    %v1449 = vunpack.c.l.b16 %v191
    %v1450 = vunpack.c.l.b16 %v192
    %v1451 = vunpack.c.l.b16 %v193
    %v1452 = vunpack.c.l.b16 %v194
    %v1453 = vunpack.c.l.b16 %v195
    %v1454 = vunpack.c.l.b16 %v196
    %v1455 = vunpack.c.l.b16 %v197
    %v1456 = vunpack.c.l.b16 %v198
    %v1457 = vunpack.c.l.b16 %v199
    %v1458 = vunpack.c.l.b16 %v200
    %v1459 = vunpack.c.l.b16 %v201
    %v1460 = vunpack.c.l.b16 %v202
    %v1461 = vunpack.c.l.b16 %v203
    %v1462 = vunpack.c.l.b16 %v204
    %v1463 = vunpack.c.l.b16 %v205
    %v1464 = vunpack.c.l.b16 %v206
    %v1465 = vunpack.c.l.b16 %v207
    %v1466 = vunpack.c.l.b16 %v208
    %v1467 = vunpack.c.l.b16 %v209
    %v1468 = vunpack.c.l.b16 %v210
    %v1469 = vunpack.c.l.b16 %v211
    %v1470 = vpack.c.b16 %v1439, %v1438
    %v1471 = vpack.c.b16 %v1441, %v1440
    %v1472 = vpack.c.b16 %v1443, %v1442
    %v1473 = vpack.c.b16 %v1445, %v1444
    %v1474 = vpack.c.b16 %v1447, %v1446
    %v1475 = vpack.c.b16 %v1449, %v1448
    %v1476 = vpack.c.b16 %v1451, %v1450
    %v1477 = vpack.c.b16 %v1453, %v1452
    %v1478 = vpack.c.b16 %v1455, %v1454
    %v1479 = vpack.c.b16 %v1457, %v1456
    %v1480 = vpack.c.b16 %v1459, %v1458
    %v1481 = vpack.c.b16 %v1461, %v1460
    %v1482 = vpack.c.b16 %v1463, %v1462
    %v1483 = vpack.c.b16 %v1465, %v1464
    %v1484 = vpack.c.b16 %v1467, %v1466
    %v1485 = vpack.c.b16 %v1469, %v1468
    %v1502 = vld [vmem:[%s6] sm:$0xf]
    %v1503 = vld [vmem:[%s6 + $0x4] sm:$0xf]
    %v1504 = vld [vmem:[%s6 + $0x8] sm:$0xf]
    %v1505 = vld [vmem:[%s6 + $0xc] sm:$0xf]
    %v1506 = vld [vmem:[%s6 + $0x10] sm:$0xf]
    %v1507 = vld [vmem:[%s6 + $0x14] sm:$0xf]
    %v1508 = vld [vmem:[%s6 + $0x18] sm:$0xf]
    %v1509 = vld [vmem:[%s6 + $0x1c] sm:$0xf]
    %v1510 = vld [vmem:[%s6 + $0x20] sm:$0xf]
    %v1511 = vld [vmem:[%s6 + $0x24] sm:$0xf]
    %v1512 = vld [vmem:[%s6 + $0x28] sm:$0xf]
    %v1513 = vld [vmem:[%s6 + $0x2c] sm:$0xf]
    %v1514 = vld [vmem:[%s6 + $0x30] sm:$0xf]
    %v1515 = vld [vmem:[%s6 + $0x34] sm:$0xf]
    %v1516 = vld [vmem:[%s6 + $0x38] sm:$0xf]
    %v1517 = vld [vmem:[%s6 + $0x3c] sm:$0xf]
    %v1518 = vld [vmem:[%s6 + $0x40] sm:$0xf]
    %v1519 = vld [vmem:[%s6 + $0x44] sm:$0xf]
    %v1520 = vld [vmem:[%s6 + $0x48] sm:$0xf]
    %v1521 = vld [vmem:[%s6 + $0x4c] sm:$0xf]
    %v1522 = vld [vmem:[%s6 + $0x50] sm:$0xf]
    %v1523 = vld [vmem:[%s6 + $0x54] sm:$0xf]
    %v1524 = vld [vmem:[%s6 + $0x58] sm:$0xf]
    %v1525 = vld [vmem:[%s6 + $0x5c] sm:$0xf]
    %v1526 = vld [vmem:[%s6 + $0x60] sm:$0xf]
    %v1527 = vld [vmem:[%s6 + $0x64] sm:$0xf]
    %v1528 = vld [vmem:[%s6 + $0x68] sm:$0xf]
    %v1529 = vld [vmem:[%s6 + $0x6c] sm:$0xf]
    %v1530 = vld [vmem:[%s6 + $0x70] sm:$0xf]
    %v1531 = vld [vmem:[%s6 + $0x74] sm:$0xf]
    %v1532 = vld [vmem:[%s6 + $0x78] sm:$0xf]
    %v1533 = vld [vmem:[%s6 + $0x7c] sm:$0xf]
    %v1566 = vunpack.c.l.b16 %v1502
    %v1567 = vunpack.c.l.b16 %v1503
    %v1568 = vunpack.c.l.b16 %v1504
    %v1569 = vunpack.c.l.b16 %v1505
    %v1570 = vunpack.c.l.b16 %v1506
    %v1571 = vunpack.c.l.b16 %v1507
    %v1572 = vunpack.c.l.b16 %v1508
    %v1573 = vunpack.c.l.b16 %v1509
    %v1574 = vunpack.c.l.b16 %v1510
    %v1575 = vunpack.c.l.b16 %v1511
    %v1576 = vunpack.c.l.b16 %v1512
    %v1577 = vunpack.c.l.b16 %v1513
    %v1578 = vunpack.c.l.b16 %v1514
    %v1579 = vunpack.c.l.b16 %v1515
    %v1580 = vunpack.c.l.b16 %v1516
    %v1581 = vunpack.c.l.b16 %v1517
    %v1582 = vunpack.c.l.b16 %v1518
    %v1583 = vunpack.c.l.b16 %v1519
    %v1584 = vunpack.c.l.b16 %v1520
    %v1585 = vunpack.c.l.b16 %v1521
    %v1586 = vunpack.c.l.b16 %v1522
    %v1587 = vunpack.c.l.b16 %v1523
    %v1588 = vunpack.c.l.b16 %v1524
    %v1589 = vunpack.c.l.b16 %v1525
    %v1590 = vunpack.c.l.b16 %v1526
    %v1591 = vunpack.c.l.b16 %v1527
    %v1592 = vunpack.c.l.b16 %v1528
    %v1593 = vunpack.c.l.b16 %v1529
    %v1594 = vunpack.c.l.b16 %v1530
    %v1595 = vunpack.c.l.b16 %v1531
    %v1596 = vunpack.c.l.b16 %v1532
    %v1597 = vunpack.c.l.b16 %v1533
    %v1598 = vpack.c.b16 %v1567, %v1566
    %v1599 = vpack.c.b16 %v1569, %v1568
    %v1600 = vpack.c.b16 %v1571, %v1570
    %v1601 = vpack.c.b16 %v1573, %v1572
    %v1602 = vpack.c.b16 %v1575, %v1574
    %v1603 = vpack.c.b16 %v1577, %v1576
    %v1604 = vpack.c.b16 %v1579, %v1578
    %v1605 = vpack.c.b16 %v1581, %v1580
    %v1606 = vpack.c.b16 %v1583, %v1582
    %v1607 = vpack.c.b16 %v1585, %v1584
    %v1608 = vpack.c.b16 %v1587, %v1586
    %v1609 = vpack.c.b16 %v1589, %v1588
    %v1610 = vpack.c.b16 %v1591, %v1590
    %v1611 = vpack.c.b16 %v1593, %v1592
    %v1612 = vpack.c.b16 %v1595, %v1594
    %v1613 = vpack.c.b16 %v1597, %v1596
    %1630 = vmatprep.subr.bf16.mxu0 0
    %1631 = vmatpush1.bf16.msra.mxu0 %v1598
    %1632 = vmatprep.subr.bf16.mxu0 0
    %1633 = vmatpush1.bf16.msra.mxu0 %v1599
    %1634 = vmatprep.subr.bf16.mxu0 0
    %1635 = vmatpush1.bf16.msra.mxu0 %v1600
    %1636 = vmatprep.subr.bf16.mxu0 0
    %1637 = vmatpush1.bf16.msra.mxu0 %v1601
    %1638 = vmatprep.subr.bf16.mxu0 0
    %1639 = vmatpush1.bf16.msra.mxu0 %v1602
    %1640 = vmatprep.subr.bf16.mxu0 0
    %1641 = vmatpush1.bf16.msra.mxu0 %v1603
    %1642 = vmatprep.subr.bf16.mxu0 0
    %1643 = vmatpush1.bf16.msra.mxu0 %v1604
    %1644 = vmatprep.subr.bf16.mxu0 0
    %1645 = vmatpush1.bf16.msra.mxu0 %v1605
    %1646 = vmatprep.subr.bf16.mxu0 0
    %1647 = vmatpush1.bf16.msra.mxu0 %v1606
    %1648 = vmatprep.subr.bf16.mxu0 0
    %1649 = vmatpush1.bf16.msra.mxu0 %v1607
    %1650 = vmatprep.subr.bf16.mxu0 0
    %1651 = vmatpush1.bf16.msra.mxu0 %v1608
    %1652 = vmatprep.subr.bf16.mxu0 0
    %1653 = vmatpush1.bf16.msra.mxu0 %v1609
    %1654 = vmatprep.subr.bf16.mxu0 0
    %1655 = vmatpush1.bf16.msra.mxu0 %v1610
    %1656 = vmatprep.subr.bf16.mxu0 0
    %1657 = vmatpush1.bf16.msra.mxu0 %v1611
    %1658 = vmatprep.subr.bf16.mxu0 0
    %1659 = vmatpush1.bf16.msra.mxu0 %v1612
    %1660 = vmatprep.subr.bf16.mxu0 0
    %1661 = vmatpush1.bf16.msra.mxu0 %v1613
    %1662 = vmatprep.mubr.bf16.mxu0 %v1470
    %1663 = vmatmul.mubr.bf16.gmra.mrb[0].mxu0 %v1101
    %v1664 = vpop.f32.mrb[0].mxu0
    %v1665 = vadd.f32 0.0, %v1664
    %v1666 = vpop.f32.mrb[0].mxu0
    %v1667 = vpop.f32.mrb[0].mxu0
    %v1668 = vadd.f32 0.0, %v1667
    %v1669 = vpop.f32.mrb[0].mxu0
    %1670 = vmatprep.mubr.bf16.mxu0 %v1471
    %1671 = vmatmul.mubr.bf16.gmra.mrb[0].mxu0 %v1102
    %v1672 = vpop.f32.mrb[0].mxu0
    %v1673 = vadd.f32 0.0, %v1672
    %v1674 = vpop.f32.mrb[0].mxu0
    %v1675 = vpop.f32.mrb[0].mxu0
    %v1676 = vadd.f32 0.0, %v1675
    %v1677 = vpop.f32.mrb[0].mxu0
    %1678 = vmatprep.mubr.bf16.mxu0 %v1472
    %1679 = vmatmul.mubr.bf16.gmra.mrb[0].mxu0 %v1103
    %v1680 = vpop.f32.mrb[0].mxu0
    %v1681 = vadd.f32 0.0, %v1680
    %v1682 = vpop.f32.mrb[0].mxu0
    %v1683 = vpop.f32.mrb[0].mxu0
    %v1684 = vadd.f32 0.0, %v1683
    %v1685 = vpop.f32.mrb[0].mxu0
    %1686 = vmatprep.mubr.bf16.mxu0 %v1473
    %1687 = vmatmul.mubr.bf16.gmra.mrb[0].mxu0 %v1104
    %v1688 = vpop.f32.mrb[0].mxu0
    %v1689 = vadd.f32 0.0, %v1688
    %v1690 = vpop.f32.mrb[0].mxu0
    %v1691 = vpop.f32.mrb[0].mxu0
    %v1692 = vadd.f32 0.0, %v1691
    %v1693 = vpop.f32.mrb[0].mxu0
    %1694 = vmatprep.mubr.bf16.mxu0 %v1474
    %1695 = vmatmul.mubr.bf16.gmra.mrb[0].mxu0 %v1105
    %v1696 = vpop.f32.mrb[0].mxu0
    %v1697 = vadd.f32 0.0, %v1696
    %v1698 = vpop.f32.mrb[0].mxu0
    %v1699 = vpop.f32.mrb[0].mxu0
    %v1700 = vadd.f32 0.0, %v1699
    %v1701 = vpop.f32.mrb[0].mxu0
    %1702 = vmatprep.mubr.bf16.mxu0 %v1475
    %1703 = vmatmul.mubr.bf16.gmra.mrb[0].mxu0 %v1106
    %v1704 = vpop.f32.mrb[0].mxu0
    %v1705 = vadd.f32 0.0, %v1704
    %v1706 = vpop.f32.mrb[0].mxu0
    %v1707 = vpop.f32.mrb[0].mxu0
    %v1708 = vadd.f32 0.0, %v1707
    %v1709 = vpop.f32.mrb[0].mxu0
    %1710 = vmatprep.mubr.bf16.mxu0 %v1476
    %1711 = vmatmul.mubr.bf16.gmra.mrb[0].mxu0 %v1107
    %v1712 = vpop.f32.mrb[0].mxu0
    %v1713 = vadd.f32 0.0, %v1712
    %v1714 = vpop.f32.mrb[0].mxu0
    %v1715 = vpop.f32.mrb[0].mxu0
    %v1716 = vadd.f32 0.0, %v1715
    %v1717 = vpop.f32.mrb[0].mxu0
    %1718 = vmatprep.mubr.bf16.mxu0 %v1477
    %1719 = vmatmul.mubr.bf16.gmra.mrb[0].mxu0 %v1108
    %v1720 = vpop.f32.mrb[0].mxu0
    %v1721 = vadd.f32 0.0, %v1720
    %v1722 = vpop.f32.mrb[0].mxu0
    %v1723 = vpop.f32.mrb[0].mxu0
    %v1724 = vadd.f32 0.0, %v1723
    %v1725 = vpop.f32.mrb[0].mxu0
    %1726 = vmatprep.mubr.bf16.mxu0 %v1478
    %1727 = vmatmul.mubr.bf16.gmra.mrb[0].mxu0 %v1109
    %v1728 = vpop.f32.mrb[0].mxu0
    %v1729 = vadd.f32 0.0, %v1728
    %v1730 = vpop.f32.mrb[0].mxu0
    %v1731 = vpop.f32.mrb[0].mxu0
    %v1732 = vadd.f32 0.0, %v1731
    %v1733 = vpop.f32.mrb[0].mxu0
    %1734 = vmatprep.mubr.bf16.mxu0 %v1479
    %1735 = vmatmul.mubr.bf16.gmra.mrb[0].mxu0 %v1110
    %v1736 = vpop.f32.mrb[0].mxu0
    %v1737 = vadd.f32 0.0, %v1736
    %v1738 = vpop.f32.mrb[0].mxu0
    %v1739 = vpop.f32.mrb[0].mxu0
    %v1740 = vadd.f32 0.0, %v1739
    %v1741 = vpop.f32.mrb[0].mxu0
    %1742 = vmatprep.mubr.bf16.mxu0 %v1480
    %1743 = vmatmul.mubr.bf16.gmra.mrb[0].mxu0 %v1111
    %v1744 = vpop.f32.mrb[0].mxu0
    %v1745 = vadd.f32 0.0, %v1744
    %v1746 = vpop.f32.mrb[0].mxu0
    %v1747 = vpop.f32.mrb[0].mxu0
    %v1748 = vadd.f32 0.0, %v1747
    %v1749 = vpop.f32.mrb[0].mxu0
    %1750 = vmatprep.mubr.bf16.mxu0 %v1481
    %1751 = vmatmul.mubr.bf16.gmra.mrb[0].mxu0 %v1112
    %v1752 = vpop.f32.mrb[0].mxu0
    %v1753 = vadd.f32 0.0, %v1752
    %v1754 = vpop.f32.mrb[0].mxu0
    %v1755 = vpop.f32.mrb[0].mxu0
    %v1756 = vadd.f32 0.0, %v1755
    %v1757 = vpop.f32.mrb[0].mxu0
    %1758 = vmatprep.mubr.bf16.mxu0 %v1482
    %1759 = vmatmul.mubr.bf16.gmra.mrb[0].mxu0 %v1113
    %v1760 = vpop.f32.mrb[0].mxu0
    %v1761 = vadd.f32 0.0, %v1760
    %v1762 = vpop.f32.mrb[0].mxu0
    %v1763 = vpop.f32.mrb[0].mxu0
    %v1764 = vadd.f32 0.0, %v1763
    %v1765 = vpop.f32.mrb[0].mxu0
    %1766 = vmatprep.mubr.bf16.mxu0 %v1483
    %1767 = vmatmul.mubr.bf16.gmra.mrb[0].mxu0 %v1114
    %v1768 = vpop.f32.mrb[0].mxu0
    %v1769 = vadd.f32 0.0, %v1768
    %v1770 = vpop.f32.mrb[0].mxu0
    %v1771 = vpop.f32.mrb[0].mxu0
    %v1772 = vadd.f32 0.0, %v1771
    %v1773 = vpop.f32.mrb[0].mxu0
    %1774 = vmatprep.mubr.bf16.mxu0 %v1484
    %1775 = vmatmul.mubr.bf16.gmra.mrb[0].mxu0 %v1115
    %v1776 = vpop.f32.mrb[0].mxu0
    %v1777 = vadd.f32 0.0, %v1776
    %v1778 = vpop.f32.mrb[0].mxu0
    %v1779 = vpop.f32.mrb[0].mxu0
    %v1780 = vadd.f32 0.0, %v1779
    %v1781 = vpop.f32.mrb[0].mxu0
    %1782 = vmatprep.mubr.bf16.mxu0 %v1485
    %1783 = vmatmul.mubr.bf16.gmra.mrb[0].mxu0 %v1116
    %v1784 = vpop.f32.mrb[0].mxu0
    %v1785 = vadd.f32 0.0, %v1784
    %v1786 = vpop.f32.mrb[0].mxu0
    %v1787 = vpop.f32.mrb[0].mxu0
    %v1788 = vadd.f32 0.0, %v1787
    %v1789 = vpop.f32.mrb[0].mxu0
    %1790 = vdwg.mxu0
    %v1791 = vadd.f32 %v1248, %v1665
    %v1792 = vadd.f32 %v1252, %v1668
    %v1793 = vadd.f32 %v1258, %v1673
    %v1794 = vadd.f32 %v1262, %v1676
    %v1795 = vadd.f32 %v1268, %v1681
    %v1796 = vadd.f32 %v1272, %v1684
    %v1797 = vadd.f32 %v1278, %v1689
    %v1798 = vadd.f32 %v1282, %v1692
    %v1799 = vadd.f32 %v1288, %v1697
    %v1800 = vadd.f32 %v1292, %v1700
    %v1801 = vadd.f32 %v1298, %v1705
    %v1802 = vadd.f32 %v1302, %v1708
    %v1803 = vadd.f32 %v1308, %v1713
    %v1804 = vadd.f32 %v1312, %v1716
    %v1805 = vadd.f32 %v1318, %v1721
    %v1806 = vadd.f32 %v1322, %v1724
    %v1807 = vadd.f32 %v1328, %v1729
    %v1808 = vadd.f32 %v1332, %v1732
    %v1809 = vadd.f32 %v1338, %v1737
    %v1810 = vadd.f32 %v1342, %v1740
    %v1811 = vadd.f32 %v1348, %v1745
    %v1812 = vadd.f32 %v1352, %v1748
    %v1813 = vadd.f32 %v1358, %v1753
    %v1814 = vadd.f32 %v1362, %v1756
    %v1815 = vadd.f32 %v1368, %v1761
    %v1816 = vadd.f32 %v1372, %v1764
    %v1817 = vadd.f32 %v1378, %v1769
    %v1818 = vadd.f32 %v1382, %v1772
    %v1819 = vadd.f32 %v1388, %v1777
    %v1820 = vadd.f32 %v1392, %v1780
    %v1821 = vadd.f32 %v1398, %v1785
    %v1822 = vadd.f32 %v1402, %v1788
    %v1823 = vld [vmem:[#allocation6] sm:$0x1]
    %v1825 = vlaneseq
    %v1826 = vshrl.u32 %v1825, 7
    %v1827 = vsub.s32 0, %v1826
    %v1828 = vrot.slane %v1823, %v1827
    %v1830 = vadd.f32 %v1791, %v1828
    %v1831 = vadd.f32 %v1792, %v1828
    %v1832 = vadd.f32 %v1793, %v1828
    %v1833 = vadd.f32 %v1794, %v1828
    %v1834 = vadd.f32 %v1795, %v1828
    %v1835 = vadd.f32 %v1796, %v1828
    %v1836 = vadd.f32 %v1797, %v1828
    %v1837 = vadd.f32 %v1798, %v1828
    %v1838 = vadd.f32 %v1799, %v1828
    %v1839 = vadd.f32 %v1800, %v1828
    %v1840 = vadd.f32 %v1801, %v1828
    %v1841 = vadd.f32 %v1802, %v1828
    %v1842 = vadd.f32 %v1803, %v1828
    %v1843 = vadd.f32 %v1804, %v1828
    %v1844 = vadd.f32 %v1805, %v1828
    %v1845 = vadd.f32 %v1806, %v1828
    %v1846 = vadd.f32 %v1807, %v1828
    %v1847 = vadd.f32 %v1808, %v1828
    %v1848 = vadd.f32 %v1809, %v1828
    %v1849 = vadd.f32 %v1810, %v1828
    %v1850 = vadd.f32 %v1811, %v1828
    %v1851 = vadd.f32 %v1812, %v1828
    %v1852 = vadd.f32 %v1813, %v1828
    %v1853 = vadd.f32 %v1814, %v1828
    %v1854 = vadd.f32 %v1815, %v1828
    %v1855 = vadd.f32 %v1816, %v1828
    %v1856 = vadd.f32 %v1817, %v1828
    %v1857 = vadd.f32 %v1818, %v1828
    %v1858 = vadd.f32 %v1819, %v1828
    %v1859 = vadd.f32 %v1820, %v1828
    %v1860 = vadd.f32 %v1821, %v1828
    %v1861 = vadd.f32 %v1822, %v1828
    %v1862 = vmax.f32 %v1830, 0.0
    %v1863 = vmax.f32 %v1831, 0.0
    %v1864 = vmax.f32 %v1832, 0.0
    %v1865 = vmax.f32 %v1833, 0.0
    %v1866 = vmax.f32 %v1834, 0.0
    %v1867 = vmax.f32 %v1835, 0.0
    %v1868 = vmax.f32 %v1836, 0.0
    %v1869 = vmax.f32 %v1837, 0.0
    %v1870 = vmax.f32 %v1838, 0.0
    %v1871 = vmax.f32 %v1839, 0.0
    %v1872 = vmax.f32 %v1840, 0.0
    %v1873 = vmax.f32 %v1841, 0.0
    %v1874 = vmax.f32 %v1842, 0.0
    %v1875 = vmax.f32 %v1843, 0.0
    %v1876 = vmax.f32 %v1844, 0.0
    %v1877 = vmax.f32 %v1845, 0.0
    %v1878 = vmax.f32 %v1846, 0.0
    %v1879 = vmax.f32 %v1847, 0.0
    %v1880 = vmax.f32 %v1848, 0.0
    %v1881 = vmax.f32 %v1849, 0.0
    %v1882 = vmax.f32 %v1850, 0.0
    %v1883 = vmax.f32 %v1851, 0.0
    %v1884 = vmax.f32 %v1852, 0.0
    %v1885 = vmax.f32 %v1853, 0.0
    %v1886 = vmax.f32 %v1854, 0.0
    %v1887 = vmax.f32 %v1855, 0.0
    %v1888 = vmax.f32 %v1856, 0.0
    %v1889 = vmax.f32 %v1857, 0.0
    %v1890 = vmax.f32 %v1858, 0.0
    %v1891 = vmax.f32 %v1859, 0.0
    %v1892 = vmax.f32 %v1860, 0.0
    %v1893 = vmax.f32 %v1861, 0.0
    %v1894 = vpack.c.bf16 %v1863, %v1862
    %v1895 = vpack.c.bf16 %v1865, %v1864
    %v1896 = vpack.c.bf16 %v1867, %v1866
    %v1897 = vpack.c.bf16 %v1869, %v1868
    %v1898 = vpack.c.bf16 %v1871, %v1870
    %v1899 = vpack.c.bf16 %v1873, %v1872
    %v1900 = vpack.c.bf16 %v1875, %v1874
    %v1901 = vpack.c.bf16 %v1877, %v1876
    %v1902 = vpack.c.bf16 %v1879, %v1878
    %v1903 = vpack.c.bf16 %v1881, %v1880
    %v1904 = vpack.c.bf16 %v1883, %v1882
    %v1905 = vpack.c.bf16 %v1885, %v1884
    %v1906 = vpack.c.bf16 %v1887, %v1886
    %v1907 = vpack.c.bf16 %v1889, %v1888
    %v1908 = vpack.c.bf16 %v1891, %v1890
    %v1909 = vpack.c.bf16 %v1893, %v1892
    %v1910 = vld [vmem:[#allocation8] sm:$0xf]
    %v1911 = vld [vmem:[#allocation8 + $0x4] sm:$0xf]
    %v1912 = vld [vmem:[#allocation8 + $0x8] sm:$0xf]
    %v1913 = vld [vmem:[#allocation8 + $0xc] sm:$0xf]
    %v1914 = vld [vmem:[#allocation8 + $0x10] sm:$0xf]
    %v1915 = vld [vmem:[#allocation8 + $0x14] sm:$0xf]
    %v1916 = vld [vmem:[#allocation8 + $0x18] sm:$0xf]
    %v1917 = vld [vmem:[#allocation8 + $0x1c] sm:$0xf]
    %v1918 = vld [vmem:[#allocation8 + $0x20] sm:$0xf]
    %v1919 = vld [vmem:[#allocation8 + $0x24] sm:$0xf]
    %v1920 = vld [vmem:[#allocation8 + $0x28] sm:$0xf]
    %v1921 = vld [vmem:[#allocation8 + $0x2c] sm:$0xf]
    %v1922 = vld [vmem:[#allocation8 + $0x30] sm:$0xf]
    %v1923 = vld [vmem:[#allocation8 + $0x34] sm:$0xf]
    %v1924 = vld [vmem:[#allocation8 + $0x38] sm:$0xf]
    %v1925 = vld [vmem:[#allocation8 + $0x3c] sm:$0xf]
    %v1926 = vld [vmem:[#allocation9] sm:$0x1]
    %v1928 = vlaneseq
    %v1929 = vshrl.u32 %v1928, 7
    %v1930 = vsub.s32 0, %v1929
    %v1931 = vrot.slane %v1926, %v1930
    %v1949 = vunpack.c.l.b16 %v1910
    %v1950 = vunpack.c.l.b16 %v1911
    %v1951 = vunpack.c.l.b16 %v1912
    %v1952 = vunpack.c.l.b16 %v1913
    %v1953 = vunpack.c.l.b16 %v1914
    %v1954 = vunpack.c.l.b16 %v1915
    %v1955 = vunpack.c.l.b16 %v1916
    %v1956 = vunpack.c.l.b16 %v1917
    %v1957 = vunpack.c.l.b16 %v1918
    %v1958 = vunpack.c.l.b16 %v1919
    %v1959 = vunpack.c.l.b16 %v1920
    %v1960 = vunpack.c.l.b16 %v1921
    %v1961 = vunpack.c.l.b16 %v1922
    %v1962 = vunpack.c.l.b16 %v1923
    %v1963 = vunpack.c.l.b16 %v1924
    %v1964 = vunpack.c.l.b16 %v1925
    %v1965 = vpack.c.b16 %v1950, %v1949
    %v1966 = vpack.c.b16 %v1952, %v1951
    %v1967 = vpack.c.b16 %v1954, %v1953
    %v1968 = vpack.c.b16 %v1956, %v1955
    %v1969 = vpack.c.b16 %v1958, %v1957
    %v1970 = vpack.c.b16 %v1960, %v1959
    %v1971 = vpack.c.b16 %v1962, %v1961
    %v1972 = vpack.c.b16 %v1964, %v1963
    %1981 = vmatprep.subr.bf16.mxu0 0
    %1982 = vmatpush1.bf16.msra.mxu0 %v1965
    %1983 = vmatprep.subr.bf16.mxu0 0
    %1984 = vmatpush1.bf16.msra.mxu0 %v1966
    %1985 = vmatprep.subr.bf16.mxu0 0
    %1986 = vmatpush1.bf16.msra.mxu0 %v1967
    %1987 = vmatprep.subr.bf16.mxu0 0
    %1988 = vmatpush1.bf16.msra.mxu0 %v1968
    %1989 = vmatprep.subr.bf16.mxu0 0
    %1990 = vmatpush1.bf16.msra.mxu0 %v1969
    %1991 = vmatprep.subr.bf16.mxu0 0
    %1992 = vmatpush1.bf16.msra.mxu0 %v1970
    %1993 = vmatprep.subr.bf16.mxu0 0
    %1994 = vmatpush1.bf16.msra.mxu0 %v1971
    %1995 = vmatprep.subr.bf16.mxu0 0
    %1996 = vmatpush1.bf16.msra.mxu0 %v1972
    %1997 = vmatprep.subr.bf16.mxu0 0
    %1998 = vmatpush1.bf16.msra.mxu0 0
    %1999 = vmatprep.subr.bf16.mxu0 0
    %2000 = vmatpush1.bf16.msra.mxu0 0
    %2001 = vmatprep.subr.bf16.mxu0 0
    %2002 = vmatpush1.bf16.msra.mxu0 0
    %2003 = vmatprep.subr.bf16.mxu0 0
    %2004 = vmatpush1.bf16.msra.mxu0 0
    %2005 = vmatprep.subr.bf16.mxu0 0
    %2006 = vmatpush1.bf16.msra.mxu0 0
    %2007 = vmatprep.subr.bf16.mxu0 0
    %2008 = vmatpush1.bf16.msra.mxu0 0
    %2009 = vmatprep.subr.bf16.mxu0 0
    %2010 = vmatpush1.bf16.msra.mxu0 0
    %2011 = vmatprep.subr.bf16.mxu0 0
    %2012 = vmatpush1.bf16.msra.mxu0 0
    %2013 = vmatprep.mubr.bf16.mxu0 0
    %2014 = vmatmul.mubr.bf16.gmra.mrb[0].mxu0 %v1894
    %v2015 = vpop.f32.mrb[0].mxu0
    %v2016 = vadd.f32 %v1931, %v2015
    %v2017 = vpop.f32.mrb[0].mxu0
    %v2018 = vpop.f32.mrb[0].mxu0
    %v2019 = vadd.f32 %v1931, %v2018
    %v2020 = vpop.f32.mrb[0].mxu0
    %2021 = vmatprep.mubr.bf16.mxu0 0
    %2022 = vmatmul.mubr.bf16.gmra.mrb[0].mxu0 %v1895
    %v2023 = vpop.f32.mrb[0].mxu0
    %v2024 = vadd.f32 %v1931, %v2023
    %v2025 = vpop.f32.mrb[0].mxu0
    %v2026 = vpop.f32.mrb[0].mxu0
    %v2027 = vadd.f32 %v1931, %v2026
    %v2028 = vpop.f32.mrb[0].mxu0
    %2029 = vmatprep.mubr.bf16.mxu0 0
    %2030 = vmatmul.mubr.bf16.gmra.mrb[0].mxu0 %v1896
    %v2031 = vpop.f32.mrb[0].mxu0
    %v2032 = vadd.f32 %v1931, %v2031
    %v2033 = vpop.f32.mrb[0].mxu0
    %v2034 = vpop.f32.mrb[0].mxu0
    %v2035 = vadd.f32 %v1931, %v2034
    %v2036 = vpop.f32.mrb[0].mxu0
    %2037 = vmatprep.mubr.bf16.mxu0 0
    %2038 = vmatmul.mubr.bf16.gmra.mrb[0].mxu0 %v1897
    %v2039 = vpop.f32.mrb[0].mxu0
    %v2040 = vadd.f32 %v1931, %v2039
    %v2041 = vpop.f32.mrb[0].mxu0
    %v2042 = vpop.f32.mrb[0].mxu0
    %v2043 = vadd.f32 %v1931, %v2042
    %v2044 = vpop.f32.mrb[0].mxu0
    %2045 = vmatprep.mubr.bf16.mxu0 0
    %2046 = vmatmul.mubr.bf16.gmra.mrb[0].mxu0 %v1898
    %v2047 = vpop.f32.mrb[0].mxu0
    %v2048 = vadd.f32 %v1931, %v2047
    %v2049 = vpop.f32.mrb[0].mxu0
    %v2050 = vpop.f32.mrb[0].mxu0
    %v2051 = vadd.f32 %v1931, %v2050
    %v2052 = vpop.f32.mrb[0].mxu0
    %2053 = vmatprep.mubr.bf16.mxu0 0
    %2054 = vmatmul.mubr.bf16.gmra.mrb[0].mxu0 %v1899
    %v2055 = vpop.f32.mrb[0].mxu0
    %v2056 = vadd.f32 %v1931, %v2055
    %v2057 = vpop.f32.mrb[0].mxu0
    %v2058 = vpop.f32.mrb[0].mxu0
    %v2059 = vadd.f32 %v1931, %v2058
    %v2060 = vpop.f32.mrb[0].mxu0
    %2061 = vmatprep.mubr.bf16.mxu0 0
    %2062 = vmatmul.mubr.bf16.gmra.mrb[0].mxu0 %v1900
    %v2063 = vpop.f32.mrb[0].mxu0
    %v2064 = vadd.f32 %v1931, %v2063
    %v2065 = vpop.f32.mrb[0].mxu0
    %v2066 = vpop.f32.mrb[0].mxu0
    %v2067 = vadd.f32 %v1931, %v2066
    %v2068 = vpop.f32.mrb[0].mxu0
    %2069 = vmatprep.mubr.bf16.mxu0 0
    %2070 = vmatmul.mubr.bf16.gmra.mrb[0].mxu0 %v1901
    %v2071 = vpop.f32.mrb[0].mxu0
    %v2072 = vadd.f32 %v1931, %v2071
    %v2073 = vpop.f32.mrb[0].mxu0
    %v2074 = vpop.f32.mrb[0].mxu0
    %v2075 = vadd.f32 %v1931, %v2074
    %v2076 = vpop.f32.mrb[0].mxu0
    %2077 = vmatprep.mubr.bf16.mxu0 0
    %2078 = vmatmul.mubr.bf16.gmra.mrb[0].mxu0 %v1902
    %v2079 = vpop.f32.mrb[0].mxu0
    %v2080 = vadd.f32 %v1931, %v2079
    %v2081 = vpop.f32.mrb[0].mxu0
    %v2082 = vpop.f32.mrb[0].mxu0
    %v2083 = vadd.f32 %v1931, %v2082
    %v2084 = vpop.f32.mrb[0].mxu0
    %2085 = vmatprep.mubr.bf16.mxu0 0
    %2086 = vmatmul.mubr.bf16.gmra.mrb[0].mxu0 %v1903
    %v2087 = vpop.f32.mrb[0].mxu0
    %v2088 = vadd.f32 %v1931, %v2087
    %v2089 = vpop.f32.mrb[0].mxu0
    %v2090 = vpop.f32.mrb[0].mxu0
    %v2091 = vadd.f32 %v1931, %v2090
    %v2092 = vpop.f32.mrb[0].mxu0
    %2093 = vmatprep.mubr.bf16.mxu0 0
    %2094 = vmatmul.mubr.bf16.gmra.mrb[0].mxu0 %v1904
    %v2095 = vpop.f32.mrb[0].mxu0
    %v2096 = vadd.f32 %v1931, %v2095
    %v2097 = vpop.f32.mrb[0].mxu0
    %v2098 = vpop.f32.mrb[0].mxu0
    %v2099 = vadd.f32 %v1931, %v2098
    %v2100 = vpop.f32.mrb[0].mxu0
    %2101 = vmatprep.mubr.bf16.mxu0 0
    %2102 = vmatmul.mubr.bf16.gmra.mrb[0].mxu0 %v1905
    %v2103 = vpop.f32.mrb[0].mxu0
    %v2104 = vadd.f32 %v1931, %v2103
    %v2105 = vpop.f32.mrb[0].mxu0
    %v2106 = vpop.f32.mrb[0].mxu0
    %v2107 = vadd.f32 %v1931, %v2106
    %v2108 = vpop.f32.mrb[0].mxu0
    %2109 = vmatprep.mubr.bf16.mxu0 0
    %2110 = vmatmul.mubr.bf16.gmra.mrb[0].mxu0 %v1906
    %v2111 = vpop.f32.mrb[0].mxu0
    %v2112 = vadd.f32 %v1931, %v2111
    %v2113 = vpop.f32.mrb[0].mxu0
    %v2114 = vpop.f32.mrb[0].mxu0
    %v2115 = vadd.f32 %v1931, %v2114
    %v2116 = vpop.f32.mrb[0].mxu0
    %2117 = vmatprep.mubr.bf16.mxu0 0
    %2118 = vmatmul.mubr.bf16.gmra.mrb[0].mxu0 %v1907
    %v2119 = vpop.f32.mrb[0].mxu0
    %v2120 = vadd.f32 %v1931, %v2119
    %v2121 = vpop.f32.mrb[0].mxu0
    %v2122 = vpop.f32.mrb[0].mxu0
    %v2123 = vadd.f32 %v1931, %v2122
    %v2124 = vpop.f32.mrb[0].mxu0
    %2125 = vmatprep.mubr.bf16.mxu0 0
    %2126 = vmatmul.mubr.bf16.gmra.mrb[0].mxu0 %v1908
    %v2127 = vpop.f32.mrb[0].mxu0
    %v2128 = vadd.f32 %v1931, %v2127
    %v2129 = vpop.f32.mrb[0].mxu0
    %v2130 = vpop.f32.mrb[0].mxu0
    %v2131 = vadd.f32 %v1931, %v2130
    %v2132 = vpop.f32.mrb[0].mxu0
    %2133 = vmatprep.mubr.bf16.mxu0 0
    %2134 = vmatmul.mubr.bf16.gmra.mrb[0].mxu0 %v1909
    %v2135 = vpop.f32.mrb[0].mxu0
    %v2136 = vadd.f32 %v1931, %v2135
    %v2137 = vpop.f32.mrb[0].mxu0
    %v2138 = vpop.f32.mrb[0].mxu0
    %v2139 = vadd.f32 %v1931, %v2138
    %v2140 = vpop.f32.mrb[0].mxu0
    %2141 = vdwg.mxu0
    %2142 = vst [vmem:[#allocation19] sm:$0xff] %v2016
    %2143 = vst [vmem:[#allocation19 + $0x8] sm:$0xff] %v2019
    %2144 = vst [vmem:[#allocation19 + $0x10] sm:$0xff] %v2024
    %2145 = vst [vmem:[#allocation19 + $0x18] sm:$0xff] %v2027
    %2146 = vst [vmem:[#allocation19 + $0x20] sm:$0xff] %v2032
    %2147 = vst [vmem:[#allocation19 + $0x28] sm:$0xff] %v2035
    %2148 = vst [vmem:[#allocation19 + $0x30] sm:$0xff] %v2040
    %2149 = vst [vmem:[#allocation19 + $0x38] sm:$0xff] %v2043
    %2150 = vst [vmem:[#allocation19 + $0x40] sm:$0xff] %v2048
    %2151 = vst [vmem:[#allocation19 + $0x48] sm:$0xff] %v2051
    %2152 = vst [vmem:[#allocation19 + $0x50] sm:$0xff] %v2056
    %2153 = vst [vmem:[#allocation19 + $0x58] sm:$0xff] %v2059
    %2154 = vst [vmem:[#allocation19 + $0x60] sm:$0xff] %v2064
    %2155 = vst [vmem:[#allocation19 + $0x68] sm:$0xff] %v2067
    %2156 = vst [vmem:[#allocation19 + $0x70] sm:$0xff] %v2072
    %2157 = vst [vmem:[#allocation19 + $0x78] sm:$0xff] %v2075
    %2158 = vst [vmem:[#allocation19 + $0x80] sm:$0xff] %v2080
    %2159 = vst [vmem:[#allocation19 + $0x88] sm:$0xff] %v2083
    %2160 = vst [vmem:[#allocation19 + $0x90] sm:$0xff] %v2088
    %2161 = vst [vmem:[#allocation19 + $0x98] sm:$0xff] %v2091
    %2162 = vst [vmem:[#allocation19 + $0xa0] sm:$0xff] %v2096
    %2163 = vst [vmem:[#allocation19 + $0xa8] sm:$0xff] %v2099
    %2164 = vst [vmem:[#allocation19 + $0xb0] sm:$0xff] %v2104
    %2165 = vst [vmem:[#allocation19 + $0xb8] sm:$0xff] %v2107
    %2166 = vst [vmem:[#allocation19 + $0xc0] sm:$0xff] %v2112
    %2167 = vst [vmem:[#allocation19 + $0xc8] sm:$0xff] %v2115
    %2168 = vst [vmem:[#allocation19 + $0xd0] sm:$0xff] %v2120
    %2169 = vst [vmem:[#allocation19 + $0xd8] sm:$0xff] %v2123
    %2170 = vst [vmem:[#allocation19 + $0xe0] sm:$0xff] %v2128
    %2171 = vst [vmem:[#allocation19 + $0xe8] sm:$0xff] %v2131
    %2172 = vst [vmem:[#allocation19 + $0xf0] sm:$0xff] %v2136
    %2173 = vst [vmem:[#allocation19 + $0xf8] sm:$0xff] %v2139
    %v2174 = vpack.c.bf16 %v2019, %v2016
    %v2175 = vpack.c.bf16 %v2027, %v2024
    %v2176 = vpack.c.bf16 %v2035, %v2032
    %v2177 = vpack.c.bf16 %v2043, %v2040
    %v2178 = vpack.c.bf16 %v2051, %v2048
    %v2179 = vpack.c.bf16 %v2059, %v2056
    %v2180 = vpack.c.bf16 %v2067, %v2064
    %v2181 = vpack.c.bf16 %v2075, %v2072
    %v2182 = vpack.c.bf16 %v2083, %v2080
    %v2183 = vpack.c.bf16 %v2091, %v2088
    %v2184 = vpack.c.bf16 %v2099, %v2096
    %v2185 = vpack.c.bf16 %v2107, %v2104
    %v2186 = vpack.c.bf16 %v2115, %v2112
    %v2187 = vpack.c.bf16 %v2123, %v2120
    %v2188 = vpack.c.bf16 %v2131, %v2128
    %v2189 = vpack.c.bf16 %v2139, %v2136
    %v2190 = vld [vmem:[#allocation11] sm:$0xf]
    %v2191 = vld [vmem:[#allocation11 + $0x4] sm:$0xf]
    %v2192 = vld [vmem:[#allocation11 + $0x8] sm:$0xf]
    %v2193 = vld [vmem:[#allocation11 + $0xc] sm:$0xf]
    %v2194 = vld [vmem:[#allocation11 + $0x10] sm:$0xf]
    %v2195 = vld [vmem:[#allocation11 + $0x14] sm:$0xf]
    %v2196 = vld [vmem:[#allocation11 + $0x18] sm:$0xf]
    %v2197 = vld [vmem:[#allocation11 + $0x1c] sm:$0xf]
    %v2198 = vld [vmem:[#allocation11 + $0x20] sm:$0xf]
    %v2199 = vld [vmem:[#allocation11 + $0x24] sm:$0xf]
    %v2200 = vld [vmem:[#allocation11 + $0x28] sm:$0xf]
    %v2201 = vld [vmem:[#allocation11 + $0x2c] sm:$0xf]
    %v2202 = vld [vmem:[#allocation11 + $0x30] sm:$0xf]
    %v2203 = vld [vmem:[#allocation11 + $0x34] sm:$0xf]
    %v2204 = vld [vmem:[#allocation11 + $0x38] sm:$0xf]
    %v2205 = vld [vmem:[#allocation11 + $0x3c] sm:$0xf]
    %v2222 = vunpack.c.l.b16 %v2190
    %v2223 = vunpack.c.l.b16 %v2191
    %v2224 = vunpack.c.l.b16 %v2192
    %v2225 = vunpack.c.l.b16 %v2193
    %v2226 = vunpack.c.l.b16 %v2194
    %v2227 = vunpack.c.l.b16 %v2195
    %v2228 = vunpack.c.l.b16 %v2196
    %v2229 = vunpack.c.l.b16 %v2197
    %v2230 = vunpack.c.l.b16 %v2198
    %v2231 = vunpack.c.l.b16 %v2199
    %v2232 = vunpack.c.l.b16 %v2200
    %v2233 = vunpack.c.l.b16 %v2201
    %v2234 = vunpack.c.l.b16 %v2202
    %v2235 = vunpack.c.l.b16 %v2203
    %v2236 = vunpack.c.l.b16 %v2204
    %v2237 = vunpack.c.l.b16 %v2205
    %v2238 = vpack.c.b16 %v2223, %v2222
    %v2239 = vpack.c.b16 %v2225, %v2224
    %v2240 = vpack.c.b16 %v2227, %v2226
    %v2241 = vpack.c.b16 %v2229, %v2228
    %v2242 = vpack.c.b16 %v2231, %v2230
    %v2243 = vpack.c.b16 %v2233, %v2232
    %v2244 = vpack.c.b16 %v2235, %v2234
    %v2245 = vpack.c.b16 %v2237, %v2236
    %2254 = vmatprep.subr.bf16.mxu0 0
    %2255 = vmatpush1.bf16.msra.mxu0 %v2238
    %2256 = vmatprep.subr.bf16.mxu0 0
    %2257 = vmatpush1.bf16.msra.mxu0 %v2239
    %2258 = vmatprep.subr.bf16.mxu0 0
    %2259 = vmatpush1.bf16.msra.mxu0 %v2240
    %2260 = vmatprep.subr.bf16.mxu0 0
    %2261 = vmatpush1.bf16.msra.mxu0 %v2241
    %2262 = vmatprep.subr.bf16.mxu0 0
    %2263 = vmatpush1.bf16.msra.mxu0 %v2242
    %2264 = vmatprep.subr.bf16.mxu0 0
    %2265 = vmatpush1.bf16.msra.mxu0 %v2243
    %2266 = vmatprep.subr.bf16.mxu0 0
    %2267 = vmatpush1.bf16.msra.mxu0 %v2244
    %2268 = vmatprep.subr.bf16.mxu0 0
    %2269 = vmatpush1.bf16.msra.mxu0 %v2245
    %2270 = vmatprep.subr.bf16.mxu0 0
    %2271 = vmatpush1.bf16.msra.mxu0 0
    %2272 = vmatprep.subr.bf16.mxu0 0
    %2273 = vmatpush1.bf16.msra.mxu0 0
    %2274 = vmatprep.subr.bf16.mxu0 0
    %2275 = vmatpush1.bf16.msra.mxu0 0
    %2276 = vmatprep.subr.bf16.mxu0 0
    %2277 = vmatpush1.bf16.msra.mxu0 0
    %2278 = vmatprep.subr.bf16.mxu0 0
    %2279 = vmatpush1.bf16.msra.mxu0 0
    %2280 = vmatprep.subr.bf16.mxu0 0
    %2281 = vmatpush1.bf16.msra.mxu0 0
    %2282 = vmatprep.subr.bf16.mxu0 0
    %2283 = vmatpush1.bf16.msra.mxu0 0
    %2284 = vmatprep.subr.bf16.mxu0 0
    %2285 = vmatpush1.bf16.msra.mxu0 0
    %2286 = vmatprep.mubr.bf16.mxu0 0
    %2287 = vmatmul.mubr.bf16.gmra.mrb[0].mxu0 %v2174
    %v2288 = vpop.f32.mrb[0].mxu0
    %v2289 = vadd.f32 0.0, %v2288
    %v2290 = vpop.f32.mrb[0].mxu0
    %v2291 = vpop.f32.mrb[0].mxu0
    %v2292 = vadd.f32 0.0, %v2291
    %v2293 = vpop.f32.mrb[0].mxu0
    %2294 = vmatprep.mubr.bf16.mxu0 0
    %2295 = vmatmul.mubr.bf16.gmra.mrb[0].mxu0 %v2175
    %v2296 = vpop.f32.mrb[0].mxu0
    %v2297 = vadd.f32 0.0, %v2296
    %v2298 = vpop.f32.mrb[0].mxu0
    %v2299 = vpop.f32.mrb[0].mxu0
    %v2300 = vadd.f32 0.0, %v2299
    %v2301 = vpop.f32.mrb[0].mxu0
    %2302 = vmatprep.mubr.bf16.mxu0 0
    %2303 = vmatmul.mubr.bf16.gmra.mrb[0].mxu0 %v2176
    %v2304 = vpop.f32.mrb[0].mxu0
    %v2305 = vadd.f32 0.0, %v2304
    %v2306 = vpop.f32.mrb[0].mxu0
    %v2307 = vpop.f32.mrb[0].mxu0
    %v2308 = vadd.f32 0.0, %v2307
    %v2309 = vpop.f32.mrb[0].mxu0
    %2310 = vmatprep.mubr.bf16.mxu0 0
    %2311 = vmatmul.mubr.bf16.gmra.mrb[0].mxu0 %v2177
    %v2312 = vpop.f32.mrb[0].mxu0
    %v2313 = vadd.f32 0.0, %v2312
    %v2314 = vpop.f32.mrb[0].mxu0
    %v2315 = vpop.f32.mrb[0].mxu0
    %v2316 = vadd.f32 0.0, %v2315
    %v2317 = vpop.f32.mrb[0].mxu0
    %2318 = vmatprep.mubr.bf16.mxu0 0
    %2319 = vmatmul.mubr.bf16.gmra.mrb[0].mxu0 %v2178
    %v2320 = vpop.f32.mrb[0].mxu0
    %v2321 = vadd.f32 0.0, %v2320
    %v2322 = vpop.f32.mrb[0].mxu0
    %v2323 = vpop.f32.mrb[0].mxu0
    %v2324 = vadd.f32 0.0, %v2323
    %v2325 = vpop.f32.mrb[0].mxu0
    %2326 = vmatprep.mubr.bf16.mxu0 0
    %2327 = vmatmul.mubr.bf16.gmra.mrb[0].mxu0 %v2179
    %v2328 = vpop.f32.mrb[0].mxu0
    %v2329 = vadd.f32 0.0, %v2328
    %v2330 = vpop.f32.mrb[0].mxu0
    %v2331 = vpop.f32.mrb[0].mxu0
    %v2332 = vadd.f32 0.0, %v2331
    %v2333 = vpop.f32.mrb[0].mxu0
    %2334 = vmatprep.mubr.bf16.mxu0 0
    %2335 = vmatmul.mubr.bf16.gmra.mrb[0].mxu0 %v2180
    %v2336 = vpop.f32.mrb[0].mxu0
    %v2337 = vadd.f32 0.0, %v2336
    %v2338 = vpop.f32.mrb[0].mxu0
    %v2339 = vpop.f32.mrb[0].mxu0
    %v2340 = vadd.f32 0.0, %v2339
    %v2341 = vpop.f32.mrb[0].mxu0
    %2342 = vmatprep.mubr.bf16.mxu0 0
    %2343 = vmatmul.mubr.bf16.gmra.mrb[0].mxu0 %v2181
    %v2344 = vpop.f32.mrb[0].mxu0
    %v2345 = vadd.f32 0.0, %v2344
    %v2346 = vpop.f32.mrb[0].mxu0
    %v2347 = vpop.f32.mrb[0].mxu0
    %v2348 = vadd.f32 0.0, %v2347
    %v2349 = vpop.f32.mrb[0].mxu0
    %2350 = vmatprep.mubr.bf16.mxu0 0
    %2351 = vmatmul.mubr.bf16.gmra.mrb[0].mxu0 %v2182
    %v2352 = vpop.f32.mrb[0].mxu0
    %v2353 = vadd.f32 0.0, %v2352
    %v2354 = vpop.f32.mrb[0].mxu0
    %v2355 = vpop.f32.mrb[0].mxu0
    %v2356 = vadd.f32 0.0, %v2355
    %v2357 = vpop.f32.mrb[0].mxu0
    %2358 = vmatprep.mubr.bf16.mxu0 0
    %2359 = vmatmul.mubr.bf16.gmra.mrb[0].mxu0 %v2183
    %v2360 = vpop.f32.mrb[0].mxu0
    %v2361 = vadd.f32 0.0, %v2360
    %v2362 = vpop.f32.mrb[0].mxu0
    %v2363 = vpop.f32.mrb[0].mxu0
    %v2364 = vadd.f32 0.0, %v2363
    %v2365 = vpop.f32.mrb[0].mxu0
    %2366 = vmatprep.mubr.bf16.mxu0 0
    %2367 = vmatmul.mubr.bf16.gmra.mrb[0].mxu0 %v2184
    %v2368 = vpop.f32.mrb[0].mxu0
    %v2369 = vadd.f32 0.0, %v2368
    %v2370 = vpop.f32.mrb[0].mxu0
    %v2371 = vpop.f32.mrb[0].mxu0
    %v2372 = vadd.f32 0.0, %v2371
    %v2373 = vpop.f32.mrb[0].mxu0
    %2374 = vmatprep.mubr.bf16.mxu0 0
    %2375 = vmatmul.mubr.bf16.gmra.mrb[0].mxu0 %v2185
    %v2376 = vpop.f32.mrb[0].mxu0
    %v2377 = vadd.f32 0.0, %v2376
    %v2378 = vpop.f32.mrb[0].mxu0
    %v2379 = vpop.f32.mrb[0].mxu0
    %v2380 = vadd.f32 0.0, %v2379
    %v2381 = vpop.f32.mrb[0].mxu0
    %2382 = vmatprep.mubr.bf16.mxu0 0
    %2383 = vmatmul.mubr.bf16.gmra.mrb[0].mxu0 %v2186
    %v2384 = vpop.f32.mrb[0].mxu0
    %v2385 = vadd.f32 0.0, %v2384
    %v2386 = vpop.f32.mrb[0].mxu0
    %v2387 = vpop.f32.mrb[0].mxu0
    %v2388 = vadd.f32 0.0, %v2387
    %v2389 = vpop.f32.mrb[0].mxu0
    %2390 = vmatprep.mubr.bf16.mxu0 0
    %2391 = vmatmul.mubr.bf16.gmra.mrb[0].mxu0 %v2187
    %v2392 = vpop.f32.mrb[0].mxu0
    %v2393 = vadd.f32 0.0, %v2392
    %v2394 = vpop.f32.mrb[0].mxu0
    %v2395 = vpop.f32.mrb[0].mxu0
    %v2396 = vadd.f32 0.0, %v2395
    %v2397 = vpop.f32.mrb[0].mxu0
    %2398 = vmatprep.mubr.bf16.mxu0 0
    %2399 = vmatmul.mubr.bf16.gmra.mrb[0].mxu0 %v2188
    %v2400 = vpop.f32.mrb[0].mxu0
    %v2401 = vadd.f32 0.0, %v2400
    %v2402 = vpop.f32.mrb[0].mxu0
    %v2403 = vpop.f32.mrb[0].mxu0
    %v2404 = vadd.f32 0.0, %v2403
    %v2405 = vpop.f32.mrb[0].mxu0
    %2406 = vmatprep.mubr.bf16.mxu0 0
    %2407 = vmatmul.mubr.bf16.gmra.mrb[0].mxu0 %v2189
    %v2408 = vpop.f32.mrb[0].mxu0
    %v2409 = vadd.f32 0.0, %v2408
    %v2410 = vpop.f32.mrb[0].mxu0
    %v2411 = vpop.f32.mrb[0].mxu0
    %v2412 = vadd.f32 0.0, %v2411
    %v2413 = vpop.f32.mrb[0].mxu0
    %2414 = vdwg.mxu0
    %v2415 = vadd.f32 %v1250, %v2289
    %v2416 = vadd.f32 %v1254, %v2292
    %v2417 = vadd.f32 %v1260, %v2297
    %v2418 = vadd.f32 %v1264, %v2300
    %v2419 = vadd.f32 %v1270, %v2305
    %v2420 = vadd.f32 %v1274, %v2308
    %v2421 = vadd.f32 %v1280, %v2313
    %v2422 = vadd.f32 %v1284, %v2316
    %v2423 = vadd.f32 %v1290, %v2321
    %v2424 = vadd.f32 %v1294, %v2324
    %v2425 = vadd.f32 %v1300, %v2329
    %v2426 = vadd.f32 %v1304, %v2332
    %v2427 = vadd.f32 %v1310, %v2337
    %v2428 = vadd.f32 %v1314, %v2340
    %v2429 = vadd.f32 %v1320, %v2345
    %v2430 = vadd.f32 %v1324, %v2348
    %v2431 = vadd.f32 %v1330, %v2353
    %v2432 = vadd.f32 %v1334, %v2356
    %v2433 = vadd.f32 %v1340, %v2361
    %v2434 = vadd.f32 %v1344, %v2364
    %v2435 = vadd.f32 %v1350, %v2369
    %v2436 = vadd.f32 %v1354, %v2372
    %v2437 = vadd.f32 %v1360, %v2377
    %v2438 = vadd.f32 %v1364, %v2380
    %v2439 = vadd.f32 %v1370, %v2385
    %v2440 = vadd.f32 %v1374, %v2388
    %v2441 = vadd.f32 %v1380, %v2393
    %v2442 = vadd.f32 %v1384, %v2396
    %v2443 = vadd.f32 %v1390, %v2401
    %v2444 = vadd.f32 %v1394, %v2404
    %v2445 = vadd.f32 %v1400, %v2409
    %v2446 = vadd.f32 %v1404, %v2412
    %v2447 = vld [vmem:[#allocation12] sm:$0x1]
    %v2449 = vlaneseq
    %v2450 = vshrl.u32 %v2449, 7
    %v2451 = vsub.s32 0, %v2450
    %v2452 = vrot.slane %v2447, %v2451
    %v2454 = vadd.f32 %v2415, %v2452
    %v2455 = vadd.f32 %v2416, %v2452
    %v2456 = vadd.f32 %v2417, %v2452
    %v2457 = vadd.f32 %v2418, %v2452
    %v2458 = vadd.f32 %v2419, %v2452
    %v2459 = vadd.f32 %v2420, %v2452
    %v2460 = vadd.f32 %v2421, %v2452
    %v2461 = vadd.f32 %v2422, %v2452
    %v2462 = vadd.f32 %v2423, %v2452
    %v2463 = vadd.f32 %v2424, %v2452
    %v2464 = vadd.f32 %v2425, %v2452
    %v2465 = vadd.f32 %v2426, %v2452
    %v2466 = vadd.f32 %v2427, %v2452
    %v2467 = vadd.f32 %v2428, %v2452
    %v2468 = vadd.f32 %v2429, %v2452
    %v2469 = vadd.f32 %v2430, %v2452
    %v2470 = vadd.f32 %v2431, %v2452
    %v2471 = vadd.f32 %v2432, %v2452
    %v2472 = vadd.f32 %v2433, %v2452
    %v2473 = vadd.f32 %v2434, %v2452
    %v2474 = vadd.f32 %v2435, %v2452
    %v2475 = vadd.f32 %v2436, %v2452
    %v2476 = vadd.f32 %v2437, %v2452
    %v2477 = vadd.f32 %v2438, %v2452
    %v2478 = vadd.f32 %v2439, %v2452
    %v2479 = vadd.f32 %v2440, %v2452
    %v2480 = vadd.f32 %v2441, %v2452
    %v2481 = vadd.f32 %v2442, %v2452
    %v2482 = vadd.f32 %v2443, %v2452
    %v2483 = vadd.f32 %v2444, %v2452
    %v2484 = vadd.f32 %v2445, %v2452
    %v2485 = vadd.f32 %v2446, %v2452
    %v2486 = vmax.f32 %v2454, 0.0
    %v2487 = vmax.f32 %v2455, 0.0
    %v2488 = vmax.f32 %v2456, 0.0
    %v2489 = vmax.f32 %v2457, 0.0
    %v2490 = vmax.f32 %v2458, 0.0
    %v2491 = vmax.f32 %v2459, 0.0
    %v2492 = vmax.f32 %v2460, 0.0
    %v2493 = vmax.f32 %v2461, 0.0
    %v2494 = vmax.f32 %v2462, 0.0
    %v2495 = vmax.f32 %v2463, 0.0
    %v2496 = vmax.f32 %v2464, 0.0
    %v2497 = vmax.f32 %v2465, 0.0
    %v2498 = vmax.f32 %v2466, 0.0
    %v2499 = vmax.f32 %v2467, 0.0
    %v2500 = vmax.f32 %v2468, 0.0
    %v2501 = vmax.f32 %v2469, 0.0
    %v2502 = vmax.f32 %v2470, 0.0
    %v2503 = vmax.f32 %v2471, 0.0
    %v2504 = vmax.f32 %v2472, 0.0
    %v2505 = vmax.f32 %v2473, 0.0
    %v2506 = vmax.f32 %v2474, 0.0
    %v2507 = vmax.f32 %v2475, 0.0
    %v2508 = vmax.f32 %v2476, 0.0
    %v2509 = vmax.f32 %v2477, 0.0
    %v2510 = vmax.f32 %v2478, 0.0
    %v2511 = vmax.f32 %v2479, 0.0
    %v2512 = vmax.f32 %v2480, 0.0
    %v2513 = vmax.f32 %v2481, 0.0
    %v2514 = vmax.f32 %v2482, 0.0
    %v2515 = vmax.f32 %v2483, 0.0
    %v2516 = vmax.f32 %v2484, 0.0
    %v2517 = vmax.f32 %v2485, 0.0
    %v2518 = vpack.c.bf16 %v2487, %v2486
    %v2519 = vpack.c.bf16 %v2489, %v2488
    %v2520 = vpack.c.bf16 %v2491, %v2490
    %v2521 = vpack.c.bf16 %v2493, %v2492
    %v2522 = vpack.c.bf16 %v2495, %v2494
    %v2523 = vpack.c.bf16 %v2497, %v2496
    %v2524 = vpack.c.bf16 %v2499, %v2498
    %v2525 = vpack.c.bf16 %v2501, %v2500
    %v2526 = vpack.c.bf16 %v2503, %v2502
    %v2527 = vpack.c.bf16 %v2505, %v2504
    %v2528 = vpack.c.bf16 %v2507, %v2506
    %v2529 = vpack.c.bf16 %v2509, %v2508
    %v2530 = vpack.c.bf16 %v2511, %v2510
    %v2531 = vpack.c.bf16 %v2513, %v2512
    %v2532 = vpack.c.bf16 %v2515, %v2514
    %v2533 = vpack.c.bf16 %v2517, %v2516
    %v2534 = vld [vmem:[#allocation14] sm:$0xf]
    %v2535 = vld [vmem:[#allocation14 + $0x4] sm:$0xf]
    %v2536 = vld [vmem:[#allocation14 + $0x8] sm:$0xf]
    %v2537 = vld [vmem:[#allocation14 + $0xc] sm:$0xf]
    %v2538 = vld [vmem:[#allocation14 + $0x10] sm:$0xf]
    %v2539 = vld [vmem:[#allocation14 + $0x14] sm:$0xf]
    %v2540 = vld [vmem:[#allocation14 + $0x18] sm:$0xf]
    %v2541 = vld [vmem:[#allocation14 + $0x1c] sm:$0xf]
    %v2542 = vld [vmem:[#allocation14 + $0x20] sm:$0xf]
    %v2543 = vld [vmem:[#allocation14 + $0x24] sm:$0xf]
    %v2544 = vld [vmem:[#allocation14 + $0x28] sm:$0xf]
    %v2545 = vld [vmem:[#allocation14 + $0x2c] sm:$0xf]
    %v2546 = vld [vmem:[#allocation14 + $0x30] sm:$0xf]
    %v2547 = vld [vmem:[#allocation14 + $0x34] sm:$0xf]
    %v2548 = vld [vmem:[#allocation14 + $0x38] sm:$0xf]
    %v2549 = vld [vmem:[#allocation14 + $0x3c] sm:$0xf]
    %v2550 = vld [vmem:[#allocation15] sm:$0x1]
    %v2552 = vlaneseq
    %v2553 = vshrl.u32 %v2552, 7
    %v2554 = vsub.s32 0, %v2553
    %v2555 = vrot.slane %v2550, %v2554
    %v2573 = vunpack.c.l.b16 %v2534
    %v2574 = vunpack.c.l.b16 %v2535
    %v2575 = vunpack.c.l.b16 %v2536
    %v2576 = vunpack.c.l.b16 %v2537
    %v2577 = vunpack.c.l.b16 %v2538
    %v2578 = vunpack.c.l.b16 %v2539
    %v2579 = vunpack.c.l.b16 %v2540
    %v2580 = vunpack.c.l.b16 %v2541
    %v2581 = vunpack.c.l.b16 %v2542
    %v2582 = vunpack.c.l.b16 %v2543
    %v2583 = vunpack.c.l.b16 %v2544
    %v2584 = vunpack.c.l.b16 %v2545
    %v2585 = vunpack.c.l.b16 %v2546
    %v2586 = vunpack.c.l.b16 %v2547
    %v2587 = vunpack.c.l.b16 %v2548
    %v2588 = vunpack.c.l.b16 %v2549
    %v2589 = vpack.c.b16 %v2574, %v2573
    %v2590 = vpack.c.b16 %v2576, %v2575
    %v2591 = vpack.c.b16 %v2578, %v2577
    %v2592 = vpack.c.b16 %v2580, %v2579
    %v2593 = vpack.c.b16 %v2582, %v2581
    %v2594 = vpack.c.b16 %v2584, %v2583
    %v2595 = vpack.c.b16 %v2586, %v2585
    %v2596 = vpack.c.b16 %v2588, %v2587
    %2605 = vmatprep.subr.bf16.mxu0 0
    %2606 = vmatpush1.bf16.msra.mxu0 %v2589
    %2607 = vmatprep.subr.bf16.mxu0 0
    %2608 = vmatpush1.bf16.msra.mxu0 %v2590
    %2609 = vmatprep.subr.bf16.mxu0 0
    %2610 = vmatpush1.bf16.msra.mxu0 %v2591
    %2611 = vmatprep.subr.bf16.mxu0 0
    %2612 = vmatpush1.bf16.msra.mxu0 %v2592
    %2613 = vmatprep.subr.bf16.mxu0 0
    %2614 = vmatpush1.bf16.msra.mxu0 %v2593
    %2615 = vmatprep.subr.bf16.mxu0 0
    %2616 = vmatpush1.bf16.msra.mxu0 %v2594
    %2617 = vmatprep.subr.bf16.mxu0 0
    %2618 = vmatpush1.bf16.msra.mxu0 %v2595
    %2619 = vmatprep.subr.bf16.mxu0 0
    %2620 = vmatpush1.bf16.msra.mxu0 %v2596
    %2621 = vmatprep.subr.bf16.mxu0 0
    %2622 = vmatpush1.bf16.msra.mxu0 0
    %2623 = vmatprep.subr.bf16.mxu0 0
    %2624 = vmatpush1.bf16.msra.mxu0 0
    %2625 = vmatprep.subr.bf16.mxu0 0
    %2626 = vmatpush1.bf16.msra.mxu0 0
    %2627 = vmatprep.subr.bf16.mxu0 0
    %2628 = vmatpush1.bf16.msra.mxu0 0
    %2629 = vmatprep.subr.bf16.mxu0 0
    %2630 = vmatpush1.bf16.msra.mxu0 0
    %2631 = vmatprep.subr.bf16.mxu0 0
    %2632 = vmatpush1.bf16.msra.mxu0 0
    %2633 = vmatprep.subr.bf16.mxu0 0
    %2634 = vmatpush1.bf16.msra.mxu0 0
    %2635 = vmatprep.subr.bf16.mxu0 0
    %2636 = vmatpush1.bf16.msra.mxu0 0
    %2637 = vmatprep.mubr.bf16.mxu0 0
    %2638 = vmatmul.mubr.bf16.gmra.mrb[0].mxu0 %v2518
    %v2639 = vpop.f32.mrb[0].mxu0
    %v2640 = vadd.f32 %v2555, %v2639
    %v2641 = vpop.f32.mrb[0].mxu0
    %v2642 = vpop.f32.mrb[0].mxu0
    %v2643 = vadd.f32 %v2555, %v2642
    %v2644 = vpop.f32.mrb[0].mxu0
    %2645 = vmatprep.mubr.bf16.mxu0 0
    %2646 = vmatmul.mubr.bf16.gmra.mrb[0].mxu0 %v2519
    %v2647 = vpop.f32.mrb[0].mxu0
    %v2648 = vadd.f32 %v2555, %v2647
    %v2649 = vpop.f32.mrb[0].mxu0
    %v2650 = vpop.f32.mrb[0].mxu0
    %v2651 = vadd.f32 %v2555, %v2650
    %v2652 = vpop.f32.mrb[0].mxu0
    %2653 = vmatprep.mubr.bf16.mxu0 0
    %2654 = vmatmul.mubr.bf16.gmra.mrb[0].mxu0 %v2520
    %v2655 = vpop.f32.mrb[0].mxu0
    %v2656 = vadd.f32 %v2555, %v2655
    %v2657 = vpop.f32.mrb[0].mxu0
    %v2658 = vpop.f32.mrb[0].mxu0
    %v2659 = vadd.f32 %v2555, %v2658
    %v2660 = vpop.f32.mrb[0].mxu0
    %2661 = vmatprep.mubr.bf16.mxu0 0
    %2662 = vmatmul.mubr.bf16.gmra.mrb[0].mxu0 %v2521
    %v2663 = vpop.f32.mrb[0].mxu0
    %v2664 = vadd.f32 %v2555, %v2663
    %v2665 = vpop.f32.mrb[0].mxu0
    %v2666 = vpop.f32.mrb[0].mxu0
    %v2667 = vadd.f32 %v2555, %v2666
    %v2668 = vpop.f32.mrb[0].mxu0
    %2669 = vmatprep.mubr.bf16.mxu0 0
    %2670 = vmatmul.mubr.bf16.gmra.mrb[0].mxu0 %v2522
    %v2671 = vpop.f32.mrb[0].mxu0
    %v2672 = vadd.f32 %v2555, %v2671
    %v2673 = vpop.f32.mrb[0].mxu0
    %v2674 = vpop.f32.mrb[0].mxu0
    %v2675 = vadd.f32 %v2555, %v2674
    %v2676 = vpop.f32.mrb[0].mxu0
    %2677 = vmatprep.mubr.bf16.mxu0 0
    %2678 = vmatmul.mubr.bf16.gmra.mrb[0].mxu0 %v2523
    %v2679 = vpop.f32.mrb[0].mxu0
    %v2680 = vadd.f32 %v2555, %v2679
    %v2681 = vpop.f32.mrb[0].mxu0
    %v2682 = vpop.f32.mrb[0].mxu0
    %v2683 = vadd.f32 %v2555, %v2682
    %v2684 = vpop.f32.mrb[0].mxu0
    %2685 = vmatprep.mubr.bf16.mxu0 0
    %2686 = vmatmul.mubr.bf16.gmra.mrb[0].mxu0 %v2524
    %v2687 = vpop.f32.mrb[0].mxu0
    %v2688 = vadd.f32 %v2555, %v2687
    %v2689 = vpop.f32.mrb[0].mxu0
    %v2690 = vpop.f32.mrb[0].mxu0
    %v2691 = vadd.f32 %v2555, %v2690
    %v2692 = vpop.f32.mrb[0].mxu0
    %2693 = vmatprep.mubr.bf16.mxu0 0
    %2694 = vmatmul.mubr.bf16.gmra.mrb[0].mxu0 %v2525
    %v2695 = vpop.f32.mrb[0].mxu0
    %v2696 = vadd.f32 %v2555, %v2695
    %v2697 = vpop.f32.mrb[0].mxu0
    %v2698 = vpop.f32.mrb[0].mxu0
    %v2699 = vadd.f32 %v2555, %v2698
    %v2700 = vpop.f32.mrb[0].mxu0
    %2701 = vmatprep.mubr.bf16.mxu0 0
    %2702 = vmatmul.mubr.bf16.gmra.mrb[0].mxu0 %v2526
    %v2703 = vpop.f32.mrb[0].mxu0
    %v2704 = vadd.f32 %v2555, %v2703
    %v2705 = vpop.f32.mrb[0].mxu0
    %v2706 = vpop.f32.mrb[0].mxu0
    %v2707 = vadd.f32 %v2555, %v2706
    %v2708 = vpop.f32.mrb[0].mxu0
    %2709 = vmatprep.mubr.bf16.mxu0 0
    %2710 = vmatmul.mubr.bf16.gmra.mrb[0].mxu0 %v2527
    %v2711 = vpop.f32.mrb[0].mxu0
    %v2712 = vadd.f32 %v2555, %v2711
    %v2713 = vpop.f32.mrb[0].mxu0
    %v2714 = vpop.f32.mrb[0].mxu0
    %v2715 = vadd.f32 %v2555, %v2714
    %v2716 = vpop.f32.mrb[0].mxu0
    %2717 = vmatprep.mubr.bf16.mxu0 0
    %2718 = vmatmul.mubr.bf16.gmra.mrb[0].mxu0 %v2528
    %v2719 = vpop.f32.mrb[0].mxu0
    %v2720 = vadd.f32 %v2555, %v2719
    %v2721 = vpop.f32.mrb[0].mxu0
    %v2722 = vpop.f32.mrb[0].mxu0
    %v2723 = vadd.f32 %v2555, %v2722
    %v2724 = vpop.f32.mrb[0].mxu0
    %2725 = vmatprep.mubr.bf16.mxu0 0
    %2726 = vmatmul.mubr.bf16.gmra.mrb[0].mxu0 %v2529
    %v2727 = vpop.f32.mrb[0].mxu0
    %v2728 = vadd.f32 %v2555, %v2727
    %v2729 = vpop.f32.mrb[0].mxu0
    %v2730 = vpop.f32.mrb[0].mxu0
    %v2731 = vadd.f32 %v2555, %v2730
    %v2732 = vpop.f32.mrb[0].mxu0
    %2733 = vmatprep.mubr.bf16.mxu0 0
    %2734 = vmatmul.mubr.bf16.gmra.mrb[0].mxu0 %v2530
    %v2735 = vpop.f32.mrb[0].mxu0
    %v2736 = vadd.f32 %v2555, %v2735
    %v2737 = vpop.f32.mrb[0].mxu0
    %v2738 = vpop.f32.mrb[0].mxu0
    %v2739 = vadd.f32 %v2555, %v2738
    %v2740 = vpop.f32.mrb[0].mxu0
    %2741 = vmatprep.mubr.bf16.mxu0 0
    %2742 = vmatmul.mubr.bf16.gmra.mrb[0].mxu0 %v2531
    %v2743 = vpop.f32.mrb[0].mxu0
    %v2744 = vadd.f32 %v2555, %v2743
    %v2745 = vpop.f32.mrb[0].mxu0
    %v2746 = vpop.f32.mrb[0].mxu0
    %v2747 = vadd.f32 %v2555, %v2746
    %v2748 = vpop.f32.mrb[0].mxu0
    %2749 = vmatprep.mubr.bf16.mxu0 0
    %2750 = vmatmul.mubr.bf16.gmra.mrb[0].mxu0 %v2532
    %v2751 = vpop.f32.mrb[0].mxu0
    %v2752 = vadd.f32 %v2555, %v2751
    %v2753 = vpop.f32.mrb[0].mxu0
    %v2754 = vpop.f32.mrb[0].mxu0
    %v2755 = vadd.f32 %v2555, %v2754
    %v2756 = vpop.f32.mrb[0].mxu0
    %2757 = vmatprep.mubr.bf16.mxu0 0
    %2758 = vmatmul.mubr.bf16.gmra.mrb[0].mxu0 %v2533
    %v2759 = vpop.f32.mrb[0].mxu0
    %v2760 = vadd.f32 %v2555, %v2759
    %v2761 = vpop.f32.mrb[0].mxu0
    %v2762 = vpop.f32.mrb[0].mxu0
    %v2763 = vadd.f32 %v2555, %v2762
    %v2764 = vpop.f32.mrb[0].mxu0
    %2765 = vdwg.mxu0
    %v2766 = vlaneseq
    %v2767 = vshrl.u32 %v2766, 7
    %v2768 = vlaneseq
    %v2769 = vshrl.u32 %v2768, 7
    %v2770 = vsub.s32 0, %v2769
    %v2771 = vrot.slane %v276, %v2770
    %v2772 = vlaneseq
    %v2773 = vshrl.u32 %v2772, 7
    %v2774 = vsub.s32 1, %v2773
    %v2775 = vrot.slane %v276, %v2774
    %vm2776 = vcmp.eq.s32.totalorder %v2767, %v2771
    %vm2777 = vcmp.eq.s32.totalorder %v2767, %v2775
    %v2778 = vsel %vm2776, 1, 0
    %v2779 = vsel %vm2777, 1, 0
    %v2780 = vcvt.s32.f32 %v2778
    %v2781 = vcvt.s32.f32 %v2779
    %v2782 = vpack.c.bf16 %v2780, %v2780
    %v2783 = vpack.c.bf16 %v2781, %v2781
    %v2784 = vld [vmem:[#allocation2] sm:$0xff]
    %v2785 = vpack.c.bf16 %v2643, %v2640
    %v2786 = vpack.c.bf16 %v2651, %v2648
    %v2787 = vpack.c.bf16 %v2659, %v2656
    %v2788 = vpack.c.bf16 %v2667, %v2664
    %v2789 = vpack.c.bf16 %v2675, %v2672
    %v2790 = vpack.c.bf16 %v2683, %v2680
    %v2791 = vpack.c.bf16 %v2691, %v2688
    %v2792 = vpack.c.bf16 %v2699, %v2696
    %v2793 = vpack.c.bf16 %v2707, %v2704
    %v2794 = vpack.c.bf16 %v2715, %v2712
    %v2795 = vpack.c.bf16 %v2723, %v2720
    %v2796 = vpack.c.bf16 %v2731, %v2728
    %v2797 = vpack.c.bf16 %v2739, %v2736
    %v2798 = vpack.c.bf16 %v2747, %v2744
    %v2799 = vpack.c.bf16 %v2755, %v2752
    %v2800 = vpack.c.bf16 %v2763, %v2760
    %2801 = vmatprep.subr.bf16.mxu0 0
    %2802 = vmatpush1.bf16.msra.mxu0 %v2785
    %2803 = vmatprep.subr.bf16.mxu0 0
    %2804 = vmatpush1.bf16.msra.mxu0 %v2786
    %2805 = vmatprep.subr.bf16.mxu0 0
    %2806 = vmatpush1.bf16.msra.mxu0 %v2787
    %2807 = vmatprep.subr.bf16.mxu0 0
    %2808 = vmatpush1.bf16.msra.mxu0 %v2788
    %2809 = vmatprep.subr.bf16.mxu0 0
    %2810 = vmatpush1.bf16.msra.mxu0 %v2789
    %2811 = vmatprep.subr.bf16.mxu0 0
    %2812 = vmatpush1.bf16.msra.mxu0 %v2790
    %2813 = vmatprep.subr.bf16.mxu0 0
    %2814 = vmatpush1.bf16.msra.mxu0 %v2791
    %2815 = vmatprep.subr.bf16.mxu0 0
    %2816 = vmatpush1.bf16.msra.mxu0 %v2792
    %2817 = vmatprep.subr.bf16.mxu0 0
    %2818 = vmatpush1.bf16.msra.mxu0 %v2793
    %2819 = vmatprep.subr.bf16.mxu0 0
    %2820 = vmatpush1.bf16.msra.mxu0 %v2794
    %2821 = vmatprep.subr.bf16.mxu0 0
    %2822 = vmatpush1.bf16.msra.mxu0 %v2795
    %2823 = vmatprep.subr.bf16.mxu0 0
    %2824 = vmatpush1.bf16.msra.mxu0 %v2796
    %2825 = vmatprep.subr.bf16.mxu0 0
    %2826 = vmatpush1.bf16.msra.mxu0 %v2797
    %2827 = vmatprep.subr.bf16.mxu0 0
    %2828 = vmatpush1.bf16.msra.mxu0 %v2798
    %2829 = vmatprep.subr.bf16.mxu0 0
    %2830 = vmatpush1.bf16.msra.mxu0 %v2799
    %2831 = vmatprep.subr.bf16.mxu0 0
    %2832 = vmatpush1.bf16.msra.mxu0 %v2800
    %2833 = vmatprep.mubr.bf16.mxu0 %v2783
    %2834 = vmatmul.mubr.bf16.gmra.mrb[0].mxu0 %v2782
    %v2835 = vpop.f32.mrb[0].mxu0
    %v2836 = vadd.f32 0.0, %v2835
    %v2837 = vpop.f32.mrb[0].mxu0
    %v2838 = vpop.f32.mrb[0].mxu0
    %v2839 = vpop.f32.mrb[0].mxu0
    %2840 = vdwg.mxu0
    %v2841 = vadd.f32 %v2784, %v2836
    %2842 = vst [vmem:[#allocation2] sm:$0xff] %v2841
    // Predicated region
    $region114: #{tpu_custom_call.1} parent=1 // pred_check
      %p2843 = pneg %p174
    $region115: #{tpu_custom_call.1} parent=1 // pred_check_branch
      %2845 = sbr.rel (%p2843) target = $region117
    $region116: #{tpu_custom_call.1} parent=1 // pred_region
      %v2846 = vld [vmem:[#allocation2] sm:$0xff]
      %v2847 = vld [vmem:[%s4] sm:$0xff]
      %2849 = vset.pattern.permute.xlu0 0
      %2850 = vperm.xlu0 %2849, %v2847
      %v2851 = vpop.permute.xlu0 %2850
      %v2853 = vmul.f32 %v2846, %v2851
      %v2854 = vpack.c.bf16 %v2853, %v2853
      %v2855 = vld [vmem:[%s14] sm:$0xf]
      %v2856 = vld [vmem:[%s14 + $0x4] sm:$0xf]
      %v2857 = vld [vmem:[%s14 + $0x8] sm:$0xf]
      %v2858 = vld [vmem:[%s14 + $0xc] sm:$0xf]
      %v2859 = vld [vmem:[%s14 + $0x10] sm:$0xf]
      %v2860 = vld [vmem:[%s14 + $0x14] sm:$0xf]
      %v2861 = vld [vmem:[%s14 + $0x18] sm:$0xf]
      %v2862 = vld [vmem:[%s14 + $0x1c] sm:$0xf]
      %v2863 = vld [vmem:[%s14 + $0x20] sm:$0xf]
      %v2864 = vld [vmem:[%s14 + $0x24] sm:$0xf]
      %v2865 = vld [vmem:[%s14 + $0x28] sm:$0xf]
      %v2866 = vld [vmem:[%s14 + $0x2c] sm:$0xf]
      %v2867 = vld [vmem:[%s14 + $0x30] sm:$0xf]
      %v2868 = vld [vmem:[%s14 + $0x34] sm:$0xf]
      %v2869 = vld [vmem:[%s14 + $0x38] sm:$0xf]
      %v2870 = vld [vmem:[%s14 + $0x3c] sm:$0xf]
      %v2871 = vld [vmem:[%s14 + $0x40] sm:$0xf]
      %v2872 = vld [vmem:[%s14 + $0x44] sm:$0xf]
      %v2873 = vld [vmem:[%s14 + $0x48] sm:$0xf]
      %v2874 = vld [vmem:[%s14 + $0x4c] sm:$0xf]
      %v2875 = vld [vmem:[%s14 + $0x50] sm:$0xf]
      %v2876 = vld [vmem:[%s14 + $0x54] sm:$0xf]
      %v2877 = vld [vmem:[%s14 + $0x58] sm:$0xf]
      %v2878 = vld [vmem:[%s14 + $0x5c] sm:$0xf]
      %v2879 = vld [vmem:[%s14 + $0x60] sm:$0xf]
      %v2880 = vld [vmem:[%s14 + $0x64] sm:$0xf]
      %v2881 = vld [vmem:[%s14 + $0x68] sm:$0xf]
      %v2882 = vld [vmem:[%s14 + $0x6c] sm:$0xf]
      %v2883 = vld [vmem:[%s14 + $0x70] sm:$0xf]
      %v2884 = vld [vmem:[%s14 + $0x74] sm:$0xf]
      %v2885 = vld [vmem:[%s14 + $0x78] sm:$0xf]
      %v2886 = vld [vmem:[%s14 + $0x7c] sm:$0xf]
      %v2887 = vld [vmem:[#allocation17] sm:$0x1]
      %v2889 = vlaneseq
      %v2890 = vshrl.u32 %v2889, 7
      %v2891 = vsub.s32 0, %v2890
      %v2892 = vrot.slane %v2887, %v2891
      %v2926 = vunpack.c.l.b16 %v2855
      %v2927 = vunpack.c.l.b16 %v2856
      %v2928 = vunpack.c.l.b16 %v2857
      %v2929 = vunpack.c.l.b16 %v2858
      %v2930 = vunpack.c.l.b16 %v2859
      %v2931 = vunpack.c.l.b16 %v2860
      %v2932 = vunpack.c.l.b16 %v2861
      %v2933 = vunpack.c.l.b16 %v2862
      %v2934 = vunpack.c.l.b16 %v2863
      %v2935 = vunpack.c.l.b16 %v2864
      %v2936 = vunpack.c.l.b16 %v2865
      %v2937 = vunpack.c.l.b16 %v2866
      %v2938 = vunpack.c.l.b16 %v2867
      %v2939 = vunpack.c.l.b16 %v2868
      %v2940 = vunpack.c.l.b16 %v2869
      %v2941 = vunpack.c.l.b16 %v2870
      %v2942 = vunpack.c.l.b16 %v2871
      %v2943 = vunpack.c.l.b16 %v2872
      %v2944 = vunpack.c.l.b16 %v2873
      %v2945 = vunpack.c.l.b16 %v2874
      %v2946 = vunpack.c.l.b16 %v2875
      %v2947 = vunpack.c.l.b16 %v2876
      %v2948 = vunpack.c.l.b16 %v2877
      %v2949 = vunpack.c.l.b16 %v2878
      %v2950 = vunpack.c.l.b16 %v2879
      %v2951 = vunpack.c.l.b16 %v2880
      %v2952 = vunpack.c.l.b16 %v2881
      %v2953 = vunpack.c.l.b16 %v2882
      %v2954 = vunpack.c.l.b16 %v2883
      %v2955 = vunpack.c.l.b16 %v2884
      %v2956 = vunpack.c.l.b16 %v2885
      %v2957 = vunpack.c.l.b16 %v2886
      %v2958 = vpack.c.b16 %v2927, %v2926
      %v2959 = vpack.c.b16 %v2929, %v2928
      %v2960 = vpack.c.b16 %v2931, %v2930
      %v2961 = vpack.c.b16 %v2933, %v2932
      %v2962 = vpack.c.b16 %v2935, %v2934
      %v2963 = vpack.c.b16 %v2937, %v2936
      %v2964 = vpack.c.b16 %v2939, %v2938
      %v2965 = vpack.c.b16 %v2941, %v2940
      %v2966 = vpack.c.b16 %v2943, %v2942
      %v2967 = vpack.c.b16 %v2945, %v2944
      %v2968 = vpack.c.b16 %v2947, %v2946
      %v2969 = vpack.c.b16 %v2949, %v2948
      %v2970 = vpack.c.b16 %v2951, %v2950
      %v2971 = vpack.c.b16 %v2953, %v2952
      %v2972 = vpack.c.b16 %v2955, %v2954
      %v2973 = vpack.c.b16 %v2957, %v2956
      %2990 = vmatprep.subr.bf16.mxu0 0
      %2991 = vmatpush1.bf16.msra.mxu0 %v2958
      %2992 = vmatprep.subr.bf16.mxu0 0
      %2993 = vmatpush1.bf16.msra.mxu0 %v2959
      %2994 = vmatprep.subr.bf16.mxu0 0
      %2995 = vmatpush1.bf16.msra.mxu0 %v2960
      %2996 = vmatprep.subr.bf16.mxu0 0
      %2997 = vmatpush1.bf16.msra.mxu0 %v2961
      %2998 = vmatprep.subr.bf16.mxu0 0
      %2999 = vmatpush1.bf16.msra.mxu0 %v2962
      %3000 = vmatprep.subr.bf16.mxu0 0
      %3001 = vmatpush1.bf16.msra.mxu0 %v2963
      %3002 = vmatprep.subr.bf16.mxu0 0
      %3003 = vmatpush1.bf16.msra.mxu0 %v2964
      %3004 = vmatprep.subr.bf16.mxu0 0
      %3005 = vmatpush1.bf16.msra.mxu0 %v2965
      %3006 = vmatprep.subr.bf16.mxu0 0
      %3007 = vmatpush1.bf16.msra.mxu0 %v2966
      %3008 = vmatprep.subr.bf16.mxu0 0
      %3009 = vmatpush1.bf16.msra.mxu0 %v2967
      %3010 = vmatprep.subr.bf16.mxu0 0
      %3011 = vmatpush1.bf16.msra.mxu0 %v2968
      %3012 = vmatprep.subr.bf16.mxu0 0
      %3013 = vmatpush1.bf16.msra.mxu0 %v2969
      %3014 = vmatprep.subr.bf16.mxu0 0
      %3015 = vmatpush1.bf16.msra.mxu0 %v2970
      %3016 = vmatprep.subr.bf16.mxu0 0
      %3017 = vmatpush1.bf16.msra.mxu0 %v2971
      %3018 = vmatprep.subr.bf16.mxu0 0
      %3019 = vmatpush1.bf16.msra.mxu0 %v2972
      %3020 = vmatprep.subr.bf16.mxu0 0
      %3021 = vmatpush1.bf16.msra.mxu0 %v2973
      %3022 = vmatprep.mubr.bf16.mxu0 %v2854
      %3023 = vmatmul.mubr.bf16.gmra.mrb[0].mxu0 %v179
      %v3024 = vpop.f32.mrb[0].mxu0
      %v3025 = vadd.f32 %v2892, %v3024
      %v3026 = vpop.f32.mrb[0].mxu0
      %v3027 = vpop.f32.mrb[0].mxu0
      %v3028 = vpop.f32.mrb[0].mxu0
      %3029 = vdwg.mxu0
      %v3030 = vmax.f32 %v3025, 0.0
      %v3031 = vpack.c.bf16 %v3030, %v3030
      %v3032 = vld [vmem:[%s16] sm:$0xf]
      %v3033 = vld [vmem:[%s16 + $0x4] sm:$0xf]
      %v3034 = vld [vmem:[%s16 + $0x8] sm:$0xf]
      %v3035 = vld [vmem:[%s16 + $0xc] sm:$0xf]
      %v3036 = vld [vmem:[%s16 + $0x10] sm:$0xf]
      %v3037 = vld [vmem:[%s16 + $0x14] sm:$0xf]
      %v3038 = vld [vmem:[%s16 + $0x18] sm:$0xf]
      %v3039 = vld [vmem:[%s16 + $0x1c] sm:$0xf]
      %v3040 = vld [vmem:[%s16 + $0x20] sm:$0xf]
      %v3041 = vld [vmem:[%s16 + $0x24] sm:$0xf]
      %v3042 = vld [vmem:[%s16 + $0x28] sm:$0xf]
      %v3043 = vld [vmem:[%s16 + $0x2c] sm:$0xf]
      %v3044 = vld [vmem:[%s16 + $0x30] sm:$0xf]
      %v3045 = vld [vmem:[%s16 + $0x34] sm:$0xf]
      %v3046 = vld [vmem:[%s16 + $0x38] sm:$0xf]
      %v3047 = vld [vmem:[%s16 + $0x3c] sm:$0xf]
      %v3048 = vld [vmem:[%s17] sm:$0x1]
      %v3050 = vlaneseq
      %v3051 = vshrl.u32 %v3050, 7
      %v3052 = vsub.s32 0, %v3051
      %v3053 = vrot.slane %v3048, %v3052
      %v3071 = vunpack.c.l.b16 %v3032
      %v3072 = vunpack.c.l.b16 %v3033
      %v3073 = vunpack.c.l.b16 %v3034
      %v3074 = vunpack.c.l.b16 %v3035
      %v3075 = vunpack.c.l.b16 %v3036
      %v3076 = vunpack.c.l.b16 %v3037
      %v3077 = vunpack.c.l.b16 %v3038
      %v3078 = vunpack.c.l.b16 %v3039
      %v3079 = vunpack.c.l.b16 %v3040
      %v3080 = vunpack.c.l.b16 %v3041
      %v3081 = vunpack.c.l.b16 %v3042
      %v3082 = vunpack.c.l.b16 %v3043
      %v3083 = vunpack.c.l.b16 %v3044
      %v3084 = vunpack.c.l.b16 %v3045
      %v3085 = vunpack.c.l.b16 %v3046
      %v3086 = vunpack.c.l.b16 %v3047
      %v3087 = vpack.c.b16 %v3072, %v3071
      %v3088 = vpack.c.b16 %v3074, %v3073
      %v3089 = vpack.c.b16 %v3076, %v3075
      %v3090 = vpack.c.b16 %v3078, %v3077
      %v3091 = vpack.c.b16 %v3080, %v3079
      %v3092 = vpack.c.b16 %v3082, %v3081
      %v3093 = vpack.c.b16 %v3084, %v3083
      %v3094 = vpack.c.b16 %v3086, %v3085
      %3103 = vmatprep.subr.bf16.mxu0 0
      %3104 = vmatpush1.bf16.msra.mxu0 %v3087
      %3105 = vmatprep.subr.bf16.mxu0 0
      %3106 = vmatpush1.bf16.msra.mxu0 %v3088
      %3107 = vmatprep.subr.bf16.mxu0 0
      %3108 = vmatpush1.bf16.msra.mxu0 %v3089
      %3109 = vmatprep.subr.bf16.mxu0 0
      %3110 = vmatpush1.bf16.msra.mxu0 %v3090
      %3111 = vmatprep.subr.bf16.mxu0 0
      %3112 = vmatpush1.bf16.msra.mxu0 %v3091
      %3113 = vmatprep.subr.bf16.mxu0 0
      %3114 = vmatpush1.bf16.msra.mxu0 %v3092
      %3115 = vmatprep.subr.bf16.mxu0 0
      %3116 = vmatpush1.bf16.msra.mxu0 %v3093
      %3117 = vmatprep.subr.bf16.mxu0 0
      %3118 = vmatpush1.bf16.msra.mxu0 %v3094
      %3119 = vmatprep.subr.bf16.mxu0 0
      %3120 = vmatpush1.bf16.msra.mxu0 0
      %3121 = vmatprep.subr.bf16.mxu0 0
      %3122 = vmatpush1.bf16.msra.mxu0 0
      %3123 = vmatprep.subr.bf16.mxu0 0
      %3124 = vmatpush1.bf16.msra.mxu0 0
      %3125 = vmatprep.subr.bf16.mxu0 0
      %3126 = vmatpush1.bf16.msra.mxu0 0
      %3127 = vmatprep.subr.bf16.mxu0 0
      %3128 = vmatpush1.bf16.msra.mxu0 0
      %3129 = vmatprep.subr.bf16.mxu0 0
      %3130 = vmatpush1.bf16.msra.mxu0 0
      %3131 = vmatprep.subr.bf16.mxu0 0
      %3132 = vmatpush1.bf16.msra.mxu0 0
      %3133 = vmatprep.subr.bf16.mxu0 0
      %3134 = vmatpush1.bf16.msra.mxu0 0
      %3135 = vmatprep.mubr.bf16.mxu0 0
      %3136 = vmatmul.mubr.bf16.gmra.mrb[0].mxu0 %v3031
      %v3137 = vpop.f32.mrb[0].mxu0
      %v3138 = vadd.f32 %v3053, %v3137
      %v3139 = vpop.f32.mrb[0].mxu0
      %v3140 = vpop.f32.mrb[0].mxu0
      %v3141 = vpop.f32.mrb[0].mxu0
      %3142 = vdwg.mxu0
      %3143 = vst [vmem:[#allocation18] sm:$0xff] %v3138
    $region117: #{tpu_custom_call.1} parent=1 // pred_fallthru
      _
    // Predicated region
    $region118: #{tpu_custom_call.1} parent=1 // pred_check
      _
    $region119: #{tpu_custom_call.1} parent=1 // pred_check_branch
      %3145 = sbr.rel (0) target = $region121
    $region120: #{tpu_custom_call.1} parent=1 // pred_region
      %s3147 = ssub.s32 128, 128
      %3148 = vsyncadd [#allocation5], %s3147
      %s3150 = sshll.u32 [#allocation18], 4
      %s3151 = int_to_ptr.vmem [resolvable:$true] %s3150
      %3153 = dma.vmem_to_hbm [thread:$0]  %s3151, 128, %s18, [#allocation5]
    $region121: #{tpu_custom_call.1} parent=1 // pred_fallthru
      _
    // Predicated region
    $region122: #{tpu_custom_call.1} parent=1 // pred_check
      _
    $region123: #{tpu_custom_call.1} parent=1 // pred_check_branch
      %3155 = sbr.rel (0) target = $region125
    $region124: #{tpu_custom_call.1} parent=1 // pred_region
      %s3157 = ssub.s32 4096, 4096
      %3158 = vsyncadd [#allocation20], %s3157
      %s3159 = sshll.u32 [#allocation19], 4
      %s3160 = int_to_ptr.vmem [resolvable:$true] %s3159
      %3165 = dma.vmem_to_hbm [thread:$0]  %s3160, 4096, %s19, [#allocation20], 128, 128, 8
    $region125: #{tpu_custom_call.1} parent=1 // pred_fallthru
      _
    // Predicated region
    $region126: #{tpu_custom_call.1} parent=1 // pred_check
      _
    $region127: #{tpu_custom_call.1} parent=1 // pred_check_branch
      %3167 = sbr.rel (0) target = $region129
    $region128: #{tpu_custom_call.1} parent=1 // pred_region
      %3168 = dma.done [#allocation5], 128
    $region129: #{tpu_custom_call.1} parent=1 // pred_fallthru
      _
    // Predicated region
    $region130: #{tpu_custom_call.1} parent=1 // pred_check
      _
    $region131: #{tpu_custom_call.1} parent=1 // pred_check_branch
      %3170 = sbr.rel (0) target = $region133
    $region132: #{tpu_custom_call.1} parent=1 // pred_region
      %3171 = dma.done [#allocation20], 4096
    $region133: #{tpu_custom_call.1} parent=1 // pred_fallthru
      _
    %3172 = vsyncpa [#allocation4], 1
    %3173 = vsyncpa [#allocation7], 1
    %3174 = vsyncpa [#allocation10], 1
    %3175 = vsyncpa [#allocation13], 1
    %3176 = vsyncpa [#allocation16], 1
    %3177 = vsyncpa [#allocation5], 1
    %3178 = vsyncpa [#allocation20], 1

</llo_original>
